<compile_context>
chip_gen: v6e
topology: v6e:2x2x1
jax: 0.10.0
libtpu: 0.0.40
codegen_flags: <defaults>
</compile_context>

<pallas_src>
import functools

import jax
import jax.numpy as jnp
from jax import lax
from jax.experimental import pallas as pl
from jax.experimental.pallas import tpu as pltpu

KMAX = 7  # largest scale; smaller kernels are zero-padded to this size


def _msf_kernel(x_ref, w_ref, b_ref, o_ref, *, H, Wp, scales, cin, cout):
    """One batch element: fused multi-scale conv + bias + ReLU + sum.

    x_ref: (1, Cin, L)              flattened spatially-padded image (f32)
    w_ref: (S, Cout, KMAX*KMAX*Cin) per-scale weights, columns ordered (dy,dx,cin)
    b_ref: (S, Cout, 1)             per-scale biases
    o_ref: (1, Cout, H*Wp)          lane-dense extended output
    """
    M = H * Wp                       # extended spatial extent (lane dim)
    xf = x_ref[0]                    # (Cin, L)

    # Per-scale weights loaded once; per-scale accumulators initialised with
    # the broadcast bias (bias folded into the accumulator init, hoisted).
    w_all = [w_ref[s] for s in range(len(scales))]               # (Cout, 49*Cin)
    accs = [jnp.broadcast_to(b_ref[s], (cout, M)).astype(jnp.float32)
            for s in range(len(scales))]

    kc = KMAX * cin                  # contraction depth per dy (= 28 here)
    for dy in range(KMAX):
        # Build the (KMAX*Cin, M) slab for this dy: each dx tap is a contiguous
        # lane-slice of the flattened padded image (no reshapes needed).
        chunks = [xf[:, dy * Wp + dx: dy * Wp + dx + M] for dx in range(KMAX)]
        b_dy = jnp.concatenate(chunks, axis=0)                   # (KMAX*cin, M)

        for s, k in enumerate(scales):
            off = (KMAX - k) // 2
            if off <= dy < off + k:  # static: skip dys that are all-zero taps
                w_dy = w_all[s][:, dy * kc:(dy + 1) * kc]        # (Cout, KMAX*cin)
                accs[s] = accs[s] + lax.dot_general(
                    w_dy, b_dy,
                    dimension_numbers=(((1,), (0,)), ((), ())),
                    preferred_element_type=jnp.float32)          # (Cout, M)

    total = jnp.zeros((cout, M), jnp.float32)
    for s in range(len(scales)):
        total = total + jnp.maximum(accs[s], 0.0)                # per-scale ReLU

    o_ref[0] = total.astype(o_ref.dtype)                         # single store


def multi_scale_filter(x_nchw, w_list, b_list, scales):
    """x_nchw: (N, Cin, H, W) f32; w_list[i]: (k_i, k_i, Cin, Cout) HWIO;
    b_list[i]: (Cout,).  Returns (N, Cout, H, W) f32."""
    N, Cin, H, W = x_nchw.shape
    Cout = w_list[0].shape[-1]
    S = len(scales)

    P = KMAX // 2
    Wp = W + 2 * P
    Hp = H + 2 * P + 1               # one extra bottom row keeps flat slices in range
    L = Hp * Wp
    M = H * Wp

    # Spatial SAME padding for the largest scale, then flatten (free bitcast).
    x_pad = jnp.pad(x_nchw, ((0, 0), (0, 0), (P, P + 1), (P, P)))
    x_flat = x_pad.reshape(N, Cin, L)

    # Zero-pad each k x k kernel to KMAX x KMAX (exact for SAME padding) and
    # flatten to (Cout, KMAX*KMAX*Cin) with column order (dy, dx, cin).
    w_rows = []
    for w in w_list:
        k = w.shape[0]
        p = (KMAX - k) // 2
        wpad = jnp.pad(w, ((p, p), (p, p), (0, 0), (0, 0)))       # (7,7,Cin,Cout)
        w_rows.append(jnp.transpose(wpad.reshape(KMAX * KMAX * Cin, Cout)))
    w_all = jnp.stack(w_rows, axis=0).astype(jnp.float32)         # (S,Cout,49*Cin)
    b_all = jnp.stack(b_list, axis=0).reshape(S, Cout, 1).astype(jnp.float32)

    kernel = functools.partial(_msf_kernel, H=H, Wp=Wp, scales=tuple(scales),
                               cin=Cin, cout=Cout)

    y_ext = pl.pallas_call(
        kernel,
        out_shape=jax.ShapeDtypeStruct((N, Cout, M), jnp.float32),
        grid_spec=pltpu.PrefetchScalarGridSpec(
            num_scalar_prefetch=0,
            grid=(N,),
            in_specs=[
                pl.BlockSpec((1, Cin, L), lambda b: (b, 0, 0)),
                pl.BlockSpec((S, Cout, KMAX * KMAX * Cin), lambda b: (0, 0, 0)),
                pl.BlockSpec((S, Cout, 1), lambda b: (0, 0, 0)),
            ],
            out_specs=pl.BlockSpec((1, Cout, M), lambda b: (b, 0, 0)),
        ),
        compiler_params=pltpu.CompilerParams(
            dimension_semantics=("parallel",)),
    )(x_flat, w_all, b_all)

    # Drop the Wp - W garbage columns produced by the flat-tap trick.  The
    # reshape splits the minor dim (free bitcast); the slice is a tiny XLA op.
    return y_ext.reshape(N, Cout, H, Wp)[:, :, :, :W]


def reference_nchw(x_nchw, w_list, b_list):
    """Pure-JAX reference of the PyTorch forward (per-scale conv+ReLU, summed)."""
    out = None
    for w, b in zip(w_list, b_list):
        k = w.shape[0]
        y = lax.conv_general_dilated(
            x_nchw, w, window_strides=(1, 1),
            padding=((k // 2, k // 2), (k // 2, k // 2)),
            dimension_numbers=("NCHW", "HWIO", "NCHW"))
        y = jnp.maximum(y + b[None, :, None, None], 0.0)
        out = y if out is None else out + y
    return out


if __name__ == "__main__":
    # Small shapes consistent with the module: batch=2, in_channels=4,
    # out_channels=8, spatial 16x16, scales=[3, 5, 7].
    N, Cin, Cout, H, W = 2, 4, 8, 16, 16
    scales = [3, 5, 7]

    key = jax.random.PRNGKey(0)
    kx, *kws = jax.random.split(key, 1 + 2 * len(scales))

    x = jax.random.normal(kx, (N, Cin, H, W), dtype=jnp.float32)

    # Deterministic parameter init (HWIO weights + bias per scale), roughly
    # matching nn.Conv2d's uniform fan-in scaling.
    w_list, b_list = [], []
    for i, k in enumerate(scales):
        fan_in = Cin * k * k
        bound = 1.0 / (fan_in ** 0.5)
        w = jax.random.uniform(kws[2 * i], (k, k, Cin, Cout),
                               minval=-bound, maxval=bound, dtype=jnp.float32)
        b = jax.random.uniform(kws[2 * i + 1], (Cout,),
                               minval=-bound, maxval=bound, dtype=jnp.float32)
        w_list.append(w)
        b_list.append(b)

    out = multi_scale_filter(x, w_list, b_list, scales)
    out = jax.block_until_ready(out)

    ref = reference_nchw(x, w_list, b_list)
    assert out.shape == (N, Cout, H, W)
    assert jnp.allclose(out, ref, atol=1e-3, rtol=1e-3), "mismatch vs reference"

    print("KERNEL_OK")
</pallas_src>

<mosaic_0001>
module attributes {stable_mosaic.version = 11 : i64} {
  func.func @_msf_kernel(%arg0: i32, %arg1: memref<1x4x506xf32, #tpu.memory_space<vmem>>, %arg2: memref<3x8x196xf32, #tpu.memory_space<vmem>>, %arg3: memref<3x8x1xf32, #tpu.memory_space<vmem>>, %arg4: memref<1x8x352xf32, #tpu.memory_space<vmem>>) attributes {dimension_semantics = [#tpu.dimension_semantics<parallel>], iteration_bounds = array<i64: 2>, scalar_prefetch = 0 : i64, scratch_operands = 0 : i64, tpu.core_type = #tpu.core_type<tc>, window_params = [{transform_indices = @transform_0, window_bounds = array<i64: 1, 4, 506>}, {pipeline_mode = #tpu.pipeline_mode<synchronous>, transform_indices = @transform_1, window_bounds = array<i64: 3, 8, 196>}, {pipeline_mode = #tpu.pipeline_mode<synchronous>, transform_indices = @transform_2, window_bounds = array<i64: 3, 8, 1>}, {transform_indices = @transform_3, window_bounds = array<i64: 1, 8, 352>}]} {
    %c0 = arith.constant 0 : index
    %c0_0 = arith.constant 0 : index
    %c0_1 = arith.constant 0 : index
    %0 = vector.load %arg1[%c0, %c0_0, %c0_1] : memref<1x4x506xf32, #tpu.memory_space<vmem>>, vector<1x4x506xf32>
    %1 = vector.shape_cast %0 : vector<1x4x506xf32> to vector<4x506xf32>
    %c0_2 = arith.constant 0 : index
    %c0_3 = arith.constant 0 : index
    %c0_4 = arith.constant 0 : index
    %2 = vector.load %arg2[%c0_2, %c0_3, %c0_4] : memref<3x8x196xf32, #tpu.memory_space<vmem>>, vector<1x8x196xf32>
    %3 = vector.shape_cast %2 : vector<1x8x196xf32> to vector<8x196xf32>
    %c1 = arith.constant 1 : index
    %c0_5 = arith.constant 0 : index
    %c0_6 = arith.constant 0 : index
    %4 = vector.load %arg2[%c1, %c0_5, %c0_6] : memref<3x8x196xf32, #tpu.memory_space<vmem>>, vector<1x8x196xf32>
    %5 = vector.shape_cast %4 : vector<1x8x196xf32> to vector<8x196xf32>
    %c2 = arith.constant 2 : index
    %c0_7 = arith.constant 0 : index
    %c0_8 = arith.constant 0 : index
    %6 = vector.load %arg2[%c2, %c0_7, %c0_8] : memref<3x8x196xf32, #tpu.memory_space<vmem>>, vector<1x8x196xf32>
    %7 = vector.shape_cast %6 : vector<1x8x196xf32> to vector<8x196xf32>
    %c0_9 = arith.constant 0 : index
    %c0_10 = arith.constant 0 : index
    %c0_11 = arith.constant 0 : index
    %8 = vector.load %arg3[%c0_9, %c0_10, %c0_11] : memref<3x8x1xf32, #tpu.memory_space<vmem>>, vector<1x8x1xf32>
    %9 = vector.shape_cast %8 : vector<1x8x1xf32> to vector<8x1xf32>
    %10 = vector.shape_cast %9 : vector<8x1xf32> to vector<8x1xf32>
    %11 = vector.broadcast %10 : vector<8x1xf32> to vector<8x352xf32>
    %c1_12 = arith.constant 1 : index
    %c0_13 = arith.constant 0 : index
    %c0_14 = arith.constant 0 : index
    %12 = vector.load %arg3[%c1_12, %c0_13, %c0_14] : memref<3x8x1xf32, #tpu.memory_space<vmem>>, vector<1x8x1xf32>
    %13 = vector.shape_cast %12 : vector<1x8x1xf32> to vector<8x1xf32>
    %14 = vector.shape_cast %13 : vector<8x1xf32> to vector<8x1xf32>
    %15 = vector.broadcast %14 : vector<8x1xf32> to vector<8x352xf32>
    %c2_15 = arith.constant 2 : index
    %c0_16 = arith.constant 0 : index
    %c0_17 = arith.constant 0 : index
    %16 = vector.load %arg3[%c2_15, %c0_16, %c0_17] : memref<3x8x1xf32, #tpu.memory_space<vmem>>, vector<1x8x1xf32>
    %17 = vector.shape_cast %16 : vector<1x8x1xf32> to vector<8x1xf32>
    %18 = vector.shape_cast %17 : vector<8x1xf32> to vector<8x1xf32>
    %19 = vector.broadcast %18 : vector<8x1xf32> to vector<8x352xf32>
    %20 = vector.extract_strided_slice %1 {offsets = [0, 0], sizes = [4, 352], strides = [1, 1]} : vector<4x506xf32> to vector<4x352xf32>
    %21 = vector.extract_strided_slice %1 {offsets = [0, 1], sizes = [4, 352], strides = [1, 1]} : vector<4x506xf32> to vector<4x352xf32>
    %22 = vector.extract_strided_slice %1 {offsets = [0, 2], sizes = [4, 352], strides = [1, 1]} : vector<4x506xf32> to vector<4x352xf32>
    %23 = vector.extract_strided_slice %1 {offsets = [0, 3], sizes = [4, 352], strides = [1, 1]} : vector<4x506xf32> to vector<4x352xf32>
    %24 = vector.extract_strided_slice %1 {offsets = [0, 4], sizes = [4, 352], strides = [1, 1]} : vector<4x506xf32> to vector<4x352xf32>
    %25 = vector.extract_strided_slice %1 {offsets = [0, 5], sizes = [4, 352], strides = [1, 1]} : vector<4x506xf32> to vector<4x352xf32>
    %26 = vector.extract_strided_slice %1 {offsets = [0, 6], sizes = [4, 352], strides = [1, 1]} : vector<4x506xf32> to vector<4x352xf32>
    %27 = tpu.concatenate %20, %21, %22, %23, %24, %25, %26 in 0 : vector<4x352xf32>, vector<4x352xf32>, vector<4x352xf32>, vector<4x352xf32>, vector<4x352xf32>, vector<4x352xf32>, vector<4x352xf32> -> vector<28x352xf32>
    %28 = vector.extract_strided_slice %7 {offsets = [0, 0], sizes = [8, 28], strides = [1, 1]} : vector<8x196xf32> to vector<8x28xf32>
    %cst = arith.constant dense<0.000000e+00> : vector<8x352xf32>
    %29 = tpu.matmul %28, %27, %cst {dimension_numbers = #tpu.dot_dimension_numbers<[1], [0], [0], [1], [0, 0, 1, 1], [], []>} : vector<8x28xf32>, vector<28x352xf32>, vector<8x352xf32> -> vector<8x352xf32>
    %30 = arith.addf %19, %29 : vector<8x352xf32>
    %31 = vector.extract_strided_slice %1 {offsets = [0, 22], sizes = [4, 352], strides = [1, 1]} : vector<4x506xf32> to vector<4x352xf32>
    %32 = vector.extract_strided_slice %1 {offsets = [0, 23], sizes = [4, 352], strides = [1, 1]} : vector<4x506xf32> to vector<4x352xf32>
    %33 = vector.extract_strided_slice %1 {offsets = [0, 24], sizes = [4, 352], strides = [1, 1]} : vector<4x506xf32> to vector<4x352xf32>
    %34 = vector.extract_strided_slice %1 {offsets = [0, 25], sizes = [4, 352], strides = [1, 1]} : vector<4x506xf32> to vector<4x352xf32>
    %35 = vector.extract_strided_slice %1 {offsets = [0, 26], sizes = [4, 352], strides = [1, 1]} : vector<4x506xf32> to vector<4x352xf32>
    %36 = vector.extract_strided_slice %1 {offsets = [0, 27], sizes = [4, 352], strides = [1, 1]} : vector<4x506xf32> to vector<4x352xf32>
    %37 = vector.extract_strided_slice %1 {offsets = [0, 28], sizes = [4, 352], strides = [1, 1]} : vector<4x506xf32> to vector<4x352xf32>
    %38 = tpu.concatenate %31, %32, %33, %34, %35, %36, %37 in 0 : vector<4x352xf32>, vector<4x352xf32>, vector<4x352xf32>, vector<4x352xf32>, vector<4x352xf32>, vector<4x352xf32>, vector<4x352xf32> -> vector<28x352xf32>
    %39 = vector.extract_strided_slice %5 {offsets = [0, 28], sizes = [8, 28], strides = [1, 1]} : vector<8x196xf32> to vector<8x28xf32>
    %cst_18 = arith.constant dense<0.000000e+00> : vector<8x352xf32>
    %40 = tpu.matmul %39, %38, %cst_18 {dimension_numbers = #tpu.dot_dimension_numbers<[1], [0], [0], [1], [0, 0, 1, 1], [], []>} : vector<8x28xf32>, vector<28x352xf32>, vector<8x352xf32> -> vector<8x352xf32>
    %41 = arith.addf %15, %40 : vector<8x352xf32>
    %42 = vector.extract_strided_slice %7 {offsets = [0, 28], sizes = [8, 28], strides = [1, 1]} : vector<8x196xf32> to vector<8x28xf32>
    %cst_19 = arith.constant dense<0.000000e+00> : vector<8x352xf32>
    %43 = tpu.matmul %42, %38, %cst_19 {dimension_numbers = #tpu.dot_dimension_numbers<[1], [0], [0], [1], [0, 0, 1, 1], [], []>} : vector<8x28xf32>, vector<28x352xf32>, vector<8x352xf32> -> vector<8x352xf32>
    %44 = arith.addf %30, %43 : vector<8x352xf32>
    %45 = vector.extract_strided_slice %1 {offsets = [0, 44], sizes = [4, 352], strides = [1, 1]} : vector<4x506xf32> to vector<4x352xf32>
    %46 = vector.extract_strided_slice %1 {offsets = [0, 45], sizes = [4, 352], strides = [1, 1]} : vector<4x506xf32> to vector<4x352xf32>
    %47 = vector.extract_strided_slice %1 {offsets = [0, 46], sizes = [4, 352], strides = [1, 1]} : vector<4x506xf32> to vector<4x352xf32>
    %48 = vector.extract_strided_slice %1 {offsets = [0, 47], sizes = [4, 352], strides = [1, 1]} : vector<4x506xf32> to vector<4x352xf32>
    %49 = vector.extract_strided_slice %1 {offsets = [0, 48], sizes = [4, 352], strides = [1, 1]} : vector<4x506xf32> to vector<4x352xf32>
    %50 = vector.extract_strided_slice %1 {offsets = [0, 49], sizes = [4, 352], strides = [1, 1]} : vector<4x506xf32> to vector<4x352xf32>
    %51 = vector.extract_strided_slice %1 {offsets = [0, 50], sizes = [4, 352], strides = [1, 1]} : vector<4x506xf32> to vector<4x352xf32>
    %52 = tpu.concatenate %45, %46, %47, %48, %49, %50, %51 in 0 : vector<4x352xf32>, vector<4x352xf32>, vector<4x352xf32>, vector<4x352xf32>, vector<4x352xf32>, vector<4x352xf32>, vector<4x352xf32> -> vector<28x352xf32>
    %53 = vector.extract_strided_slice %3 {offsets = [0, 56], sizes = [8, 28], strides = [1, 1]} : vector<8x196xf32> to vector<8x28xf32>
    %cst_20 = arith.constant dense<0.000000e+00> : vector<8x352xf32>
    %54 = tpu.matmul %53, %52, %cst_20 {dimension_numbers = #tpu.dot_dimension_numbers<[1], [0], [0], [1], [0, 0, 1, 1], [], []>} : vector<8x28xf32>, vector<28x352xf32>, vector<8x352xf32> -> vector<8x352xf32>
    %55 = arith.addf %11, %54 : vector<8x352xf32>
    %56 = vector.extract_strided_slice %5 {offsets = [0, 56], sizes = [8, 28], strides = [1, 1]} : vector<8x196xf32> to vector<8x28xf32>
    %cst_21 = arith.constant dense<0.000000e+00> : vector<8x352xf32>
    %57 = tpu.matmul %56, %52, %cst_21 {dimension_numbers = #tpu.dot_dimension_numbers<[1], [0], [0], [1], [0, 0, 1, 1], [], []>} : vector<8x28xf32>, vector<28x352xf32>, vector<8x352xf32> -> vector<8x352xf32>
    %58 = arith.addf %41, %57 : vector<8x352xf32>
    %59 = vector.extract_strided_slice %7 {offsets = [0, 56], sizes = [8, 28], strides = [1, 1]} : vector<8x196xf32> to vector<8x28xf32>
    %cst_22 = arith.constant dense<0.000000e+00> : vector<8x352xf32>
    %60 = tpu.matmul %59, %52, %cst_22 {dimension_numbers = #tpu.dot_dimension_numbers<[1], [0], [0], [1], [0, 0, 1, 1], [], []>} : vector<8x28xf32>, vector<28x352xf32>, vector<8x352xf32> -> vector<8x352xf32>
    %61 = arith.addf %44, %60 : vector<8x352xf32>
    %62 = vector.extract_strided_slice %1 {offsets = [0, 66], sizes = [4, 352], strides = [1, 1]} : vector<4x506xf32> to vector<4x352xf32>
    %63 = vector.extract_strided_slice %1 {offsets = [0, 67], sizes = [4, 352], strides = [1, 1]} : vector<4x506xf32> to vector<4x352xf32>
    %64 = vector.extract_strided_slice %1 {offsets = [0, 68], sizes = [4, 352], strides = [1, 1]} : vector<4x506xf32> to vector<4x352xf32>
    %65 = vector.extract_strided_slice %1 {offsets = [0, 69], sizes = [4, 352], strides = [1, 1]} : vector<4x506xf32> to vector<4x352xf32>
    %66 = vector.extract_strided_slice %1 {offsets = [0, 70], sizes = [4, 352], strides = [1, 1]} : vector<4x506xf32> to vector<4x352xf32>
    %67 = vector.extract_strided_slice %1 {offsets = [0, 71], sizes = [4, 352], strides = [1, 1]} : vector<4x506xf32> to vector<4x352xf32>
    %68 = vector.extract_strided_slice %1 {offsets = [0, 72], sizes = [4, 352], strides = [1, 1]} : vector<4x506xf32> to vector<4x352xf32>
    %69 = tpu.concatenate %62, %63, %64, %65, %66, %67, %68 in 0 : vector<4x352xf32>, vector<4x352xf32>, vector<4x352xf32>, vector<4x352xf32>, vector<4x352xf32>, vector<4x352xf32>, vector<4x352xf32> -> vector<28x352xf32>
    %70 = vector.extract_strided_slice %3 {offsets = [0, 84], sizes = [8, 28], strides = [1, 1]} : vector<8x196xf32> to vector<8x28xf32>
    %cst_23 = arith.constant dense<0.000000e+00> : vector<8x352xf32>
    %71 = tpu.matmul %70, %69, %cst_23 {dimension_numbers = #tpu.dot_dimension_numbers<[1], [0], [0], [1], [0, 0, 1, 1], [], []>} : vector<8x28xf32>, vector<28x352xf32>, vector<8x352xf32> -> vector<8x352xf32>
    %72 = arith.addf %55, %71 : vector<8x352xf32>
    %73 = vector.extract_strided_slice %5 {offsets = [0, 84], sizes = [8, 28], strides = [1, 1]} : vector<8x196xf32> to vector<8x28xf32>
    %cst_24 = arith.constant dense<0.000000e+00> : vector<8x352xf32>
    %74 = tpu.matmul %73, %69, %cst_24 {dimension_numbers = #tpu.dot_dimension_numbers<[1], [0], [0], [1], [0, 0, 1, 1], [], []>} : vector<8x28xf32>, vector<28x352xf32>, vector<8x352xf32> -> vector<8x352xf32>
    %75 = arith.addf %58, %74 : vector<8x352xf32>
    %76 = vector.extract_strided_slice %7 {offsets = [0, 84], sizes = [8, 28], strides = [1, 1]} : vector<8x196xf32> to vector<8x28xf32>
    %cst_25 = arith.constant dense<0.000000e+00> : vector<8x352xf32>
    %77 = tpu.matmul %76, %69, %cst_25 {dimension_numbers = #tpu.dot_dimension_numbers<[1], [0], [0], [1], [0, 0, 1, 1], [], []>} : vector<8x28xf32>, vector<28x352xf32>, vector<8x352xf32> -> vector<8x352xf32>
    %78 = arith.addf %61, %77 : vector<8x352xf32>
    %79 = vector.extract_strided_slice %1 {offsets = [0, 88], sizes = [4, 352], strides = [1, 1]} : vector<4x506xf32> to vector<4x352xf32>
    %80 = vector.extract_strided_slice %1 {offsets = [0, 89], sizes = [4, 352], strides = [1, 1]} : vector<4x506xf32> to vector<4x352xf32>
    %81 = vector.extract_strided_slice %1 {offsets = [0, 90], sizes = [4, 352], strides = [1, 1]} : vector<4x506xf32> to vector<4x352xf32>
    %82 = vector.extract_strided_slice %1 {offsets = [0, 91], sizes = [4, 352], strides = [1, 1]} : vector<4x506xf32> to vector<4x352xf32>
    %83 = vector.extract_strided_slice %1 {offsets = [0, 92], sizes = [4, 352], strides = [1, 1]} : vector<4x506xf32> to vector<4x352xf32>
    %84 = vector.extract_strided_slice %1 {offsets = [0, 93], sizes = [4, 352], strides = [1, 1]} : vector<4x506xf32> to vector<4x352xf32>
    %85 = vector.extract_strided_slice %1 {offsets = [0, 94], sizes = [4, 352], strides = [1, 1]} : vector<4x506xf32> to vector<4x352xf32>
    %86 = tpu.concatenate %79, %80, %81, %82, %83, %84, %85 in 0 : vector<4x352xf32>, vector<4x352xf32>, vector<4x352xf32>, vector<4x352xf32>, vector<4x352xf32>, vector<4x352xf32>, vector<4x352xf32> -> vector<28x352xf32>
    %87 = vector.extract_strided_slice %3 {offsets = [0, 112], sizes = [8, 28], strides = [1, 1]} : vector<8x196xf32> to vector<8x28xf32>
    %cst_26 = arith.constant dense<0.000000e+00> : vector<8x352xf32>
    %88 = tpu.matmul %87, %86, %cst_26 {dimension_numbers = #tpu.dot_dimension_numbers<[1], [0], [0], [1], [0, 0, 1, 1], [], []>} : vector<8x28xf32>, vector<28x352xf32>, vector<8x352xf32> -> vector<8x352xf32>
    %89 = arith.addf %72, %88 : vector<8x352xf32>
    %90 = vector.extract_strided_slice %5 {offsets = [0, 112], sizes = [8, 28], strides = [1, 1]} : vector<8x196xf32> to vector<8x28xf32>
    %cst_27 = arith.constant dense<0.000000e+00> : vector<8x352xf32>
    %91 = tpu.matmul %90, %86, %cst_27 {dimension_numbers = #tpu.dot_dimension_numbers<[1], [0], [0], [1], [0, 0, 1, 1], [], []>} : vector<8x28xf32>, vector<28x352xf32>, vector<8x352xf32> -> vector<8x352xf32>
    %92 = arith.addf %75, %91 : vector<8x352xf32>
    %93 = vector.extract_strided_slice %7 {offsets = [0, 112], sizes = [8, 28], strides = [1, 1]} : vector<8x196xf32> to vector<8x28xf32>
    %cst_28 = arith.constant dense<0.000000e+00> : vector<8x352xf32>
    %94 = tpu.matmul %93, %86, %cst_28 {dimension_numbers = #tpu.dot_dimension_numbers<[1], [0], [0], [1], [0, 0, 1, 1], [], []>} : vector<8x28xf32>, vector<28x352xf32>, vector<8x352xf32> -> vector<8x352xf32>
    %95 = arith.addf %78, %94 : vector<8x352xf32>
    %96 = vector.extract_strided_slice %1 {offsets = [0, 110], sizes = [4, 352], strides = [1, 1]} : vector<4x506xf32> to vector<4x352xf32>
    %97 = vector.extract_strided_slice %1 {offsets = [0, 111], sizes = [4, 352], strides = [1, 1]} : vector<4x506xf32> to vector<4x352xf32>
    %98 = vector.extract_strided_slice %1 {offsets = [0, 112], sizes = [4, 352], strides = [1, 1]} : vector<4x506xf32> to vector<4x352xf32>
    %99 = vector.extract_strided_slice %1 {offsets = [0, 113], sizes = [4, 352], strides = [1, 1]} : vector<4x506xf32> to vector<4x352xf32>
    %100 = vector.extract_strided_slice %1 {offsets = [0, 114], sizes = [4, 352], strides = [1, 1]} : vector<4x506xf32> to vector<4x352xf32>
    %101 = vector.extract_strided_slice %1 {offsets = [0, 115], sizes = [4, 352], strides = [1, 1]} : vector<4x506xf32> to vector<4x352xf32>
    %102 = vector.extract_strided_slice %1 {offsets = [0, 116], sizes = [4, 352], strides = [1, 1]} : vector<4x506xf32> to vector<4x352xf32>
    %103 = tpu.concatenate %96, %97, %98, %99, %100, %101, %102 in 0 : vector<4x352xf32>, vector<4x352xf32>, vector<4x352xf32>, vector<4x352xf32>, vector<4x352xf32>, vector<4x352xf32>, vector<4x352xf32> -> vector<28x352xf32>
    %104 = vector.extract_strided_slice %5 {offsets = [0, 140], sizes = [8, 28], strides = [1, 1]} : vector<8x196xf32> to vector<8x28xf32>
    %cst_29 = arith.constant dense<0.000000e+00> : vector<8x352xf32>
    %105 = tpu.matmul %104, %103, %cst_29 {dimension_numbers = #tpu.dot_dimension_numbers<[1], [0], [0], [1], [0, 0, 1, 1], [], []>} : vector<8x28xf32>, vector<28x352xf32>, vector<8x352xf32> -> vector<8x352xf32>
    %106 = arith.addf %92, %105 : vector<8x352xf32>
    %107 = vector.extract_strided_slice %7 {offsets = [0, 140], sizes = [8, 28], strides = [1, 1]} : vector<8x196xf32> to vector<8x28xf32>
    %cst_30 = arith.constant dense<0.000000e+00> : vector<8x352xf32>
    %108 = tpu.matmul %107, %103, %cst_30 {dimension_numbers = #tpu.dot_dimension_numbers<[1], [0], [0], [1], [0, 0, 1, 1], [], []>} : vector<8x28xf32>, vector<28x352xf32>, vector<8x352xf32> -> vector<8x352xf32>
    %109 = arith.addf %95, %108 : vector<8x352xf32>
    %110 = vector.extract_strided_slice %1 {offsets = [0, 132], sizes = [4, 352], strides = [1, 1]} : vector<4x506xf32> to vector<4x352xf32>
    %111 = vector.extract_strided_slice %1 {offsets = [0, 133], sizes = [4, 352], strides = [1, 1]} : vector<4x506xf32> to vector<4x352xf32>
    %112 = vector.extract_strided_slice %1 {offsets = [0, 134], sizes = [4, 352], strides = [1, 1]} : vector<4x506xf32> to vector<4x352xf32>
    %113 = vector.extract_strided_slice %1 {offsets = [0, 135], sizes = [4, 352], strides = [1, 1]} : vector<4x506xf32> to vector<4x352xf32>
    %114 = vector.extract_strided_slice %1 {offsets = [0, 136], sizes = [4, 352], strides = [1, 1]} : vector<4x506xf32> to vector<4x352xf32>
    %115 = vector.extract_strided_slice %1 {offsets = [0, 137], sizes = [4, 352], strides = [1, 1]} : vector<4x506xf32> to vector<4x352xf32>
    %116 = vector.extract_strided_slice %1 {offsets = [0, 138], sizes = [4, 352], strides = [1, 1]} : vector<4x506xf32> to vector<4x352xf32>
    %117 = tpu.concatenate %110, %111, %112, %113, %114, %115, %116 in 0 : vector<4x352xf32>, vector<4x352xf32>, vector<4x352xf32>, vector<4x352xf32>, vector<4x352xf32>, vector<4x352xf32>, vector<4x352xf32> -> vector<28x352xf32>
    %118 = vector.extract_strided_slice %7 {offsets = [0, 168], sizes = [8, 28], strides = [1, 1]} : vector<8x196xf32> to vector<8x28xf32>
    %cst_31 = arith.constant dense<0.000000e+00> : vector<8x352xf32>
    %119 = tpu.matmul %118, %117, %cst_31 {dimension_numbers = #tpu.dot_dimension_numbers<[1], [0], [0], [1], [0, 0, 1, 1], [], []>} : vector<8x28xf32>, vector<28x352xf32>, vector<8x352xf32> -> vector<8x352xf32>
    %120 = arith.addf %109, %119 : vector<8x352xf32>
    %cst_32 = arith.constant 0.000000e+00 : f32
    %121 = vector.broadcast %cst_32 : f32 to vector<8x352xf32>
    %cst_33 = arith.constant 0.000000e+00 : f32
    %122 = vector.broadcast %cst_33 : f32 to vector<8x352xf32>
    %123 = arith.maximumf %89, %122 : vector<8x352xf32>
    %124 = arith.addf %121, %123 : vector<8x352xf32>
    %cst_34 = arith.constant 0.000000e+00 : f32
    %125 = vector.broadcast %cst_34 : f32 to vector<8x352xf32>
    %126 = arith.maximumf %106, %125 : vector<8x352xf32>
    %127 = arith.addf %124, %126 : vector<8x352xf32>
    %cst_35 = arith.constant 0.000000e+00 : f32
    %128 = vector.broadcast %cst_35 : f32 to vector<8x352xf32>
    %129 = arith.maximumf %120, %128 : vector<8x352xf32>
    %130 = arith.addf %127, %129 : vector<8x352xf32>
    %c0_36 = arith.constant 0 : index
    %c0_37 = arith.constant 0 : index
    %c0_38 = arith.constant 0 : index
    %131 = vector.load %arg4[%c0_36, %c0_37, %c0_38] : memref<1x8x352xf32, #tpu.memory_space<vmem>>, vector<1x8x352xf32>
    %132 = vector.shape_cast %131 : vector<1x8x352xf32> to vector<8x352xf32>
    %133 = vector.shape_cast %130 : vector<8x352xf32> to vector<1x8x352xf32>
    tpu.vector_store %arg4[%c0_36, %c0_37, %c0_38], %133 {strides = array<i32>} : memref<1x8x352xf32, #tpu.memory_space<vmem>>, vector<1x8x352xf32>,
    return
  }
  func.func @transform_0(%arg0: i32) -> (i32, i32, i32) {
    %c0_i32 = arith.constant 0 : i32
    %c0_i32_0 = arith.constant 0 : i32
    %c0_i32_1 = arith.constant 0 : i32
    return %arg0, %c0_i32, %c0_i32_0 : i32, i32, i32
  }
  func.func @transform_1(%arg0: i32) -> (i32, i32, i32) {
    %c0_i32 = arith.constant 0 : i32
    %c0_i32_0 = arith.constant 0 : i32
    %c0_i32_1 = arith.constant 0 : i32
    %c0_i32_2 = arith.constant 0 : i32
    return %c0_i32, %c0_i32_0, %c0_i32_1 : i32, i32, i32
  }
  func.func @transform_2(%arg0: i32) -> (i32, i32, i32) {
    %c0_i32 = arith.constant 0 : i32
    %c0_i32_0 = arith.constant 0 : i32
    %c0_i32_1 = arith.constant 0 : i32
    %c0_i32_2 = arith.constant 0 : i32
    return %c0_i32, %c0_i32_0, %c0_i32_1 : i32, i32, i32
  }
  func.func @transform_3(%arg0: i32) -> (i32, i32, i32) {
    %c0_i32 = arith.constant 0 : i32
    %c0_i32_0 = arith.constant 0 : i32
    %c0_i32_1 = arith.constant 0 : i32
    return %arg0, %c0_i32, %c0_i32_0 : i32, i32, i32
  }
}

</mosaic_0001>

<llo_original>
// kernel: tpu_custom_call.1
$region0: #{tpu_custom_call.1}
  #allocation0 [shape = 'u32[]', space=smem, size = 0x4, offset = 0x4, fixed_abs, tag = 'smem constant byte address 0x4 - core index']
  #allocation1 [shape = 'u32[144,128]{1,0:T(1,128)}', space=vmem, size = 0x12000, scoped, tag = 'internal scratch']
  %s0 = inlined_call_operand.hbm [shape: f32[2,4,506], index: 0, kind: input, shape index: {}]
  %s1 = inlined_call_operand.hbm [shape: f32[3,8,196], index: 1, kind: input, shape index: {}]
  %s2 = inlined_call_operand.vmem [shape: f32[3,8,1], index: 2, kind: input, shape index: {}]
  %s3 = inlined_call_operand.hbm [shape: f32[2,8,352], index: 3, kind: output, shape index: {}]
  %s4 = sld [smem:[#allocation0]]
  $region53: #{tpu_custom_call.1} parent=0
    _
  %s6 = ssub.s32 1, %s4
  %s7 = scalar_select 0, %s6, %s4
  $region1: #{tpu_custom_call.1} parent=0
    #allocation2 [shape = 'u8[16384]{0}', space=vmem, size = 0x4000, scoped, tag = 'input window, operand 0']
    #allocation3 [shape = 's32[2]{0}', space=sflag, size = 0x8, scoped, tag = 'scoped memory for tpu_custom_call.1']
    #allocation4 [shape = 's32[2]{0}', space=sflag, size = 0x8, scoped, tag = 'scoped memory for tpu_custom_call.1']
    #allocation5 [shape = 'u8[24576]{0}', space=vmem, size = 0x6000, scoped, tag = 'input window, operand 1, single buffered']
    #allocation6 [shape = 's32[1]{0}', space=sflag, size = 0x4, scoped, tag = 'scoped memory for tpu_custom_call.1']
    #allocation7 [shape = 'u8[24576]{0}', space=vmem, size = 0x6000, scoped, tag = 'output window, operand 0']
    %8 = vsyncpa [#allocation3], 0
    %s9 = scalar_lea.sflag [#allocation3], 1
    %10 = vsyncpa %s9, 0
    %11 = vsyncpa [#allocation6], 0
    %12 = vsyncpa [#allocation4], 0
    %s13 = scalar_lea.sflag [#allocation4], 1
    %14 = vsyncpa %s13, 0
    loop: start=0, step=1, limit=4
    $region2: #{tpu_custom_call.1} parent=1 // loop_pre_header
      _
    $region3: #{tpu_custom_call.1} parent=1 // loop_header
      %s16 = sphi 0, %s20
      %p17 = scmp.ge.s32.totalorder %s16, 4
      %s26 = sphi 0, %s28
      %s29 = sphi 0, %s26
      %s30 = sphi 0, %s29
      %s46 = sphi 0, %s30
      %s50 = sphi 0, %s50
      %s52 = sphi 0, %s50
      %s53 = sphi 0, %s52
      %s67 = sphi 0, %s53
      %s71 = sphi 0, %s71
      %s73 = sphi 0, %s71
      %s74 = sphi 0, %s73
      %s88 = sphi 0, %s74
      %s94 = sphi 0, %s96
      %s97 = sphi 0, %s94
      %s98 = sphi 0, %s97
      %s114 = sphi 0, %s98
    $region4: #{tpu_custom_call.1} parent=1 // loop_header_branch
      %19 = sbr.rel (%p17) target = $region8
    $region5: #{tpu_custom_call.1} parent=1 // loop_body
      %s21 = ssub.s32 %s16, 1
      %s22 = ssub.s32 %s16, 2
      %s23 = sadd.s32 %s16, 1
      %s24 = ssub.s32 %s16, %s23
      %p25 = scmp.eq.s32.totalorder %s24, 0
      %s27 = sadd.s32 %s26, 1
      %s28 = scalar_select %p25, %s26, %s27
      %p31 = pneg %p25
      %p32 = scmp.eq.s32.totalorder %s16, 1
      %p33 = por %p31, %p32
      %p34 = scmp.ne.s32.totalorder %s26, %s29
      %p35 = scmp.eq.s32.totalorder %s16, 0
      %p36 = por %p34, %p35
      %p37 = scmp.ne.s32.totalorder %s26, %s29
      %p38 = scmp.eq.s32.totalorder %s21, 1
      %p39 = por %p37, %p38
      %p40 = scmp.ne.s32.totalorder %s29, %s30
      %p41 = scmp.eq.s32.totalorder %s21, 0
      %p42 = por %p40, %p41
      %p43 = scmp.ne.s32.totalorder %s29, %s30
      %p44 = scmp.eq.s32.totalorder %s22, 1
      %p45 = por %p43, %p44
      %p47 = scmp.ne.s32.totalorder %s30, %s46
      %p48 = scmp.eq.s32.totalorder %s22, 0
      %p49 = por %p47, %p48
      %s51 = sadd.s32 %s50, 1
      %p54 = scmp.eq.s32.totalorder %s16, 1
      %p55 = scmp.ne.s32.totalorder %s50, %s52
      %p56 = scmp.eq.s32.totalorder %s16, 0
      %p57 = por %p55, %p56
      %p58 = scmp.ne.s32.totalorder %s50, %s52
      %p59 = scmp.eq.s32.totalorder %s21, 1
      %p60 = por %p58, %p59
      %p61 = scmp.ne.s32.totalorder %s52, %s53
      %p62 = scmp.eq.s32.totalorder %s21, 0
      %p63 = por %p61, %p62
      %p64 = scmp.ne.s32.totalorder %s52, %s53
      %p65 = scmp.eq.s32.totalorder %s22, 1
      %p66 = por %p64, %p65
      %p68 = scmp.ne.s32.totalorder %s53, %s67
      %p69 = scmp.eq.s32.totalorder %s22, 0
      %p70 = por %p68, %p69
      %s72 = sadd.s32 %s71, 1
      %p75 = scmp.eq.s32.totalorder %s16, 1
      %p76 = scmp.ne.s32.totalorder %s71, %s73
      %p77 = scmp.eq.s32.totalorder %s16, 0
      %p78 = por %p76, %p77
      %p79 = scmp.ne.s32.totalorder %s71, %s73
      %p80 = scmp.eq.s32.totalorder %s21, 1
      %p81 = por %p79, %p80
      %p82 = scmp.ne.s32.totalorder %s73, %s74
      %p83 = scmp.eq.s32.totalorder %s21, 0
      %p84 = por %p82, %p83
      %p85 = scmp.ne.s32.totalorder %s73, %s74
      %p86 = scmp.eq.s32.totalorder %s22, 1
      %p87 = por %p85, %p86
      %p89 = scmp.ne.s32.totalorder %s74, %s88
      %p90 = scmp.eq.s32.totalorder %s22, 0
      %p91 = por %p89, %p90
      %s92 = ssub.s32 %s16, %s23
      %p93 = scmp.eq.s32.totalorder %s92, 0
      %s95 = sadd.s32 %s94, 1
      %s96 = scalar_select %p93, %s94, %s95
      %p99 = pneg %p93
      %p100 = scmp.eq.s32.totalorder %s16, 1
      %p101 = por %p99, %p100
      %p102 = scmp.ne.s32.totalorder %s94, %s97
      %p103 = scmp.eq.s32.totalorder %s16, 0
      %p104 = por %p102, %p103
      %p105 = scmp.ne.s32.totalorder %s94, %s97
      %p106 = scmp.eq.s32.totalorder %s21, 1
      %p107 = por %p105, %p106
      %p108 = scmp.ne.s32.totalorder %s97, %s98
      %p109 = scmp.eq.s32.totalorder %s21, 0
      %p110 = por %p108, %p109
      %p111 = scmp.ne.s32.totalorder %s97, %s98
      %p112 = scmp.eq.s32.totalorder %s22, 1
      %p113 = por %p111, %p112
      %p115 = scmp.ne.s32.totalorder %s98, %s114
      %p116 = scmp.eq.s32.totalorder %s22, 0
      %p117 = por %p115, %p116
      %p118 = scmp.le.s32.totalorder 1, %s16
      %p119 = scmp.lt.s32.totalorder %s16, 3
      %p120 = pnand %p118, %p119
      %p121 = pneg %p120
      // Predicated region
      $region9: #{tpu_custom_call.1} parent=5 // pred_check
        _
      $region10: #{tpu_custom_call.1} parent=5 // pred_check_branch
        %123 = sbr.rel (%p120) target = $region12
      $region11: #{tpu_custom_call.1} parent=5 // pred_region
        %s124 = ssub.s32 %s16, 1
        // Predicated region
        $region13: #{tpu_custom_call.1} parent=11 // pred_check
          %p125 = pneg %p63
        $region14: #{tpu_custom_call.1} parent=11 // pred_check_branch
          %127 = sbr.rel (%p125) target = $region16
        $region15: #{tpu_custom_call.1} parent=11 // pred_region
          %s129 = ssub.s32 768, 768
          %130 = vsyncadd [#allocation6], %s129
          %s131 = sshll.u32 [#allocation5], 4
          %s132 = int_to_ptr.vmem [resolvable:$true] %s131
          %137 = dma.hbm_to_vmem [thread:$0]  %s1, 768, %s132, [#allocation6], 256, 256, 16
        $region16: #{tpu_custom_call.1} parent=11 // pred_fallthru
          _
        // Predicated region
        $region17: #{tpu_custom_call.1} parent=11 // pred_check
          %p138 = pneg %p84
        $region18: #{tpu_custom_call.1} parent=11 // pred_check_branch
          %140 = sbr.rel (%p138) target = $region20
        $region19: #{tpu_custom_call.1} parent=11 // pred_region
          _
        $region20: #{tpu_custom_call.1} parent=11 // pred_fallthru
          _
      $region12: #{tpu_custom_call.1} parent=5 // pred_fallthru
        _
      %p141 = scmp.lt.s32.totalorder %s16, 2
      // Predicated region
      $region21: #{tpu_custom_call.1} parent=5 // pred_check
        %p142 = pneg %p141
      $region22: #{tpu_custom_call.1} parent=5 // pred_check_branch
        %144 = sbr.rel (%p142) target = $region24
      $region23: #{tpu_custom_call.1} parent=5 // pred_region
        // Predicated region
        $region25: #{tpu_custom_call.1} parent=23 // pred_check
          %p145 = pneg %p36
        $region26: #{tpu_custom_call.1} parent=23 // pred_check_branch
          %147 = sbr.rel (%p145) target = $region28
        $region27: #{tpu_custom_call.1} parent=23 // pred_region
          %s148 = sand.u32 %s26, 1
          %s149 = scalar_lea.sflag [#allocation3], %s148
          %s150 = sand.u32 %s26, 1
          %s151 = smul.addr %s150, 16
          %s152 = scalar_lea.vmem [#allocation2], %s151
          %s154 = ssub.s32 256, 256
          %155 = vsyncadd %s149, %s154
          %s156 = smul.addr %s16, 4
          %s157 = smul.addr %s156, 64
          %s158 = scalar_lea.hbm %s0, %s157
          %s160 = sshll.u32 %s152, 4
          %s161 = int_to_ptr.vmem [resolvable:$true] %s160
          %163 = dma.hbm_to_vmem [thread:$0]  %s158, 256, %s161, %s149
        $region28: #{tpu_custom_call.1} parent=23 // pred_fallthru
          _
      $region24: #{tpu_custom_call.1} parent=5 // pred_fallthru
        _
      %p164 = scmp.le.s32.totalorder 1, %s16
      %p165 = scmp.lt.s32.totalorder %s16, 3
      %p166 = pnand %p164, %p165
      %p167 = pneg %p166
      // Predicated region
      $region29: #{tpu_custom_call.1} parent=5 // pred_check
        _
      $region30: #{tpu_custom_call.1} parent=5 // pred_check_branch
        %169 = sbr.rel (%p166) target = $region32
      $region31: #{tpu_custom_call.1} parent=5 // pred_region
        %s170 = ssub.s32 %s16, 1
        %s171 = sand.u32 %s29, 1
        %s172 = scalar_lea.sflag [#allocation3], %s171
        %s173 = sand.u32 %s29, 1
        %s174 = smul.addr %s173, 16
        %s175 = scalar_lea.vmem [#allocation2], %s174
        // Predicated region
        $region33: #{tpu_custom_call.1} parent=31 // pred_check
          %p176 = pneg %p42
        $region34: #{tpu_custom_call.1} parent=31 // pred_check_branch
          %178 = sbr.rel (%p176) target = $region36
        $region35: #{tpu_custom_call.1} parent=31 // pred_region
          %179 = dma.done %s172, 256
        $region36: #{tpu_custom_call.1} parent=31 // pred_fallthru
          _
        // Predicated region
        $region37: #{tpu_custom_call.1} parent=31 // pred_check
          %p180 = pneg %p63
        $region38: #{tpu_custom_call.1} parent=31 // pred_check_branch
          %182 = sbr.rel (%p180) target = $region40
        $region39: #{tpu_custom_call.1} parent=31 // pred_region
          %183 = dma.done [#allocation6], 768
        $region40: #{tpu_custom_call.1} parent=31 // pred_fallthru
          _
        %s184 = sand.u32 %s29, 1
        %s185 = scalar_lea.sflag [#allocation3], %s184
        %s186 = sand.u32 %s29, 1
        %s187 = smul.addr %s186, 16
        %s188 = scalar_lea.vmem [#allocation2], %s187
        %p189 = pneg %p42
        %p190 = pneg %p39
        %p191 = pneg %p63
        %p192 = pneg %p60
        %p193 = pneg %p84
        %p194 = pneg %p81
        %p195 = pneg %p110
        %p196 = pneg %p107
        %s197 = sand.u32 %s97, 1
        %s198 = scalar_lea.sflag [#allocation4], %s197
        %s199 = sand.u32 %s97, 1
        %s200 = smul.addr %s199, 24
        %s201 = scalar_lea.vmem [#allocation7], %s200
        %v202 = vld [vmem:[%s175] sm:$0xff]
        %v203 = vld [vmem:[%s175 + $0x8] sm:$0xff]
        %v204 = vld [vmem:[#allocation5] sm:$0xff]
        %v205 = vld [vmem:[#allocation5 + $0x8] sm:$0xff]
        %s206 = scalar_lea.vmem [#allocation5], 16
        %v207 = vld [vmem:[%s206] sm:$0xff]
        %v208 = vld [vmem:[%s206 + $0x8] sm:$0xff]
        %s209 = scalar_lea.vmem [#allocation5], 32
        %v210 = vld [vmem:[%s209] sm:$0xff]
        %v211 = vld [vmem:[%s209 + $0x8] sm:$0xff]
        %v212 = vld [vmem:[%s2] sm:$0xff]
        %214 = vset.pattern.permute.xlu0 0
        %215 = vperm.xlu0 %214, %v212
        %v216 = vpop.permute.xlu0 %215
        %s218 = scalar_lea.vmem %s2, 8
        %v219 = vld [vmem:[%s218] sm:$0xff]
        %221 = vset.pattern.permute.xlu0 0
        %222 = vperm.xlu0 %221, %v219
        %v223 = vpop.permute.xlu0 %222
        %s225 = scalar_lea.vmem %s2, 16
        %v226 = vld [vmem:[%s225] sm:$0xff]
        %228 = vset.pattern.permute.xlu0 0
        %229 = vperm.xlu0 %228, %v226
        %v230 = vpop.permute.xlu0 %229
        %v234 = vcombine.high %v202, %v202
        %v236 = vcombine.low %v202, %v202
        %v237 = vcombine.low %v203, %v203
        %238 = vrot.lane.b32.xlu0 %v236, 127
        %v239 = vpop.permute.xlu0 %238
        %240 = vrot.lane.b32.xlu0 %v202, 127
        %v241 = vpop.permute.xlu0 %240
        %242 = vrot.lane.b32.xlu0 %v237, 127
        %v243 = vpop.permute.xlu0 %242
        %vm244 = vcmask 1039360
        %v245 = vsel %vm244, %v239, %v241
        %v246 = vsel %vm244, %v241, %v243
        %250 = vrot.lane.b32.xlu0 %v202, 126
        %v251 = vpop.permute.xlu0 %250
        %252 = vrot.lane.b32.xlu0 %v234, 126
        %v253 = vpop.permute.xlu0 %252
        %254 = vrot.lane.b32.xlu0 %v203, 126
        %v255 = vpop.permute.xlu0 %254
        %vm256 = vcmask 1031168
        %v257 = vsel %vm256, %v251, %v253
        %v258 = vsel %vm256, %v253, %v255
        %262 = vrot.lane.b32.xlu0 %v236, 125
        %v263 = vpop.permute.xlu0 %262
        %264 = vrot.lane.b32.xlu0 %v202, 125
        %v265 = vpop.permute.xlu0 %264
        %266 = vrot.lane.b32.xlu0 %v237, 125
        %v267 = vpop.permute.xlu0 %266
        %vm268 = vcmask 1022976
        %v269 = vsel %vm268, %v263, %v265
        %v270 = vsel %vm268, %v265, %v267
        %274 = vrot.lane.b32.xlu0 %v202, 124
        %v275 = vpop.permute.xlu0 %274
        %276 = vrot.lane.b32.xlu0 %v234, 124
        %v277 = vpop.permute.xlu0 %276
        %278 = vrot.lane.b32.xlu0 %v203, 124
        %v279 = vpop.permute.xlu0 %278
        %vm280 = vcmask 1014784
        %v281 = vsel %vm280, %v275, %v277
        %v282 = vsel %vm280, %v277, %v279
        %286 = vrot.lane.b32.xlu0 %v236, 123
        %v287 = vpop.permute.xlu0 %286
        %288 = vrot.lane.b32.xlu0 %v202, 123
        %v289 = vpop.permute.xlu0 %288
        %290 = vrot.lane.b32.xlu0 %v237, 123
        %v291 = vpop.permute.xlu0 %290
        %vm292 = vcmask 1006592
        %v293 = vsel %vm292, %v287, %v289
        %v294 = vsel %vm292, %v289, %v291
        %298 = vrot.lane.b32.xlu0 %v202, 122
        %v299 = vpop.permute.xlu0 %298
        %300 = vrot.lane.b32.xlu0 %v234, 122
        %v301 = vpop.permute.xlu0 %300
        %302 = vrot.lane.b32.xlu0 %v203, 122
        %v303 = vpop.permute.xlu0 %302
        %vm304 = vcmask 998400
        %v305 = vsel %vm304, %v299, %v301
        %v306 = vsel %vm304, %v301, %v303
        %vm307 = vcmask 1043456
        %v308 = vsel %vm307, %v202, %v245
        %v309 = vsel %vm307, %v234, %v246
        %v310 = vsel %vm307, %v203, %v243
        %v311 = vsel %vm307, %v257, %v269
        %v312 = vsel %vm307, %v258, %v270
        %v313 = vsel %vm307, %v255, %v267
        %v314 = vsel %vm307, %v281, %v293
        %v315 = vsel %vm307, %v282, %v294
        %v316 = vsel %vm307, %v279, %v291
        %vm317 = vcmask 228352
        %v319 = vsel %vm317, %v210, 0
        %v321 = vsel %vm307, %v305, 0
        %v323 = vsel %vm307, %v306, 0
        %v325 = vsel %vm307, %v303, 0
        %327 = vmatprep.subr.mxu0 0.0
        %328 = vmatpush1.msra.mxu0 0.0
        %329 = vmatprep.subr.mxu0 0.0
        %330 = vmatpush1.msra.mxu0 0.0
        %331 = vmatprep.subr.mxu0 0.0
        %332 = vmatpush1.msra.mxu0 0.0
        %333 = vmatprep.subr.mxu0 0.0
        %334 = vmatpush1.msra.mxu0 0.0
        %335 = vmatprep.subr.mxu0 0.0
        %336 = vmatpush1.msra.mxu0 0.0
        %337 = vmatprep.subr.mxu0 0.0
        %338 = vmatpush1.msra.mxu0 0.0
        %339 = vmatprep.subr.mxu0 0.0
        %340 = vmatpush1.msra.mxu0 0.0
        %341 = vmatprep.subr.mxu0 0.0
        %342 = vmatpush1.msra.mxu0 0.0
        %343 = vmatprep.subr.mxu0 0.0
        %344 = vmatpush1.msra.mxu0 0.0
        %345 = vmatprep.subr.mxu0 0.0
        %346 = vmatpush1.msra.mxu0 0.0
        %347 = vmatprep.subr.mxu0 0.0
        %348 = vmatpush1.msra.mxu0 0.0
        %349 = vmatprep.subr.mxu0 0.0
        %350 = vmatpush1.msra.mxu0 0.0
        %351 = vmatprep.subr.mxu0 %v323
        %352 = vmatpush1.msra.mxu0 %v321
        %353 = vmatprep.subr.mxu0 %v315
        %354 = vmatpush1.msra.mxu0 %v314
        %355 = vmatprep.subr.mxu0 %v312
        %356 = vmatpush1.msra.mxu0 %v311
        %357 = vmatprep.subr.mxu0 %v309
        %358 = vmatpush1.msra.mxu0 %v308
        %359 = vmatprep.subr.mxu0 0.0
        %360 = vmatpush2.msra.mxu0 0.0
        %361 = vmatprep.subr.mxu0 0.0
        %362 = vmatpush2.msra.mxu0 0.0
        %363 = vmatprep.subr.mxu0 0.0
        %364 = vmatpush2.msra.mxu0 0.0
        %365 = vmatprep.subr.mxu0 0.0
        %366 = vmatpush2.msra.mxu0 0.0
        %367 = vmatprep.subr.mxu0 0.0
        %368 = vmatpush2.msra.mxu0 0.0
        %369 = vmatprep.subr.mxu0 0.0
        %370 = vmatpush2.msra.mxu0 0.0
        %371 = vmatprep.subr.mxu0 0.0
        %372 = vmatpush2.msra.mxu0 0.0
        %373 = vmatprep.subr.mxu0 0.0
        %374 = vmatpush2.msra.mxu0 0.0
        %375 = vmatprep.subr.mxu0 0.0
        %376 = vmatpush2.msra.mxu0 0.0
        %377 = vmatprep.subr.mxu0 0.0
        %378 = vmatpush2.msra.mxu0 0.0
        %379 = vmatprep.subr.mxu0 0.0
        %380 = vmatpush2.msra.mxu0 0.0
        %381 = vmatprep.subr.mxu0 0.0
        %382 = vmatpush2.msra.mxu0 0.0
        %383 = vmatprep.subr.mxu0 0.0
        %384 = vmatpush2.msra.mxu0 0.0
        %385 = vmatprep.subr.mxu0 0.0
        %386 = vmatpush2.msra.mxu0 0.0
        %387 = vmatprep.subr.mxu0 0.0
        %388 = vmatpush2.msra.mxu0 0.0
        %389 = vmatprep.subr.mxu0 0.0
        %390 = vmatpush2.msra.mxu0 0.0
        %391 = vmatprep.mubr.f32.mxu0 0.0
        %392 = vmatmul.mubr.f32.gmra.mxu0 %v319
        %v393 = vpop.f32.mrf.mxu0
        %v394 = vadd.f32 0.0, %v393
        %v395 = vpop.f32.mrf.mxu0
        %v396 = vadd.f32 0.0, %v395
        %397 = vdwg.mxu0
        %398 = vmatprep.subr.mxu0 0.0
        %399 = vmatpush1.msra.mxu0 0.0
        %400 = vmatprep.subr.mxu0 0.0
        %401 = vmatpush1.msra.mxu0 0.0
        %402 = vmatprep.subr.mxu0 0.0
        %403 = vmatpush1.msra.mxu0 0.0
        %404 = vmatprep.subr.mxu0 0.0
        %405 = vmatpush1.msra.mxu0 0.0
        %406 = vmatprep.subr.mxu0 0.0
        %407 = vmatpush1.msra.mxu0 0.0
        %408 = vmatprep.subr.mxu0 0.0
        %409 = vmatpush1.msra.mxu0 0.0
        %410 = vmatprep.subr.mxu0 0.0
        %411 = vmatpush1.msra.mxu0 0.0
        %412 = vmatprep.subr.mxu0 0.0
        %413 = vmatpush1.msra.mxu0 0.0
        %414 = vmatprep.subr.mxu0 0.0
        %415 = vmatpush1.msra.mxu0 0.0
        %416 = vmatprep.subr.mxu0 0.0
        %417 = vmatpush1.msra.mxu0 0.0
        %418 = vmatprep.subr.mxu0 0.0
        %419 = vmatpush1.msra.mxu0 0.0
        %420 = vmatprep.subr.mxu0 0.0
        %421 = vmatpush1.msra.mxu0 0.0
        %422 = vmatprep.subr.mxu0 0.0
        %423 = vmatpush1.msra.mxu0 %v325
        %424 = vmatprep.subr.mxu0 0.0
        %425 = vmatpush1.msra.mxu0 %v316
        %426 = vmatprep.subr.mxu0 0.0
        %427 = vmatpush1.msra.mxu0 %v313
        %428 = vmatprep.subr.mxu0 0.0
        %429 = vmatpush1.msra.mxu0 %v310
        %430 = vmatprep.subr.mxu0 0.0
        %431 = vmatpush2.msra.mxu0 0.0
        %432 = vmatprep.subr.mxu0 0.0
        %433 = vmatpush2.msra.mxu0 0.0
        %434 = vmatprep.subr.mxu0 0.0
        %435 = vmatpush2.msra.mxu0 0.0
        %436 = vmatprep.subr.mxu0 0.0
        %437 = vmatpush2.msra.mxu0 0.0
        %438 = vmatprep.subr.mxu0 0.0
        %439 = vmatpush2.msra.mxu0 0.0
        %440 = vmatprep.subr.mxu0 0.0
        %441 = vmatpush2.msra.mxu0 0.0
        %442 = vmatprep.subr.mxu0 0.0
        %443 = vmatpush2.msra.mxu0 0.0
        %444 = vmatprep.subr.mxu0 0.0
        %445 = vmatpush2.msra.mxu0 0.0
        %446 = vmatprep.subr.mxu0 0.0
        %447 = vmatpush2.msra.mxu0 0.0
        %448 = vmatprep.subr.mxu0 0.0
        %449 = vmatpush2.msra.mxu0 0.0
        %450 = vmatprep.subr.mxu0 0.0
        %451 = vmatpush2.msra.mxu0 0.0
        %452 = vmatprep.subr.mxu0 0.0
        %453 = vmatpush2.msra.mxu0 0.0
        %454 = vmatprep.subr.mxu0 0.0
        %455 = vmatpush2.msra.mxu0 0.0
        %456 = vmatprep.subr.mxu0 0.0
        %457 = vmatpush2.msra.mxu0 0.0
        %458 = vmatprep.subr.mxu0 0.0
        %459 = vmatpush2.msra.mxu0 0.0
        %460 = vmatprep.subr.mxu0 0.0
        %461 = vmatpush2.msra.mxu0 0.0
        %462 = vmatprep.mubr.f32.mxu0 0.0
        %463 = vmatmul.mubr.f32.gmra.mxu0 %v319
        %v464 = vpop.f32.mrf.mxu0
        %v465 = vadd.f32 0.0, %v464
        %v466 = vpop.f32.mrf.mxu0
        %467 = vdwg.mxu0
        %v468 = vadd.f32 %v230, %v394
        %v469 = vadd.f32 %v230, %v396
        %v470 = vadd.f32 %v230, %v465
        %472 = vrot.lane.b32.xlu0 %v207, 100
        %v473 = vpop.permute.xlu0 %472
        %483 = vrot.lane.b32.xlu0 %v308, 106
        %v484 = vpop.permute.xlu0 %483
        %485 = vrot.lane.b32.xlu0 %v309, 106
        %v486 = vpop.permute.xlu0 %485
        %487 = vrot.lane.b32.xlu0 %v310, 106
        %v488 = vpop.permute.xlu0 %487
        %489 = vrot.lane.b32.xlu0 %v311, 106
        %v490 = vpop.permute.xlu0 %489
        %491 = vrot.lane.b32.xlu0 %v312, 106
        %v492 = vpop.permute.xlu0 %491
        %493 = vrot.lane.b32.xlu0 %v313, 106
        %v494 = vpop.permute.xlu0 %493
        %495 = vrot.lane.b32.xlu0 %v314, 106
        %v496 = vpop.permute.xlu0 %495
        %497 = vrot.lane.b32.xlu0 %v315, 106
        %v498 = vpop.permute.xlu0 %497
        %499 = vrot.lane.b32.xlu0 %v316, 106
        %v500 = vpop.permute.xlu0 %499
        %501 = vrot.lane.b32.xlu0 %v305, 106
        %v502 = vpop.permute.xlu0 %501
        %503 = vrot.lane.b32.xlu0 %v306, 106
        %v504 = vpop.permute.xlu0 %503
        %505 = vrot.lane.b32.xlu0 %v303, 106
        %v506 = vpop.permute.xlu0 %505
        %vm507 = vcmask 867328
        %v508 = vsel %vm507, %v484, %v486
        %v509 = vsel %vm507, %v486, %v488
        %v510 = vsel %vm507, %v490, %v492
        %v511 = vsel %vm507, %v492, %v494
        %v512 = vsel %vm507, %v496, %v498
        %v513 = vsel %vm507, %v498, %v500
        %v514 = vsel %vm507, %v502, %v504
        %v515 = vsel %vm507, %v504, %v506
        %v525 = vsel %vm317, %v473, 0
        %v527 = vsel %vm307, %v514, 0
        %v529 = vsel %vm307, %v515, 0
        %v531 = vsel %vm307, %v506, 0
        %533 = vmatprep.subr.mxu0 0.0
        %534 = vmatpush1.msra.mxu0 0.0
        %535 = vmatprep.subr.mxu0 0.0
        %536 = vmatpush1.msra.mxu0 0.0
        %537 = vmatprep.subr.mxu0 0.0
        %538 = vmatpush1.msra.mxu0 0.0
        %539 = vmatprep.subr.mxu0 0.0
        %540 = vmatpush1.msra.mxu0 0.0
        %541 = vmatprep.subr.mxu0 0.0
        %542 = vmatpush1.msra.mxu0 0.0
        %543 = vmatprep.subr.mxu0 0.0
        %544 = vmatpush1.msra.mxu0 0.0
        %545 = vmatprep.subr.mxu0 0.0
        %546 = vmatpush1.msra.mxu0 0.0
        %547 = vmatprep.subr.mxu0 0.0
        %548 = vmatpush1.msra.mxu0 0.0
        %549 = vmatprep.subr.mxu0 0.0
        %550 = vmatpush1.msra.mxu0 0.0
        %551 = vmatprep.subr.mxu0 0.0
        %552 = vmatpush1.msra.mxu0 0.0
        %553 = vmatprep.subr.mxu0 0.0
        %554 = vmatpush1.msra.mxu0 0.0
        %555 = vmatprep.subr.mxu0 0.0
        %556 = vmatpush1.msra.mxu0 0.0
        %557 = vmatprep.subr.mxu0 %v529
        %558 = vmatpush1.msra.mxu0 %v527
        %559 = vmatprep.subr.mxu0 %v513
        %560 = vmatpush1.msra.mxu0 %v512
        %561 = vmatprep.subr.mxu0 %v511
        %562 = vmatpush1.msra.mxu0 %v510
        %563 = vmatprep.subr.mxu0 %v509
        %564 = vmatpush1.msra.mxu0 %v508
        %565 = vmatprep.subr.mxu0 0.0
        %566 = vmatpush2.msra.mxu0 0.0
        %567 = vmatprep.subr.mxu0 0.0
        %568 = vmatpush2.msra.mxu0 0.0
        %569 = vmatprep.subr.mxu0 0.0
        %570 = vmatpush2.msra.mxu0 0.0
        %571 = vmatprep.subr.mxu0 0.0
        %572 = vmatpush2.msra.mxu0 0.0
        %573 = vmatprep.subr.mxu0 0.0
        %574 = vmatpush2.msra.mxu0 0.0
        %575 = vmatprep.subr.mxu0 0.0
        %576 = vmatpush2.msra.mxu0 0.0
        %577 = vmatprep.subr.mxu0 0.0
        %578 = vmatpush2.msra.mxu0 0.0
        %579 = vmatprep.subr.mxu0 0.0
        %580 = vmatpush2.msra.mxu0 0.0
        %581 = vmatprep.subr.mxu0 0.0
        %582 = vmatpush2.msra.mxu0 0.0
        %583 = vmatprep.subr.mxu0 0.0
        %584 = vmatpush2.msra.mxu0 0.0
        %585 = vmatprep.subr.mxu0 0.0
        %586 = vmatpush2.msra.mxu0 0.0
        %587 = vmatprep.subr.mxu0 0.0
        %588 = vmatpush2.msra.mxu0 0.0
        %589 = vmatprep.subr.mxu0 0.0
        %590 = vmatpush2.msra.mxu0 0.0
        %591 = vmatprep.subr.mxu0 0.0
        %592 = vmatpush2.msra.mxu0 0.0
        %593 = vmatprep.subr.mxu0 0.0
        %594 = vmatpush2.msra.mxu0 0.0
        %595 = vmatprep.subr.mxu0 0.0
        %596 = vmatpush2.msra.mxu0 0.0
        %597 = vmatprep.mubr.f32.mxu0 0.0
        %598 = vmatmul.mubr.f32.gmra.mxu0 %v525
        %v599 = vpop.f32.mrf.mxu0
        %v600 = vadd.f32 0.0, %v599
        %v601 = vpop.f32.mrf.mxu0
        %v602 = vadd.f32 0.0, %v601
        %603 = vdwg.mxu0
        %604 = vmatprep.subr.mxu0 0.0
        %605 = vmatpush1.msra.mxu0 0.0
        %606 = vmatprep.subr.mxu0 0.0
        %607 = vmatpush1.msra.mxu0 0.0
        %608 = vmatprep.subr.mxu0 0.0
        %609 = vmatpush1.msra.mxu0 0.0
        %610 = vmatprep.subr.mxu0 0.0
        %611 = vmatpush1.msra.mxu0 0.0
        %612 = vmatprep.subr.mxu0 0.0
        %613 = vmatpush1.msra.mxu0 0.0
        %614 = vmatprep.subr.mxu0 0.0
        %615 = vmatpush1.msra.mxu0 0.0
        %616 = vmatprep.subr.mxu0 0.0
        %617 = vmatpush1.msra.mxu0 0.0
        %618 = vmatprep.subr.mxu0 0.0
        %619 = vmatpush1.msra.mxu0 0.0
        %620 = vmatprep.subr.mxu0 0.0
        %621 = vmatpush1.msra.mxu0 0.0
        %622 = vmatprep.subr.mxu0 0.0
        %623 = vmatpush1.msra.mxu0 0.0
        %624 = vmatprep.subr.mxu0 0.0
        %625 = vmatpush1.msra.mxu0 0.0
        %626 = vmatprep.subr.mxu0 0.0
        %627 = vmatpush1.msra.mxu0 0.0
        %628 = vmatprep.subr.mxu0 0.0
        %629 = vmatpush1.msra.mxu0 %v531
        %630 = vmatprep.subr.mxu0 0.0
        %631 = vmatpush1.msra.mxu0 %v500
        %632 = vmatprep.subr.mxu0 0.0
        %633 = vmatpush1.msra.mxu0 %v494
        %634 = vmatprep.subr.mxu0 0.0
        %635 = vmatpush1.msra.mxu0 %v488
        %636 = vmatprep.subr.mxu0 0.0
        %637 = vmatpush2.msra.mxu0 0.0
        %638 = vmatprep.subr.mxu0 0.0
        %639 = vmatpush2.msra.mxu0 0.0
        %640 = vmatprep.subr.mxu0 0.0
        %641 = vmatpush2.msra.mxu0 0.0
        %642 = vmatprep.subr.mxu0 0.0
        %643 = vmatpush2.msra.mxu0 0.0
        %644 = vmatprep.subr.mxu0 0.0
        %645 = vmatpush2.msra.mxu0 0.0
        %646 = vmatprep.subr.mxu0 0.0
        %647 = vmatpush2.msra.mxu0 0.0
        %648 = vmatprep.subr.mxu0 0.0
        %649 = vmatpush2.msra.mxu0 0.0
        %650 = vmatprep.subr.mxu0 0.0
        %651 = vmatpush2.msra.mxu0 0.0
        %652 = vmatprep.subr.mxu0 0.0
        %653 = vmatpush2.msra.mxu0 0.0
        %654 = vmatprep.subr.mxu0 0.0
        %655 = vmatpush2.msra.mxu0 0.0
        %656 = vmatprep.subr.mxu0 0.0
        %657 = vmatpush2.msra.mxu0 0.0
        %658 = vmatprep.subr.mxu0 0.0
        %659 = vmatpush2.msra.mxu0 0.0
        %660 = vmatprep.subr.mxu0 0.0
        %661 = vmatpush2.msra.mxu0 0.0
        %662 = vmatprep.subr.mxu0 0.0
        %663 = vmatpush2.msra.mxu0 0.0
        %664 = vmatprep.subr.mxu0 0.0
        %665 = vmatpush2.msra.mxu0 0.0
        %666 = vmatprep.subr.mxu0 0.0
        %667 = vmatpush2.msra.mxu0 0.0
        %668 = vmatprep.mubr.f32.mxu0 0.0
        %669 = vmatmul.mubr.f32.gmra.mxu0 %v525
        %v670 = vpop.f32.mrf.mxu0
        %v671 = vadd.f32 0.0, %v670
        %v672 = vpop.f32.mrf.mxu0
        %673 = vdwg.mxu0
        %v674 = vadd.f32 %v223, %v600
        %v675 = vadd.f32 %v223, %v602
        %v676 = vadd.f32 %v223, %v671
        %677 = vrot.lane.b32.xlu0 %v210, 100
        %v678 = vpop.permute.xlu0 %677
        %v679 = vsel %vm317, %v678, 0
        %681 = vmatprep.subr.mxu0 0.0
        %682 = vmatpush1.msra.mxu0 0.0
        %683 = vmatprep.subr.mxu0 0.0
        %684 = vmatpush1.msra.mxu0 0.0
        %685 = vmatprep.subr.mxu0 0.0
        %686 = vmatpush1.msra.mxu0 0.0
        %687 = vmatprep.subr.mxu0 0.0
        %688 = vmatpush1.msra.mxu0 0.0
        %689 = vmatprep.subr.mxu0 0.0
        %690 = vmatpush1.msra.mxu0 0.0
        %691 = vmatprep.subr.mxu0 0.0
        %692 = vmatpush1.msra.mxu0 0.0
        %693 = vmatprep.subr.mxu0 0.0
        %694 = vmatpush1.msra.mxu0 0.0
        %695 = vmatprep.subr.mxu0 0.0
        %696 = vmatpush1.msra.mxu0 0.0
        %697 = vmatprep.subr.mxu0 0.0
        %698 = vmatpush1.msra.mxu0 0.0
        %699 = vmatprep.subr.mxu0 0.0
        %700 = vmatpush1.msra.mxu0 0.0
        %701 = vmatprep.subr.mxu0 0.0
        %702 = vmatpush1.msra.mxu0 0.0
        %703 = vmatprep.subr.mxu0 0.0
        %704 = vmatpush1.msra.mxu0 0.0
        %705 = vmatprep.subr.mxu0 %v529
        %706 = vmatpush1.msra.mxu0 %v527
        %707 = vmatprep.subr.mxu0 %v513
        %708 = vmatpush1.msra.mxu0 %v512
        %709 = vmatprep.subr.mxu0 %v511
        %710 = vmatpush1.msra.mxu0 %v510
        %711 = vmatprep.subr.mxu0 %v509
        %712 = vmatpush1.msra.mxu0 %v508
        %713 = vmatprep.subr.mxu0 0.0
        %714 = vmatpush2.msra.mxu0 0.0
        %715 = vmatprep.subr.mxu0 0.0
        %716 = vmatpush2.msra.mxu0 0.0
        %717 = vmatprep.subr.mxu0 0.0
        %718 = vmatpush2.msra.mxu0 0.0
        %719 = vmatprep.subr.mxu0 0.0
        %720 = vmatpush2.msra.mxu0 0.0
        %721 = vmatprep.subr.mxu0 0.0
        %722 = vmatpush2.msra.mxu0 0.0
        %723 = vmatprep.subr.mxu0 0.0
        %724 = vmatpush2.msra.mxu0 0.0
        %725 = vmatprep.subr.mxu0 0.0
        %726 = vmatpush2.msra.mxu0 0.0
        %727 = vmatprep.subr.mxu0 0.0
        %728 = vmatpush2.msra.mxu0 0.0
        %729 = vmatprep.subr.mxu0 0.0
        %730 = vmatpush2.msra.mxu0 0.0
        %731 = vmatprep.subr.mxu0 0.0
        %732 = vmatpush2.msra.mxu0 0.0
        %733 = vmatprep.subr.mxu0 0.0
        %734 = vmatpush2.msra.mxu0 0.0
        %735 = vmatprep.subr.mxu0 0.0
        %736 = vmatpush2.msra.mxu0 0.0
        %737 = vmatprep.subr.mxu0 0.0
        %738 = vmatpush2.msra.mxu0 0.0
        %739 = vmatprep.subr.mxu0 0.0
        %740 = vmatpush2.msra.mxu0 0.0
        %741 = vmatprep.subr.mxu0 0.0
        %742 = vmatpush2.msra.mxu0 0.0
        %743 = vmatprep.subr.mxu0 0.0
        %744 = vmatpush2.msra.mxu0 0.0
        %745 = vmatprep.mubr.f32.mxu0 0.0
        %746 = vmatmul.mubr.f32.gmra.mxu0 %v679
        %v747 = vpop.f32.mrf.mxu0
        %v748 = vadd.f32 0.0, %v747
        %v749 = vpop.f32.mrf.mxu0
        %v750 = vadd.f32 0.0, %v749
        %751 = vdwg.mxu0
        %752 = vmatprep.subr.mxu0 0.0
        %753 = vmatpush1.msra.mxu0 0.0
        %754 = vmatprep.subr.mxu0 0.0
        %755 = vmatpush1.msra.mxu0 0.0
        %756 = vmatprep.subr.mxu0 0.0
        %757 = vmatpush1.msra.mxu0 0.0
        %758 = vmatprep.subr.mxu0 0.0
        %759 = vmatpush1.msra.mxu0 0.0
        %760 = vmatprep.subr.mxu0 0.0
        %761 = vmatpush1.msra.mxu0 0.0
        %762 = vmatprep.subr.mxu0 0.0
        %763 = vmatpush1.msra.mxu0 0.0
        %764 = vmatprep.subr.mxu0 0.0
        %765 = vmatpush1.msra.mxu0 0.0
        %766 = vmatprep.subr.mxu0 0.0
        %767 = vmatpush1.msra.mxu0 0.0
        %768 = vmatprep.subr.mxu0 0.0
        %769 = vmatpush1.msra.mxu0 0.0
        %770 = vmatprep.subr.mxu0 0.0
        %771 = vmatpush1.msra.mxu0 0.0
        %772 = vmatprep.subr.mxu0 0.0
        %773 = vmatpush1.msra.mxu0 0.0
        %774 = vmatprep.subr.mxu0 0.0
        %775 = vmatpush1.msra.mxu0 0.0
        %776 = vmatprep.subr.mxu0 0.0
        %777 = vmatpush1.msra.mxu0 %v531
        %778 = vmatprep.subr.mxu0 0.0
        %779 = vmatpush1.msra.mxu0 %v500
        %780 = vmatprep.subr.mxu0 0.0
        %781 = vmatpush1.msra.mxu0 %v494
        %782 = vmatprep.subr.mxu0 0.0
        %783 = vmatpush1.msra.mxu0 %v488
        %784 = vmatprep.subr.mxu0 0.0
        %785 = vmatpush2.msra.mxu0 0.0
        %786 = vmatprep.subr.mxu0 0.0
        %787 = vmatpush2.msra.mxu0 0.0
        %788 = vmatprep.subr.mxu0 0.0
        %789 = vmatpush2.msra.mxu0 0.0
        %790 = vmatprep.subr.mxu0 0.0
        %791 = vmatpush2.msra.mxu0 0.0
        %792 = vmatprep.subr.mxu0 0.0
        %793 = vmatpush2.msra.mxu0 0.0
        %794 = vmatprep.subr.mxu0 0.0
        %795 = vmatpush2.msra.mxu0 0.0
        %796 = vmatprep.subr.mxu0 0.0
        %797 = vmatpush2.msra.mxu0 0.0
        %798 = vmatprep.subr.mxu0 0.0
        %799 = vmatpush2.msra.mxu0 0.0
        %800 = vmatprep.subr.mxu0 0.0
        %801 = vmatpush2.msra.mxu0 0.0
        %802 = vmatprep.subr.mxu0 0.0
        %803 = vmatpush2.msra.mxu0 0.0
        %804 = vmatprep.subr.mxu0 0.0
        %805 = vmatpush2.msra.mxu0 0.0
        %806 = vmatprep.subr.mxu0 0.0
        %807 = vmatpush2.msra.mxu0 0.0
        %808 = vmatprep.subr.mxu0 0.0
        %809 = vmatpush2.msra.mxu0 0.0
        %810 = vmatprep.subr.mxu0 0.0
        %811 = vmatpush2.msra.mxu0 0.0
        %812 = vmatprep.subr.mxu0 0.0
        %813 = vmatpush2.msra.mxu0 0.0
        %814 = vmatprep.subr.mxu0 0.0
        %815 = vmatpush2.msra.mxu0 0.0
        %816 = vmatprep.mubr.f32.mxu0 0.0
        %817 = vmatmul.mubr.f32.gmra.mxu0 %v679
        %v818 = vpop.f32.mrf.mxu0
        %v819 = vadd.f32 0.0, %v818
        %v820 = vpop.f32.mrf.mxu0
        %821 = vdwg.mxu0
        %v822 = vadd.f32 %v468, %v748
        %v823 = vadd.f32 %v469, %v750
        %v824 = vadd.f32 %v470, %v819
        %v825 = vcombine.high %v203, %v203
        %827 = vrot.lane.b32.xlu0 %v203, 127
        %v828 = vpop.permute.xlu0 %827
        %v829 = vsel %vm244, %v243, %v828
        %832 = vrot.lane.b32.xlu0 %v825, 126
        %v833 = vpop.permute.xlu0 %832
        %v834 = vsel %vm256, %v255, %v833
        %837 = vrot.lane.b32.xlu0 %v203, 125
        %v838 = vpop.permute.xlu0 %837
        %v839 = vsel %vm268, %v267, %v838
        %842 = vrot.lane.b32.xlu0 %v825, 124
        %v843 = vpop.permute.xlu0 %842
        %v844 = vsel %vm280, %v279, %v843
        %847 = vrot.lane.b32.xlu0 %v203, 123
        %v848 = vpop.permute.xlu0 %847
        %v849 = vsel %vm292, %v291, %v848
        %852 = vrot.lane.b32.xlu0 %v825, 122
        %v853 = vpop.permute.xlu0 %852
        %v854 = vsel %vm304, %v303, %v853
        %v855 = vsel %vm307, %v203, %v829
        %v856 = vsel %vm307, %v825, %v828
        %v857 = vsel %vm307, %v834, %v839
        %v858 = vsel %vm307, %v833, %v838
        %v859 = vsel %vm307, %v844, %v849
        %v860 = vsel %vm307, %v843, %v848
        %862 = vrot.lane.b32.xlu0 %v204, 72
        %v863 = vpop.permute.xlu0 %862
        %870 = vrot.lane.b32.xlu0 %v308, 84
        %v871 = vpop.permute.xlu0 %870
        %872 = vrot.lane.b32.xlu0 %v309, 84
        %v873 = vpop.permute.xlu0 %872
        %874 = vrot.lane.b32.xlu0 %v855, 84
        %v875 = vpop.permute.xlu0 %874
        %876 = vrot.lane.b32.xlu0 %v856, 84
        %v877 = vpop.permute.xlu0 %876
        %878 = vrot.lane.b32.xlu0 %v311, 84
        %v879 = vpop.permute.xlu0 %878
        %880 = vrot.lane.b32.xlu0 %v312, 84
        %v881 = vpop.permute.xlu0 %880
        %882 = vrot.lane.b32.xlu0 %v857, 84
        %v883 = vpop.permute.xlu0 %882
        %884 = vrot.lane.b32.xlu0 %v858, 84
        %v885 = vpop.permute.xlu0 %884
        %886 = vrot.lane.b32.xlu0 %v314, 84
        %v887 = vpop.permute.xlu0 %886
        %888 = vrot.lane.b32.xlu0 %v315, 84
        %v889 = vpop.permute.xlu0 %888
        %890 = vrot.lane.b32.xlu0 %v859, 84
        %v891 = vpop.permute.xlu0 %890
        %892 = vrot.lane.b32.xlu0 %v860, 84
        %v893 = vpop.permute.xlu0 %892
        %894 = vrot.lane.b32.xlu0 %v305, 84
        %v895 = vpop.permute.xlu0 %894
        %896 = vrot.lane.b32.xlu0 %v306, 84
        %v897 = vpop.permute.xlu0 %896
        %898 = vrot.lane.b32.xlu0 %v854, 84
        %v899 = vpop.permute.xlu0 %898
        %900 = vrot.lane.b32.xlu0 %v853, 84
        %v901 = vpop.permute.xlu0 %900
        %vm902 = vcmask 687104
        %v903 = vsel %vm902, %v871, %v873
        %v904 = vsel %vm902, %v873, %v875
        %v905 = vsel %vm902, %v875, %v877
        %v906 = vsel %vm902, %v879, %v881
        %v907 = vsel %vm902, %v881, %v883
        %v908 = vsel %vm902, %v883, %v885
        %v909 = vsel %vm902, %v887, %v889
        %v910 = vsel %vm902, %v889, %v891
        %v911 = vsel %vm902, %v891, %v893
        %v912 = vsel %vm902, %v895, %v897
        %v913 = vsel %vm902, %v897, %v899
        %v914 = vsel %vm902, %v899, %v901
        %v924 = vsel %vm317, %v863, 0
        %v926 = vsel %vm307, %v912, 0
        %v928 = vsel %vm307, %v913, 0
        %v930 = vsel %vm307, %v914, 0
        %932 = vmatprep.subr.mxu0 0.0
        %933 = vmatpush1.msra.mxu0 0.0
        %934 = vmatprep.subr.mxu0 0.0
        %935 = vmatpush1.msra.mxu0 0.0
        %936 = vmatprep.subr.mxu0 0.0
        %937 = vmatpush1.msra.mxu0 0.0
        %938 = vmatprep.subr.mxu0 0.0
        %939 = vmatpush1.msra.mxu0 0.0
        %940 = vmatprep.subr.mxu0 0.0
        %941 = vmatpush1.msra.mxu0 0.0
        %942 = vmatprep.subr.mxu0 0.0
        %943 = vmatpush1.msra.mxu0 0.0
        %944 = vmatprep.subr.mxu0 0.0
        %945 = vmatpush1.msra.mxu0 0.0
        %946 = vmatprep.subr.mxu0 0.0
        %947 = vmatpush1.msra.mxu0 0.0
        %948 = vmatprep.subr.mxu0 0.0
        %949 = vmatpush1.msra.mxu0 0.0
        %950 = vmatprep.subr.mxu0 0.0
        %951 = vmatpush1.msra.mxu0 0.0
        %952 = vmatprep.subr.mxu0 0.0
        %953 = vmatpush1.msra.mxu0 0.0
        %954 = vmatprep.subr.mxu0 0.0
        %955 = vmatpush1.msra.mxu0 0.0
        %956 = vmatprep.subr.mxu0 %v928
        %957 = vmatpush1.msra.mxu0 %v926
        %958 = vmatprep.subr.mxu0 %v910
        %959 = vmatpush1.msra.mxu0 %v909
        %960 = vmatprep.subr.mxu0 %v907
        %961 = vmatpush1.msra.mxu0 %v906
        %962 = vmatprep.subr.mxu0 %v904
        %963 = vmatpush1.msra.mxu0 %v903
        %964 = vmatprep.subr.mxu0 0.0
        %965 = vmatpush2.msra.mxu0 0.0
        %966 = vmatprep.subr.mxu0 0.0
        %967 = vmatpush2.msra.mxu0 0.0
        %968 = vmatprep.subr.mxu0 0.0
        %969 = vmatpush2.msra.mxu0 0.0
        %970 = vmatprep.subr.mxu0 0.0
        %971 = vmatpush2.msra.mxu0 0.0
        %972 = vmatprep.subr.mxu0 0.0
        %973 = vmatpush2.msra.mxu0 0.0
        %974 = vmatprep.subr.mxu0 0.0
        %975 = vmatpush2.msra.mxu0 0.0
        %976 = vmatprep.subr.mxu0 0.0
        %977 = vmatpush2.msra.mxu0 0.0
        %978 = vmatprep.subr.mxu0 0.0
        %979 = vmatpush2.msra.mxu0 0.0
        %980 = vmatprep.subr.mxu0 0.0
        %981 = vmatpush2.msra.mxu0 0.0
        %982 = vmatprep.subr.mxu0 0.0
        %983 = vmatpush2.msra.mxu0 0.0
        %984 = vmatprep.subr.mxu0 0.0
        %985 = vmatpush2.msra.mxu0 0.0
        %986 = vmatprep.subr.mxu0 0.0
        %987 = vmatpush2.msra.mxu0 0.0
        %988 = vmatprep.subr.mxu0 0.0
        %989 = vmatpush2.msra.mxu0 0.0
        %990 = vmatprep.subr.mxu0 0.0
        %991 = vmatpush2.msra.mxu0 0.0
        %992 = vmatprep.subr.mxu0 0.0
        %993 = vmatpush2.msra.mxu0 0.0
        %994 = vmatprep.subr.mxu0 0.0
        %995 = vmatpush2.msra.mxu0 0.0
        %996 = vmatprep.mubr.f32.mxu0 0.0
        %997 = vmatmul.mubr.f32.gmra.mxu0 %v924
        %v998 = vpop.f32.mrf.mxu0
        %v999 = vadd.f32 0.0, %v998
        %v1000 = vpop.f32.mrf.mxu0
        %v1001 = vadd.f32 0.0, %v1000
        %1002 = vdwg.mxu0
        %1003 = vmatprep.subr.mxu0 0.0
        %1004 = vmatpush1.msra.mxu0 0.0
        %1005 = vmatprep.subr.mxu0 0.0
        %1006 = vmatpush1.msra.mxu0 0.0
        %1007 = vmatprep.subr.mxu0 0.0
        %1008 = vmatpush1.msra.mxu0 0.0
        %1009 = vmatprep.subr.mxu0 0.0
        %1010 = vmatpush1.msra.mxu0 0.0
        %1011 = vmatprep.subr.mxu0 0.0
        %1012 = vmatpush1.msra.mxu0 0.0
        %1013 = vmatprep.subr.mxu0 0.0
        %1014 = vmatpush1.msra.mxu0 0.0
        %1015 = vmatprep.subr.mxu0 0.0
        %1016 = vmatpush1.msra.mxu0 0.0
        %1017 = vmatprep.subr.mxu0 0.0
        %1018 = vmatpush1.msra.mxu0 0.0
        %1019 = vmatprep.subr.mxu0 0.0
        %1020 = vmatpush1.msra.mxu0 0.0
        %1021 = vmatprep.subr.mxu0 0.0
        %1022 = vmatpush1.msra.mxu0 0.0
        %1023 = vmatprep.subr.mxu0 0.0
        %1024 = vmatpush1.msra.mxu0 0.0
        %1025 = vmatprep.subr.mxu0 0.0
        %1026 = vmatpush1.msra.mxu0 0.0
        %1027 = vmatprep.subr.mxu0 0.0
        %1028 = vmatpush1.msra.mxu0 %v930
        %1029 = vmatprep.subr.mxu0 0.0
        %1030 = vmatpush1.msra.mxu0 %v911
        %1031 = vmatprep.subr.mxu0 0.0
        %1032 = vmatpush1.msra.mxu0 %v908
        %1033 = vmatprep.subr.mxu0 0.0
        %1034 = vmatpush1.msra.mxu0 %v905
        %1035 = vmatprep.subr.mxu0 0.0
        %1036 = vmatpush2.msra.mxu0 0.0
        %1037 = vmatprep.subr.mxu0 0.0
        %1038 = vmatpush2.msra.mxu0 0.0
        %1039 = vmatprep.subr.mxu0 0.0
        %1040 = vmatpush2.msra.mxu0 0.0
        %1041 = vmatprep.subr.mxu0 0.0
        %1042 = vmatpush2.msra.mxu0 0.0
        %1043 = vmatprep.subr.mxu0 0.0
        %1044 = vmatpush2.msra.mxu0 0.0
        %1045 = vmatprep.subr.mxu0 0.0
        %1046 = vmatpush2.msra.mxu0 0.0
        %1047 = vmatprep.subr.mxu0 0.0
        %1048 = vmatpush2.msra.mxu0 0.0
        %1049 = vmatprep.subr.mxu0 0.0
        %1050 = vmatpush2.msra.mxu0 0.0
        %1051 = vmatprep.subr.mxu0 0.0
        %1052 = vmatpush2.msra.mxu0 0.0
        %1053 = vmatprep.subr.mxu0 0.0
        %1054 = vmatpush2.msra.mxu0 0.0
        %1055 = vmatprep.subr.mxu0 0.0
        %1056 = vmatpush2.msra.mxu0 0.0
        %1057 = vmatprep.subr.mxu0 0.0
        %1058 = vmatpush2.msra.mxu0 0.0
        %1059 = vmatprep.subr.mxu0 0.0
        %1060 = vmatpush2.msra.mxu0 0.0
        %1061 = vmatprep.subr.mxu0 0.0
        %1062 = vmatpush2.msra.mxu0 0.0
        %1063 = vmatprep.subr.mxu0 0.0
        %1064 = vmatpush2.msra.mxu0 0.0
        %1065 = vmatprep.subr.mxu0 0.0
        %1066 = vmatpush2.msra.mxu0 0.0
        %1067 = vmatprep.mubr.f32.mxu0 0.0
        %1068 = vmatmul.mubr.f32.gmra.mxu0 %v924
        %v1069 = vpop.f32.mrf.mxu0
        %v1070 = vadd.f32 0.0, %v1069
        %v1071 = vpop.f32.mrf.mxu0
        %1072 = vdwg.mxu0
        %v1073 = vadd.f32 %v216, %v999
        %v1074 = vadd.f32 %v216, %v1001
        %v1075 = vadd.f32 %v216, %v1070
        %1076 = vrot.lane.b32.xlu0 %v207, 72
        %v1077 = vpop.permute.xlu0 %1076
        %v1078 = vsel %vm317, %v1077, 0
        %1080 = vmatprep.subr.mxu0 0.0
        %1081 = vmatpush1.msra.mxu0 0.0
        %1082 = vmatprep.subr.mxu0 0.0
        %1083 = vmatpush1.msra.mxu0 0.0
        %1084 = vmatprep.subr.mxu0 0.0
        %1085 = vmatpush1.msra.mxu0 0.0
        %1086 = vmatprep.subr.mxu0 0.0
        %1087 = vmatpush1.msra.mxu0 0.0
        %1088 = vmatprep.subr.mxu0 0.0
        %1089 = vmatpush1.msra.mxu0 0.0
        %1090 = vmatprep.subr.mxu0 0.0
        %1091 = vmatpush1.msra.mxu0 0.0
        %1092 = vmatprep.subr.mxu0 0.0
        %1093 = vmatpush1.msra.mxu0 0.0
        %1094 = vmatprep.subr.mxu0 0.0
        %1095 = vmatpush1.msra.mxu0 0.0
        %1096 = vmatprep.subr.mxu0 0.0
        %1097 = vmatpush1.msra.mxu0 0.0
        %1098 = vmatprep.subr.mxu0 0.0
        %1099 = vmatpush1.msra.mxu0 0.0
        %1100 = vmatprep.subr.mxu0 0.0
        %1101 = vmatpush1.msra.mxu0 0.0
        %1102 = vmatprep.subr.mxu0 0.0
        %1103 = vmatpush1.msra.mxu0 0.0
        %1104 = vmatprep.subr.mxu0 %v928
        %1105 = vmatpush1.msra.mxu0 %v926
        %1106 = vmatprep.subr.mxu0 %v910
        %1107 = vmatpush1.msra.mxu0 %v909
        %1108 = vmatprep.subr.mxu0 %v907
        %1109 = vmatpush1.msra.mxu0 %v906
        %1110 = vmatprep.subr.mxu0 %v904
        %1111 = vmatpush1.msra.mxu0 %v903
        %1112 = vmatprep.subr.mxu0 0.0
        %1113 = vmatpush2.msra.mxu0 0.0
        %1114 = vmatprep.subr.mxu0 0.0
        %1115 = vmatpush2.msra.mxu0 0.0
        %1116 = vmatprep.subr.mxu0 0.0
        %1117 = vmatpush2.msra.mxu0 0.0
        %1118 = vmatprep.subr.mxu0 0.0
        %1119 = vmatpush2.msra.mxu0 0.0
        %1120 = vmatprep.subr.mxu0 0.0
        %1121 = vmatpush2.msra.mxu0 0.0
        %1122 = vmatprep.subr.mxu0 0.0
        %1123 = vmatpush2.msra.mxu0 0.0
        %1124 = vmatprep.subr.mxu0 0.0
        %1125 = vmatpush2.msra.mxu0 0.0
        %1126 = vmatprep.subr.mxu0 0.0
        %1127 = vmatpush2.msra.mxu0 0.0
        %1128 = vmatprep.subr.mxu0 0.0
        %1129 = vmatpush2.msra.mxu0 0.0
        %1130 = vmatprep.subr.mxu0 0.0
        %1131 = vmatpush2.msra.mxu0 0.0
        %1132 = vmatprep.subr.mxu0 0.0
        %1133 = vmatpush2.msra.mxu0 0.0
        %1134 = vmatprep.subr.mxu0 0.0
        %1135 = vmatpush2.msra.mxu0 0.0
        %1136 = vmatprep.subr.mxu0 0.0
        %1137 = vmatpush2.msra.mxu0 0.0
        %1138 = vmatprep.subr.mxu0 0.0
        %1139 = vmatpush2.msra.mxu0 0.0
        %1140 = vmatprep.subr.mxu0 0.0
        %1141 = vmatpush2.msra.mxu0 0.0
        %1142 = vmatprep.subr.mxu0 0.0
        %1143 = vmatpush2.msra.mxu0 0.0
        %1144 = vmatprep.mubr.f32.mxu0 0.0
        %1145 = vmatmul.mubr.f32.gmra.mxu0 %v1078
        %v1146 = vpop.f32.mrf.mxu0
        %v1147 = vadd.f32 0.0, %v1146
        %v1148 = vpop.f32.mrf.mxu0
        %v1149 = vadd.f32 0.0, %v1148
        %1150 = vdwg.mxu0
        %1151 = vmatprep.subr.mxu0 0.0
        %1152 = vmatpush1.msra.mxu0 0.0
        %1153 = vmatprep.subr.mxu0 0.0
        %1154 = vmatpush1.msra.mxu0 0.0
        %1155 = vmatprep.subr.mxu0 0.0
        %1156 = vmatpush1.msra.mxu0 0.0
        %1157 = vmatprep.subr.mxu0 0.0
        %1158 = vmatpush1.msra.mxu0 0.0
        %1159 = vmatprep.subr.mxu0 0.0
        %1160 = vmatpush1.msra.mxu0 0.0
        %1161 = vmatprep.subr.mxu0 0.0
        %1162 = vmatpush1.msra.mxu0 0.0
        %1163 = vmatprep.subr.mxu0 0.0
        %1164 = vmatpush1.msra.mxu0 0.0
        %1165 = vmatprep.subr.mxu0 0.0
        %1166 = vmatpush1.msra.mxu0 0.0
        %1167 = vmatprep.subr.mxu0 0.0
        %1168 = vmatpush1.msra.mxu0 0.0
        %1169 = vmatprep.subr.mxu0 0.0
        %1170 = vmatpush1.msra.mxu0 0.0
        %1171 = vmatprep.subr.mxu0 0.0
        %1172 = vmatpush1.msra.mxu0 0.0
        %1173 = vmatprep.subr.mxu0 0.0
        %1174 = vmatpush1.msra.mxu0 0.0
        %1175 = vmatprep.subr.mxu0 0.0
        %1176 = vmatpush1.msra.mxu0 %v930
        %1177 = vmatprep.subr.mxu0 0.0
        %1178 = vmatpush1.msra.mxu0 %v911
        %1179 = vmatprep.subr.mxu0 0.0
        %1180 = vmatpush1.msra.mxu0 %v908
        %1181 = vmatprep.subr.mxu0 0.0
        %1182 = vmatpush1.msra.mxu0 %v905
        %1183 = vmatprep.subr.mxu0 0.0
        %1184 = vmatpush2.msra.mxu0 0.0
        %1185 = vmatprep.subr.mxu0 0.0
        %1186 = vmatpush2.msra.mxu0 0.0
        %1187 = vmatprep.subr.mxu0 0.0
        %1188 = vmatpush2.msra.mxu0 0.0
        %1189 = vmatprep.subr.mxu0 0.0
        %1190 = vmatpush2.msra.mxu0 0.0
        %1191 = vmatprep.subr.mxu0 0.0
        %1192 = vmatpush2.msra.mxu0 0.0
        %1193 = vmatprep.subr.mxu0 0.0
        %1194 = vmatpush2.msra.mxu0 0.0
        %1195 = vmatprep.subr.mxu0 0.0
        %1196 = vmatpush2.msra.mxu0 0.0
        %1197 = vmatprep.subr.mxu0 0.0
        %1198 = vmatpush2.msra.mxu0 0.0
        %1199 = vmatprep.subr.mxu0 0.0
        %1200 = vmatpush2.msra.mxu0 0.0
        %1201 = vmatprep.subr.mxu0 0.0
        %1202 = vmatpush2.msra.mxu0 0.0
        %1203 = vmatprep.subr.mxu0 0.0
        %1204 = vmatpush2.msra.mxu0 0.0
        %1205 = vmatprep.subr.mxu0 0.0
        %1206 = vmatpush2.msra.mxu0 0.0
        %1207 = vmatprep.subr.mxu0 0.0
        %1208 = vmatpush2.msra.mxu0 0.0
        %1209 = vmatprep.subr.mxu0 0.0
        %1210 = vmatpush2.msra.mxu0 0.0
        %1211 = vmatprep.subr.mxu0 0.0
        %1212 = vmatpush2.msra.mxu0 0.0
        %1213 = vmatprep.subr.mxu0 0.0
        %1214 = vmatpush2.msra.mxu0 0.0
        %1215 = vmatprep.mubr.f32.mxu0 0.0
        %1216 = vmatmul.mubr.f32.gmra.mxu0 %v1078
        %v1217 = vpop.f32.mrf.mxu0
        %v1218 = vadd.f32 0.0, %v1217
        %v1219 = vpop.f32.mrf.mxu0
        %1220 = vdwg.mxu0
        %v1221 = vadd.f32 %v674, %v1147
        %v1222 = vadd.f32 %v675, %v1149
        %v1223 = vadd.f32 %v676, %v1218
        %1224 = vrot.lane.b32.xlu0 %v210, 72
        %v1225 = vpop.permute.xlu0 %1224
        %v1226 = vsel %vm317, %v1225, 0
        %1228 = vmatprep.subr.mxu0 0.0
        %1229 = vmatpush1.msra.mxu0 0.0
        %1230 = vmatprep.subr.mxu0 0.0
        %1231 = vmatpush1.msra.mxu0 0.0
        %1232 = vmatprep.subr.mxu0 0.0
        %1233 = vmatpush1.msra.mxu0 0.0
        %1234 = vmatprep.subr.mxu0 0.0
        %1235 = vmatpush1.msra.mxu0 0.0
        %1236 = vmatprep.subr.mxu0 0.0
        %1237 = vmatpush1.msra.mxu0 0.0
        %1238 = vmatprep.subr.mxu0 0.0
        %1239 = vmatpush1.msra.mxu0 0.0
        %1240 = vmatprep.subr.mxu0 0.0
        %1241 = vmatpush1.msra.mxu0 0.0
        %1242 = vmatprep.subr.mxu0 0.0
        %1243 = vmatpush1.msra.mxu0 0.0
        %1244 = vmatprep.subr.mxu0 0.0
        %1245 = vmatpush1.msra.mxu0 0.0
        %1246 = vmatprep.subr.mxu0 0.0
        %1247 = vmatpush1.msra.mxu0 0.0
        %1248 = vmatprep.subr.mxu0 0.0
        %1249 = vmatpush1.msra.mxu0 0.0
        %1250 = vmatprep.subr.mxu0 0.0
        %1251 = vmatpush1.msra.mxu0 0.0
        %1252 = vmatprep.subr.mxu0 %v928
        %1253 = vmatpush1.msra.mxu0 %v926
        %1254 = vmatprep.subr.mxu0 %v910
        %1255 = vmatpush1.msra.mxu0 %v909
        %1256 = vmatprep.subr.mxu0 %v907
        %1257 = vmatpush1.msra.mxu0 %v906
        %1258 = vmatprep.subr.mxu0 %v904
        %1259 = vmatpush1.msra.mxu0 %v903
        %1260 = vmatprep.subr.mxu0 0.0
        %1261 = vmatpush2.msra.mxu0 0.0
        %1262 = vmatprep.subr.mxu0 0.0
        %1263 = vmatpush2.msra.mxu0 0.0
        %1264 = vmatprep.subr.mxu0 0.0
        %1265 = vmatpush2.msra.mxu0 0.0
        %1266 = vmatprep.subr.mxu0 0.0
        %1267 = vmatpush2.msra.mxu0 0.0
        %1268 = vmatprep.subr.mxu0 0.0
        %1269 = vmatpush2.msra.mxu0 0.0
        %1270 = vmatprep.subr.mxu0 0.0
        %1271 = vmatpush2.msra.mxu0 0.0
        %1272 = vmatprep.subr.mxu0 0.0
        %1273 = vmatpush2.msra.mxu0 0.0
        %1274 = vmatprep.subr.mxu0 0.0
        %1275 = vmatpush2.msra.mxu0 0.0
        %1276 = vmatprep.subr.mxu0 0.0
        %1277 = vmatpush2.msra.mxu0 0.0
        %1278 = vmatprep.subr.mxu0 0.0
        %1279 = vmatpush2.msra.mxu0 0.0
        %1280 = vmatprep.subr.mxu0 0.0
        %1281 = vmatpush2.msra.mxu0 0.0
        %1282 = vmatprep.subr.mxu0 0.0
        %1283 = vmatpush2.msra.mxu0 0.0
        %1284 = vmatprep.subr.mxu0 0.0
        %1285 = vmatpush2.msra.mxu0 0.0
        %1286 = vmatprep.subr.mxu0 0.0
        %1287 = vmatpush2.msra.mxu0 0.0
        %1288 = vmatprep.subr.mxu0 0.0
        %1289 = vmatpush2.msra.mxu0 0.0
        %1290 = vmatprep.subr.mxu0 0.0
        %1291 = vmatpush2.msra.mxu0 0.0
        %1292 = vmatprep.mubr.f32.mxu0 0.0
        %1293 = vmatmul.mubr.f32.gmra.mxu0 %v1226
        %v1294 = vpop.f32.mrf.mxu0
        %v1295 = vadd.f32 0.0, %v1294
        %v1296 = vpop.f32.mrf.mxu0
        %v1297 = vadd.f32 0.0, %v1296
        %1298 = vdwg.mxu0
        %1299 = vmatprep.subr.mxu0 0.0
        %1300 = vmatpush1.msra.mxu0 0.0
        %1301 = vmatprep.subr.mxu0 0.0
        %1302 = vmatpush1.msra.mxu0 0.0
        %1303 = vmatprep.subr.mxu0 0.0
        %1304 = vmatpush1.msra.mxu0 0.0
        %1305 = vmatprep.subr.mxu0 0.0
        %1306 = vmatpush1.msra.mxu0 0.0
        %1307 = vmatprep.subr.mxu0 0.0
        %1308 = vmatpush1.msra.mxu0 0.0
        %1309 = vmatprep.subr.mxu0 0.0
        %1310 = vmatpush1.msra.mxu0 0.0
        %1311 = vmatprep.subr.mxu0 0.0
        %1312 = vmatpush1.msra.mxu0 0.0
        %1313 = vmatprep.subr.mxu0 0.0
        %1314 = vmatpush1.msra.mxu0 0.0
        %1315 = vmatprep.subr.mxu0 0.0
        %1316 = vmatpush1.msra.mxu0 0.0
        %1317 = vmatprep.subr.mxu0 0.0
        %1318 = vmatpush1.msra.mxu0 0.0
        %1319 = vmatprep.subr.mxu0 0.0
        %1320 = vmatpush1.msra.mxu0 0.0
        %1321 = vmatprep.subr.mxu0 0.0
        %1322 = vmatpush1.msra.mxu0 0.0
        %1323 = vmatprep.subr.mxu0 0.0
        %1324 = vmatpush1.msra.mxu0 %v930
        %1325 = vmatprep.subr.mxu0 0.0
        %1326 = vmatpush1.msra.mxu0 %v911
        %1327 = vmatprep.subr.mxu0 0.0
        %1328 = vmatpush1.msra.mxu0 %v908
        %1329 = vmatprep.subr.mxu0 0.0
        %1330 = vmatpush1.msra.mxu0 %v905
        %1331 = vmatprep.subr.mxu0 0.0
        %1332 = vmatpush2.msra.mxu0 0.0
        %1333 = vmatprep.subr.mxu0 0.0
        %1334 = vmatpush2.msra.mxu0 0.0
        %1335 = vmatprep.subr.mxu0 0.0
        %1336 = vmatpush2.msra.mxu0 0.0
        %1337 = vmatprep.subr.mxu0 0.0
        %1338 = vmatpush2.msra.mxu0 0.0
        %1339 = vmatprep.subr.mxu0 0.0
        %1340 = vmatpush2.msra.mxu0 0.0
        %1341 = vmatprep.subr.mxu0 0.0
        %1342 = vmatpush2.msra.mxu0 0.0
        %1343 = vmatprep.subr.mxu0 0.0
        %1344 = vmatpush2.msra.mxu0 0.0
        %1345 = vmatprep.subr.mxu0 0.0
        %1346 = vmatpush2.msra.mxu0 0.0
        %1347 = vmatprep.subr.mxu0 0.0
        %1348 = vmatpush2.msra.mxu0 0.0
        %1349 = vmatprep.subr.mxu0 0.0
        %1350 = vmatpush2.msra.mxu0 0.0
        %1351 = vmatprep.subr.mxu0 0.0
        %1352 = vmatpush2.msra.mxu0 0.0
        %1353 = vmatprep.subr.mxu0 0.0
        %1354 = vmatpush2.msra.mxu0 0.0
        %1355 = vmatprep.subr.mxu0 0.0
        %1356 = vmatpush2.msra.mxu0 0.0
        %1357 = vmatprep.subr.mxu0 0.0
        %1358 = vmatpush2.msra.mxu0 0.0
        %1359 = vmatprep.subr.mxu0 0.0
        %1360 = vmatpush2.msra.mxu0 0.0
        %1361 = vmatprep.subr.mxu0 0.0
        %1362 = vmatpush2.msra.mxu0 0.0
        %1363 = vmatprep.mubr.f32.mxu0 0.0
        %1364 = vmatmul.mubr.f32.gmra.mxu0 %v1226
        %v1365 = vpop.f32.mrf.mxu0
        %v1366 = vadd.f32 0.0, %v1365
        %v1367 = vpop.f32.mrf.mxu0
        %1368 = vdwg.mxu0
        %v1369 = vadd.f32 %v822, %v1295
        %v1370 = vadd.f32 %v823, %v1297
        %v1371 = vadd.f32 %v824, %v1366
        %1372 = vrot.lane.b32.xlu0 %v204, 44
        %v1373 = vpop.permute.xlu0 %1372
        %1374 = vrot.lane.b32.xlu0 %v308, 62
        %v1375 = vpop.permute.xlu0 %1374
        %1376 = vrot.lane.b32.xlu0 %v309, 62
        %v1377 = vpop.permute.xlu0 %1376
        %1378 = vrot.lane.b32.xlu0 %v855, 62
        %v1379 = vpop.permute.xlu0 %1378
        %1380 = vrot.lane.b32.xlu0 %v856, 62
        %v1381 = vpop.permute.xlu0 %1380
        %1382 = vrot.lane.b32.xlu0 %v311, 62
        %v1383 = vpop.permute.xlu0 %1382
        %1384 = vrot.lane.b32.xlu0 %v312, 62
        %v1385 = vpop.permute.xlu0 %1384
        %1386 = vrot.lane.b32.xlu0 %v857, 62
        %v1387 = vpop.permute.xlu0 %1386
        %1388 = vrot.lane.b32.xlu0 %v858, 62
        %v1389 = vpop.permute.xlu0 %1388
        %1390 = vrot.lane.b32.xlu0 %v314, 62
        %v1391 = vpop.permute.xlu0 %1390
        %1392 = vrot.lane.b32.xlu0 %v315, 62
        %v1393 = vpop.permute.xlu0 %1392
        %1394 = vrot.lane.b32.xlu0 %v859, 62
        %v1395 = vpop.permute.xlu0 %1394
        %1396 = vrot.lane.b32.xlu0 %v860, 62
        %v1397 = vpop.permute.xlu0 %1396
        %1398 = vrot.lane.b32.xlu0 %v305, 62
        %v1399 = vpop.permute.xlu0 %1398
        %1400 = vrot.lane.b32.xlu0 %v306, 62
        %v1401 = vpop.permute.xlu0 %1400
        %1402 = vrot.lane.b32.xlu0 %v854, 62
        %v1403 = vpop.permute.xlu0 %1402
        %1404 = vrot.lane.b32.xlu0 %v853, 62
        %v1405 = vpop.permute.xlu0 %1404
        %vm1406 = vcmask 506880
        %v1407 = vsel %vm1406, %v1375, %v1377
        %v1408 = vsel %vm1406, %v1377, %v1379
        %v1409 = vsel %vm1406, %v1379, %v1381
        %v1410 = vsel %vm1406, %v1383, %v1385
        %v1411 = vsel %vm1406, %v1385, %v1387
        %v1412 = vsel %vm1406, %v1387, %v1389
        %v1413 = vsel %vm1406, %v1391, %v1393
        %v1414 = vsel %vm1406, %v1393, %v1395
        %v1415 = vsel %vm1406, %v1395, %v1397
        %v1416 = vsel %vm1406, %v1399, %v1401
        %v1417 = vsel %vm1406, %v1401, %v1403
        %v1418 = vsel %vm1406, %v1403, %v1405
        %v1428 = vsel %vm317, %v1373, 0
        %v1430 = vsel %vm307, %v1416, 0
        %v1432 = vsel %vm307, %v1417, 0
        %v1434 = vsel %vm307, %v1418, 0
        %1436 = vmatprep.subr.mxu0 0.0
        %1437 = vmatpush1.msra.mxu0 0.0
        %1438 = vmatprep.subr.mxu0 0.0
        %1439 = vmatpush1.msra.mxu0 0.0
        %1440 = vmatprep.subr.mxu0 0.0
        %1441 = vmatpush1.msra.mxu0 0.0
        %1442 = vmatprep.subr.mxu0 0.0
        %1443 = vmatpush1.msra.mxu0 0.0
        %1444 = vmatprep.subr.mxu0 0.0
        %1445 = vmatpush1.msra.mxu0 0.0
        %1446 = vmatprep.subr.mxu0 0.0
        %1447 = vmatpush1.msra.mxu0 0.0
        %1448 = vmatprep.subr.mxu0 0.0
        %1449 = vmatpush1.msra.mxu0 0.0
        %1450 = vmatprep.subr.mxu0 0.0
        %1451 = vmatpush1.msra.mxu0 0.0
        %1452 = vmatprep.subr.mxu0 0.0
        %1453 = vmatpush1.msra.mxu0 0.0
        %1454 = vmatprep.subr.mxu0 0.0
        %1455 = vmatpush1.msra.mxu0 0.0
        %1456 = vmatprep.subr.mxu0 0.0
        %1457 = vmatpush1.msra.mxu0 0.0
        %1458 = vmatprep.subr.mxu0 0.0
        %1459 = vmatpush1.msra.mxu0 0.0
        %1460 = vmatprep.subr.mxu0 %v1432
        %1461 = vmatpush1.msra.mxu0 %v1430
        %1462 = vmatprep.subr.mxu0 %v1414
        %1463 = vmatpush1.msra.mxu0 %v1413
        %1464 = vmatprep.subr.mxu0 %v1411
        %1465 = vmatpush1.msra.mxu0 %v1410
        %1466 = vmatprep.subr.mxu0 %v1408
        %1467 = vmatpush1.msra.mxu0 %v1407
        %1468 = vmatprep.subr.mxu0 0.0
        %1469 = vmatpush2.msra.mxu0 0.0
        %1470 = vmatprep.subr.mxu0 0.0
        %1471 = vmatpush2.msra.mxu0 0.0
        %1472 = vmatprep.subr.mxu0 0.0
        %1473 = vmatpush2.msra.mxu0 0.0
        %1474 = vmatprep.subr.mxu0 0.0
        %1475 = vmatpush2.msra.mxu0 0.0
        %1476 = vmatprep.subr.mxu0 0.0
        %1477 = vmatpush2.msra.mxu0 0.0
        %1478 = vmatprep.subr.mxu0 0.0
        %1479 = vmatpush2.msra.mxu0 0.0
        %1480 = vmatprep.subr.mxu0 0.0
        %1481 = vmatpush2.msra.mxu0 0.0
        %1482 = vmatprep.subr.mxu0 0.0
        %1483 = vmatpush2.msra.mxu0 0.0
        %1484 = vmatprep.subr.mxu0 0.0
        %1485 = vmatpush2.msra.mxu0 0.0
        %1486 = vmatprep.subr.mxu0 0.0
        %1487 = vmatpush2.msra.mxu0 0.0
        %1488 = vmatprep.subr.mxu0 0.0
        %1489 = vmatpush2.msra.mxu0 0.0
        %1490 = vmatprep.subr.mxu0 0.0
        %1491 = vmatpush2.msra.mxu0 0.0
        %1492 = vmatprep.subr.mxu0 0.0
        %1493 = vmatpush2.msra.mxu0 0.0
        %1494 = vmatprep.subr.mxu0 0.0
        %1495 = vmatpush2.msra.mxu0 0.0
        %1496 = vmatprep.subr.mxu0 0.0
        %1497 = vmatpush2.msra.mxu0 0.0
        %1498 = vmatprep.subr.mxu0 0.0
        %1499 = vmatpush2.msra.mxu0 0.0
        %1500 = vmatprep.mubr.f32.mxu0 0.0
        %1501 = vmatmul.mubr.f32.gmra.mxu0 %v1428
        %v1502 = vpop.f32.mrf.mxu0
        %v1503 = vadd.f32 0.0, %v1502
        %v1504 = vpop.f32.mrf.mxu0
        %v1505 = vadd.f32 0.0, %v1504
        %1506 = vdwg.mxu0
        %1507 = vmatprep.subr.mxu0 0.0
        %1508 = vmatpush1.msra.mxu0 0.0
        %1509 = vmatprep.subr.mxu0 0.0
        %1510 = vmatpush1.msra.mxu0 0.0
        %1511 = vmatprep.subr.mxu0 0.0
        %1512 = vmatpush1.msra.mxu0 0.0
        %1513 = vmatprep.subr.mxu0 0.0
        %1514 = vmatpush1.msra.mxu0 0.0
        %1515 = vmatprep.subr.mxu0 0.0
        %1516 = vmatpush1.msra.mxu0 0.0
        %1517 = vmatprep.subr.mxu0 0.0
        %1518 = vmatpush1.msra.mxu0 0.0
        %1519 = vmatprep.subr.mxu0 0.0
        %1520 = vmatpush1.msra.mxu0 0.0
        %1521 = vmatprep.subr.mxu0 0.0
        %1522 = vmatpush1.msra.mxu0 0.0
        %1523 = vmatprep.subr.mxu0 0.0
        %1524 = vmatpush1.msra.mxu0 0.0
        %1525 = vmatprep.subr.mxu0 0.0
        %1526 = vmatpush1.msra.mxu0 0.0
        %1527 = vmatprep.subr.mxu0 0.0
        %1528 = vmatpush1.msra.mxu0 0.0
        %1529 = vmatprep.subr.mxu0 0.0
        %1530 = vmatpush1.msra.mxu0 0.0
        %1531 = vmatprep.subr.mxu0 0.0
        %1532 = vmatpush1.msra.mxu0 %v1434
        %1533 = vmatprep.subr.mxu0 0.0
        %1534 = vmatpush1.msra.mxu0 %v1415
        %1535 = vmatprep.subr.mxu0 0.0
        %1536 = vmatpush1.msra.mxu0 %v1412
        %1537 = vmatprep.subr.mxu0 0.0
        %1538 = vmatpush1.msra.mxu0 %v1409
        %1539 = vmatprep.subr.mxu0 0.0
        %1540 = vmatpush2.msra.mxu0 0.0
        %1541 = vmatprep.subr.mxu0 0.0
        %1542 = vmatpush2.msra.mxu0 0.0
        %1543 = vmatprep.subr.mxu0 0.0
        %1544 = vmatpush2.msra.mxu0 0.0
        %1545 = vmatprep.subr.mxu0 0.0
        %1546 = vmatpush2.msra.mxu0 0.0
        %1547 = vmatprep.subr.mxu0 0.0
        %1548 = vmatpush2.msra.mxu0 0.0
        %1549 = vmatprep.subr.mxu0 0.0
        %1550 = vmatpush2.msra.mxu0 0.0
        %1551 = vmatprep.subr.mxu0 0.0
        %1552 = vmatpush2.msra.mxu0 0.0
        %1553 = vmatprep.subr.mxu0 0.0
        %1554 = vmatpush2.msra.mxu0 0.0
        %1555 = vmatprep.subr.mxu0 0.0
        %1556 = vmatpush2.msra.mxu0 0.0
        %1557 = vmatprep.subr.mxu0 0.0
        %1558 = vmatpush2.msra.mxu0 0.0
        %1559 = vmatprep.subr.mxu0 0.0
        %1560 = vmatpush2.msra.mxu0 0.0
        %1561 = vmatprep.subr.mxu0 0.0
        %1562 = vmatpush2.msra.mxu0 0.0
        %1563 = vmatprep.subr.mxu0 0.0
        %1564 = vmatpush2.msra.mxu0 0.0
        %1565 = vmatprep.subr.mxu0 0.0
        %1566 = vmatpush2.msra.mxu0 0.0
        %1567 = vmatprep.subr.mxu0 0.0
        %1568 = vmatpush2.msra.mxu0 0.0
        %1569 = vmatprep.subr.mxu0 0.0
        %1570 = vmatpush2.msra.mxu0 0.0
        %1571 = vmatprep.mubr.f32.mxu0 0.0
        %1572 = vmatmul.mubr.f32.gmra.mxu0 %v1428
        %v1573 = vpop.f32.mrf.mxu0
        %v1574 = vadd.f32 0.0, %v1573
        %v1575 = vpop.f32.mrf.mxu0
        %1576 = vdwg.mxu0
        %v1577 = vadd.f32 %v1073, %v1503
        %v1578 = vadd.f32 %v1074, %v1505
        %v1579 = vadd.f32 %v1075, %v1574
        %1580 = vrot.lane.b32.xlu0 %v207, 44
        %v1581 = vpop.permute.xlu0 %1580
        %v1582 = vsel %vm317, %v1581, 0
        %1584 = vmatprep.subr.mxu0 0.0
        %1585 = vmatpush1.msra.mxu0 0.0
        %1586 = vmatprep.subr.mxu0 0.0
        %1587 = vmatpush1.msra.mxu0 0.0
        %1588 = vmatprep.subr.mxu0 0.0
        %1589 = vmatpush1.msra.mxu0 0.0
        %1590 = vmatprep.subr.mxu0 0.0
        %1591 = vmatpush1.msra.mxu0 0.0
        %1592 = vmatprep.subr.mxu0 0.0
        %1593 = vmatpush1.msra.mxu0 0.0
        %1594 = vmatprep.subr.mxu0 0.0
        %1595 = vmatpush1.msra.mxu0 0.0
        %1596 = vmatprep.subr.mxu0 0.0
        %1597 = vmatpush1.msra.mxu0 0.0
        %1598 = vmatprep.subr.mxu0 0.0
        %1599 = vmatpush1.msra.mxu0 0.0
        %1600 = vmatprep.subr.mxu0 0.0
        %1601 = vmatpush1.msra.mxu0 0.0
        %1602 = vmatprep.subr.mxu0 0.0
        %1603 = vmatpush1.msra.mxu0 0.0
        %1604 = vmatprep.subr.mxu0 0.0
        %1605 = vmatpush1.msra.mxu0 0.0
        %1606 = vmatprep.subr.mxu0 0.0
        %1607 = vmatpush1.msra.mxu0 0.0
        %1608 = vmatprep.subr.mxu0 %v1432
        %1609 = vmatpush1.msra.mxu0 %v1430
        %1610 = vmatprep.subr.mxu0 %v1414
        %1611 = vmatpush1.msra.mxu0 %v1413
        %1612 = vmatprep.subr.mxu0 %v1411
        %1613 = vmatpush1.msra.mxu0 %v1410
        %1614 = vmatprep.subr.mxu0 %v1408
        %1615 = vmatpush1.msra.mxu0 %v1407
        %1616 = vmatprep.subr.mxu0 0.0
        %1617 = vmatpush2.msra.mxu0 0.0
        %1618 = vmatprep.subr.mxu0 0.0
        %1619 = vmatpush2.msra.mxu0 0.0
        %1620 = vmatprep.subr.mxu0 0.0
        %1621 = vmatpush2.msra.mxu0 0.0
        %1622 = vmatprep.subr.mxu0 0.0
        %1623 = vmatpush2.msra.mxu0 0.0
        %1624 = vmatprep.subr.mxu0 0.0
        %1625 = vmatpush2.msra.mxu0 0.0
        %1626 = vmatprep.subr.mxu0 0.0
        %1627 = vmatpush2.msra.mxu0 0.0
        %1628 = vmatprep.subr.mxu0 0.0
        %1629 = vmatpush2.msra.mxu0 0.0
        %1630 = vmatprep.subr.mxu0 0.0
        %1631 = vmatpush2.msra.mxu0 0.0
        %1632 = vmatprep.subr.mxu0 0.0
        %1633 = vmatpush2.msra.mxu0 0.0
        %1634 = vmatprep.subr.mxu0 0.0
        %1635 = vmatpush2.msra.mxu0 0.0
        %1636 = vmatprep.subr.mxu0 0.0
        %1637 = vmatpush2.msra.mxu0 0.0
        %1638 = vmatprep.subr.mxu0 0.0
        %1639 = vmatpush2.msra.mxu0 0.0
        %1640 = vmatprep.subr.mxu0 0.0
        %1641 = vmatpush2.msra.mxu0 0.0
        %1642 = vmatprep.subr.mxu0 0.0
        %1643 = vmatpush2.msra.mxu0 0.0
        %1644 = vmatprep.subr.mxu0 0.0
        %1645 = vmatpush2.msra.mxu0 0.0
        %1646 = vmatprep.subr.mxu0 0.0
        %1647 = vmatpush2.msra.mxu0 0.0
        %1648 = vmatprep.mubr.f32.mxu0 0.0
        %1649 = vmatmul.mubr.f32.gmra.mxu0 %v1582
        %v1650 = vpop.f32.mrf.mxu0
        %v1651 = vadd.f32 0.0, %v1650
        %v1652 = vpop.f32.mrf.mxu0
        %v1653 = vadd.f32 0.0, %v1652
        %1654 = vdwg.mxu0
        %1655 = vmatprep.subr.mxu0 0.0
        %1656 = vmatpush1.msra.mxu0 0.0
        %1657 = vmatprep.subr.mxu0 0.0
        %1658 = vmatpush1.msra.mxu0 0.0
        %1659 = vmatprep.subr.mxu0 0.0
        %1660 = vmatpush1.msra.mxu0 0.0
        %1661 = vmatprep.subr.mxu0 0.0
        %1662 = vmatpush1.msra.mxu0 0.0
        %1663 = vmatprep.subr.mxu0 0.0
        %1664 = vmatpush1.msra.mxu0 0.0
        %1665 = vmatprep.subr.mxu0 0.0
        %1666 = vmatpush1.msra.mxu0 0.0
        %1667 = vmatprep.subr.mxu0 0.0
        %1668 = vmatpush1.msra.mxu0 0.0
        %1669 = vmatprep.subr.mxu0 0.0
        %1670 = vmatpush1.msra.mxu0 0.0
        %1671 = vmatprep.subr.mxu0 0.0
        %1672 = vmatpush1.msra.mxu0 0.0
        %1673 = vmatprep.subr.mxu0 0.0
        %1674 = vmatpush1.msra.mxu0 0.0
        %1675 = vmatprep.subr.mxu0 0.0
        %1676 = vmatpush1.msra.mxu0 0.0
        %1677 = vmatprep.subr.mxu0 0.0
        %1678 = vmatpush1.msra.mxu0 0.0
        %1679 = vmatprep.subr.mxu0 0.0
        %1680 = vmatpush1.msra.mxu0 %v1434
        %1681 = vmatprep.subr.mxu0 0.0
        %1682 = vmatpush1.msra.mxu0 %v1415
        %1683 = vmatprep.subr.mxu0 0.0
        %1684 = vmatpush1.msra.mxu0 %v1412
        %1685 = vmatprep.subr.mxu0 0.0
        %1686 = vmatpush1.msra.mxu0 %v1409
        %1687 = vmatprep.subr.mxu0 0.0
        %1688 = vmatpush2.msra.mxu0 0.0
        %1689 = vmatprep.subr.mxu0 0.0
        %1690 = vmatpush2.msra.mxu0 0.0
        %1691 = vmatprep.subr.mxu0 0.0
        %1692 = vmatpush2.msra.mxu0 0.0
        %1693 = vmatprep.subr.mxu0 0.0
        %1694 = vmatpush2.msra.mxu0 0.0
        %1695 = vmatprep.subr.mxu0 0.0
        %1696 = vmatpush2.msra.mxu0 0.0
        %1697 = vmatprep.subr.mxu0 0.0
        %1698 = vmatpush2.msra.mxu0 0.0
        %1699 = vmatprep.subr.mxu0 0.0
        %1700 = vmatpush2.msra.mxu0 0.0
        %1701 = vmatprep.subr.mxu0 0.0
        %1702 = vmatpush2.msra.mxu0 0.0
        %1703 = vmatprep.subr.mxu0 0.0
        %1704 = vmatpush2.msra.mxu0 0.0
        %1705 = vmatprep.subr.mxu0 0.0
        %1706 = vmatpush2.msra.mxu0 0.0
        %1707 = vmatprep.subr.mxu0 0.0
        %1708 = vmatpush2.msra.mxu0 0.0
        %1709 = vmatprep.subr.mxu0 0.0
        %1710 = vmatpush2.msra.mxu0 0.0
        %1711 = vmatprep.subr.mxu0 0.0
        %1712 = vmatpush2.msra.mxu0 0.0
        %1713 = vmatprep.subr.mxu0 0.0
        %1714 = vmatpush2.msra.mxu0 0.0
        %1715 = vmatprep.subr.mxu0 0.0
        %1716 = vmatpush2.msra.mxu0 0.0
        %1717 = vmatprep.subr.mxu0 0.0
        %1718 = vmatpush2.msra.mxu0 0.0
        %1719 = vmatprep.mubr.f32.mxu0 0.0
        %1720 = vmatmul.mubr.f32.gmra.mxu0 %v1582
        %v1721 = vpop.f32.mrf.mxu0
        %v1722 = vadd.f32 0.0, %v1721
        %v1723 = vpop.f32.mrf.mxu0
        %1724 = vdwg.mxu0
        %v1725 = vadd.f32 %v1221, %v1651
        %v1726 = vadd.f32 %v1222, %v1653
        %v1727 = vadd.f32 %v1223, %v1722
        %1728 = vrot.lane.b32.xlu0 %v210, 44
        %v1729 = vpop.permute.xlu0 %1728
        %v1730 = vsel %vm317, %v1729, 0
        %1732 = vmatprep.subr.mxu0 0.0
        %1733 = vmatpush1.msra.mxu0 0.0
        %1734 = vmatprep.subr.mxu0 0.0
        %1735 = vmatpush1.msra.mxu0 0.0
        %1736 = vmatprep.subr.mxu0 0.0
        %1737 = vmatpush1.msra.mxu0 0.0
        %1738 = vmatprep.subr.mxu0 0.0
        %1739 = vmatpush1.msra.mxu0 0.0
        %1740 = vmatprep.subr.mxu0 0.0
        %1741 = vmatpush1.msra.mxu0 0.0
        %1742 = vmatprep.subr.mxu0 0.0
        %1743 = vmatpush1.msra.mxu0 0.0
        %1744 = vmatprep.subr.mxu0 0.0
        %1745 = vmatpush1.msra.mxu0 0.0
        %1746 = vmatprep.subr.mxu0 0.0
        %1747 = vmatpush1.msra.mxu0 0.0
        %1748 = vmatprep.subr.mxu0 0.0
        %1749 = vmatpush1.msra.mxu0 0.0
        %1750 = vmatprep.subr.mxu0 0.0
        %1751 = vmatpush1.msra.mxu0 0.0
        %1752 = vmatprep.subr.mxu0 0.0
        %1753 = vmatpush1.msra.mxu0 0.0
        %1754 = vmatprep.subr.mxu0 0.0
        %1755 = vmatpush1.msra.mxu0 0.0
        %1756 = vmatprep.subr.mxu0 %v1432
        %1757 = vmatpush1.msra.mxu0 %v1430
        %1758 = vmatprep.subr.mxu0 %v1414
        %1759 = vmatpush1.msra.mxu0 %v1413
        %1760 = vmatprep.subr.mxu0 %v1411
        %1761 = vmatpush1.msra.mxu0 %v1410
        %1762 = vmatprep.subr.mxu0 %v1408
        %1763 = vmatpush1.msra.mxu0 %v1407
        %1764 = vmatprep.subr.mxu0 0.0
        %1765 = vmatpush2.msra.mxu0 0.0
        %1766 = vmatprep.subr.mxu0 0.0
        %1767 = vmatpush2.msra.mxu0 0.0
        %1768 = vmatprep.subr.mxu0 0.0
        %1769 = vmatpush2.msra.mxu0 0.0
        %1770 = vmatprep.subr.mxu0 0.0
        %1771 = vmatpush2.msra.mxu0 0.0
        %1772 = vmatprep.subr.mxu0 0.0
        %1773 = vmatpush2.msra.mxu0 0.0
        %1774 = vmatprep.subr.mxu0 0.0
        %1775 = vmatpush2.msra.mxu0 0.0
        %1776 = vmatprep.subr.mxu0 0.0
        %1777 = vmatpush2.msra.mxu0 0.0
        %1778 = vmatprep.subr.mxu0 0.0
        %1779 = vmatpush2.msra.mxu0 0.0
        %1780 = vmatprep.subr.mxu0 0.0
        %1781 = vmatpush2.msra.mxu0 0.0
        %1782 = vmatprep.subr.mxu0 0.0
        %1783 = vmatpush2.msra.mxu0 0.0
        %1784 = vmatprep.subr.mxu0 0.0
        %1785 = vmatpush2.msra.mxu0 0.0
        %1786 = vmatprep.subr.mxu0 0.0
        %1787 = vmatpush2.msra.mxu0 0.0
        %1788 = vmatprep.subr.mxu0 0.0
        %1789 = vmatpush2.msra.mxu0 0.0
        %1790 = vmatprep.subr.mxu0 0.0
        %1791 = vmatpush2.msra.mxu0 0.0
        %1792 = vmatprep.subr.mxu0 0.0
        %1793 = vmatpush2.msra.mxu0 0.0
        %1794 = vmatprep.subr.mxu0 0.0
        %1795 = vmatpush2.msra.mxu0 0.0
        %1796 = vmatprep.mubr.f32.mxu0 0.0
        %1797 = vmatmul.mubr.f32.gmra.mxu0 %v1730
        %v1798 = vpop.f32.mrf.mxu0
        %v1799 = vadd.f32 0.0, %v1798
        %v1800 = vpop.f32.mrf.mxu0
        %v1801 = vadd.f32 0.0, %v1800
        %1802 = vdwg.mxu0
        %1803 = vmatprep.subr.mxu0 0.0
        %1804 = vmatpush1.msra.mxu0 0.0
        %1805 = vmatprep.subr.mxu0 0.0
        %1806 = vmatpush1.msra.mxu0 0.0
        %1807 = vmatprep.subr.mxu0 0.0
        %1808 = vmatpush1.msra.mxu0 0.0
        %1809 = vmatprep.subr.mxu0 0.0
        %1810 = vmatpush1.msra.mxu0 0.0
        %1811 = vmatprep.subr.mxu0 0.0
        %1812 = vmatpush1.msra.mxu0 0.0
        %1813 = vmatprep.subr.mxu0 0.0
        %1814 = vmatpush1.msra.mxu0 0.0
        %1815 = vmatprep.subr.mxu0 0.0
        %1816 = vmatpush1.msra.mxu0 0.0
        %1817 = vmatprep.subr.mxu0 0.0
        %1818 = vmatpush1.msra.mxu0 0.0
        %1819 = vmatprep.subr.mxu0 0.0
        %1820 = vmatpush1.msra.mxu0 0.0
        %1821 = vmatprep.subr.mxu0 0.0
        %1822 = vmatpush1.msra.mxu0 0.0
        %1823 = vmatprep.subr.mxu0 0.0
        %1824 = vmatpush1.msra.mxu0 0.0
        %1825 = vmatprep.subr.mxu0 0.0
        %1826 = vmatpush1.msra.mxu0 0.0
        %1827 = vmatprep.subr.mxu0 0.0
        %1828 = vmatpush1.msra.mxu0 %v1434
        %1829 = vmatprep.subr.mxu0 0.0
        %1830 = vmatpush1.msra.mxu0 %v1415
        %1831 = vmatprep.subr.mxu0 0.0
        %1832 = vmatpush1.msra.mxu0 %v1412
        %1833 = vmatprep.subr.mxu0 0.0
        %1834 = vmatpush1.msra.mxu0 %v1409
        %1835 = vmatprep.subr.mxu0 0.0
        %1836 = vmatpush2.msra.mxu0 0.0
        %1837 = vmatprep.subr.mxu0 0.0
        %1838 = vmatpush2.msra.mxu0 0.0
        %1839 = vmatprep.subr.mxu0 0.0
        %1840 = vmatpush2.msra.mxu0 0.0
        %1841 = vmatprep.subr.mxu0 0.0
        %1842 = vmatpush2.msra.mxu0 0.0
        %1843 = vmatprep.subr.mxu0 0.0
        %1844 = vmatpush2.msra.mxu0 0.0
        %1845 = vmatprep.subr.mxu0 0.0
        %1846 = vmatpush2.msra.mxu0 0.0
        %1847 = vmatprep.subr.mxu0 0.0
        %1848 = vmatpush2.msra.mxu0 0.0
        %1849 = vmatprep.subr.mxu0 0.0
        %1850 = vmatpush2.msra.mxu0 0.0
        %1851 = vmatprep.subr.mxu0 0.0
        %1852 = vmatpush2.msra.mxu0 0.0
        %1853 = vmatprep.subr.mxu0 0.0
        %1854 = vmatpush2.msra.mxu0 0.0
        %1855 = vmatprep.subr.mxu0 0.0
        %1856 = vmatpush2.msra.mxu0 0.0
        %1857 = vmatprep.subr.mxu0 0.0
        %1858 = vmatpush2.msra.mxu0 0.0
        %1859 = vmatprep.subr.mxu0 0.0
        %1860 = vmatpush2.msra.mxu0 0.0
        %1861 = vmatprep.subr.mxu0 0.0
        %1862 = vmatpush2.msra.mxu0 0.0
        %1863 = vmatprep.subr.mxu0 0.0
        %1864 = vmatpush2.msra.mxu0 0.0
        %1865 = vmatprep.subr.mxu0 0.0
        %1866 = vmatpush2.msra.mxu0 0.0
        %1867 = vmatprep.mubr.f32.mxu0 0.0
        %1868 = vmatmul.mubr.f32.gmra.mxu0 %v1730
        %v1869 = vpop.f32.mrf.mxu0
        %v1870 = vadd.f32 0.0, %v1869
        %v1871 = vpop.f32.mrf.mxu0
        %1872 = vdwg.mxu0
        %v1873 = vadd.f32 %v1369, %v1799
        %v1874 = vadd.f32 %v1370, %v1801
        %v1875 = vadd.f32 %v1371, %v1870
        %1877 = vrot.lane.b32.xlu0 %v204, 16
        %v1878 = vpop.permute.xlu0 %1877
        %1879 = vrot.lane.b32.xlu0 %v205, 16
        %v1880 = vpop.permute.xlu0 %1879
        %vm1881 = vcmask 130048
        %v1882 = vsel %vm1881, %v1878, %v1880
        %1883 = vrot.lane.b32.xlu0 %v308, 40
        %v1884 = vpop.permute.xlu0 %1883
        %1885 = vrot.lane.b32.xlu0 %v309, 40
        %v1886 = vpop.permute.xlu0 %1885
        %1887 = vrot.lane.b32.xlu0 %v855, 40
        %v1888 = vpop.permute.xlu0 %1887
        %1889 = vrot.lane.b32.xlu0 %v856, 40
        %v1890 = vpop.permute.xlu0 %1889
        %1891 = vrot.lane.b32.xlu0 %v311, 40
        %v1892 = vpop.permute.xlu0 %1891
        %1893 = vrot.lane.b32.xlu0 %v312, 40
        %v1894 = vpop.permute.xlu0 %1893
        %1895 = vrot.lane.b32.xlu0 %v857, 40
        %v1896 = vpop.permute.xlu0 %1895
        %1897 = vrot.lane.b32.xlu0 %v858, 40
        %v1898 = vpop.permute.xlu0 %1897
        %1899 = vrot.lane.b32.xlu0 %v314, 40
        %v1900 = vpop.permute.xlu0 %1899
        %1901 = vrot.lane.b32.xlu0 %v315, 40
        %v1902 = vpop.permute.xlu0 %1901
        %1903 = vrot.lane.b32.xlu0 %v859, 40
        %v1904 = vpop.permute.xlu0 %1903
        %1905 = vrot.lane.b32.xlu0 %v860, 40
        %v1906 = vpop.permute.xlu0 %1905
        %1907 = vrot.lane.b32.xlu0 %v305, 40
        %v1908 = vpop.permute.xlu0 %1907
        %1909 = vrot.lane.b32.xlu0 %v306, 40
        %v1910 = vpop.permute.xlu0 %1909
        %1911 = vrot.lane.b32.xlu0 %v854, 40
        %v1912 = vpop.permute.xlu0 %1911
        %1913 = vrot.lane.b32.xlu0 %v853, 40
        %v1914 = vpop.permute.xlu0 %1913
        %vm1915 = vcmask 326656
        %v1916 = vsel %vm1915, %v1884, %v1886
        %v1917 = vsel %vm1915, %v1886, %v1888
        %v1918 = vsel %vm1915, %v1888, %v1890
        %v1919 = vsel %vm1915, %v1892, %v1894
        %v1920 = vsel %vm1915, %v1894, %v1896
        %v1921 = vsel %vm1915, %v1896, %v1898
        %v1922 = vsel %vm1915, %v1900, %v1902
        %v1923 = vsel %vm1915, %v1902, %v1904
        %v1924 = vsel %vm1915, %v1904, %v1906
        %v1925 = vsel %vm1915, %v1908, %v1910
        %v1926 = vsel %vm1915, %v1910, %v1912
        %v1927 = vsel %vm1915, %v1912, %v1914
        %v1937 = vsel %vm317, %v1882, 0
        %v1939 = vsel %vm307, %v1925, 0
        %v1941 = vsel %vm307, %v1926, 0
        %v1943 = vsel %vm307, %v1927, 0
        %1945 = vmatprep.subr.mxu0 0.0
        %1946 = vmatpush1.msra.mxu0 0.0
        %1947 = vmatprep.subr.mxu0 0.0
        %1948 = vmatpush1.msra.mxu0 0.0
        %1949 = vmatprep.subr.mxu0 0.0
        %1950 = vmatpush1.msra.mxu0 0.0
        %1951 = vmatprep.subr.mxu0 0.0
        %1952 = vmatpush1.msra.mxu0 0.0
        %1953 = vmatprep.subr.mxu0 0.0
        %1954 = vmatpush1.msra.mxu0 0.0
        %1955 = vmatprep.subr.mxu0 0.0
        %1956 = vmatpush1.msra.mxu0 0.0
        %1957 = vmatprep.subr.mxu0 0.0
        %1958 = vmatpush1.msra.mxu0 0.0
        %1959 = vmatprep.subr.mxu0 0.0
        %1960 = vmatpush1.msra.mxu0 0.0
        %1961 = vmatprep.subr.mxu0 0.0
        %1962 = vmatpush1.msra.mxu0 0.0
        %1963 = vmatprep.subr.mxu0 0.0
        %1964 = vmatpush1.msra.mxu0 0.0
        %1965 = vmatprep.subr.mxu0 0.0
        %1966 = vmatpush1.msra.mxu0 0.0
        %1967 = vmatprep.subr.mxu0 0.0
        %1968 = vmatpush1.msra.mxu0 0.0
        %1969 = vmatprep.subr.mxu0 %v1941
        %1970 = vmatpush1.msra.mxu0 %v1939
        %1971 = vmatprep.subr.mxu0 %v1923
        %1972 = vmatpush1.msra.mxu0 %v1922
        %1973 = vmatprep.subr.mxu0 %v1920
        %1974 = vmatpush1.msra.mxu0 %v1919
        %1975 = vmatprep.subr.mxu0 %v1917
        %1976 = vmatpush1.msra.mxu0 %v1916
        %1977 = vmatprep.subr.mxu0 0.0
        %1978 = vmatpush2.msra.mxu0 0.0
        %1979 = vmatprep.subr.mxu0 0.0
        %1980 = vmatpush2.msra.mxu0 0.0
        %1981 = vmatprep.subr.mxu0 0.0
        %1982 = vmatpush2.msra.mxu0 0.0
        %1983 = vmatprep.subr.mxu0 0.0
        %1984 = vmatpush2.msra.mxu0 0.0
        %1985 = vmatprep.subr.mxu0 0.0
        %1986 = vmatpush2.msra.mxu0 0.0
        %1987 = vmatprep.subr.mxu0 0.0
        %1988 = vmatpush2.msra.mxu0 0.0
        %1989 = vmatprep.subr.mxu0 0.0
        %1990 = vmatpush2.msra.mxu0 0.0
        %1991 = vmatprep.subr.mxu0 0.0
        %1992 = vmatpush2.msra.mxu0 0.0
        %1993 = vmatprep.subr.mxu0 0.0
        %1994 = vmatpush2.msra.mxu0 0.0
        %1995 = vmatprep.subr.mxu0 0.0
        %1996 = vmatpush2.msra.mxu0 0.0
        %1997 = vmatprep.subr.mxu0 0.0
        %1998 = vmatpush2.msra.mxu0 0.0
        %1999 = vmatprep.subr.mxu0 0.0
        %2000 = vmatpush2.msra.mxu0 0.0
        %2001 = vmatprep.subr.mxu0 0.0
        %2002 = vmatpush2.msra.mxu0 0.0
        %2003 = vmatprep.subr.mxu0 0.0
        %2004 = vmatpush2.msra.mxu0 0.0
        %2005 = vmatprep.subr.mxu0 0.0
        %2006 = vmatpush2.msra.mxu0 0.0
        %2007 = vmatprep.subr.mxu0 0.0
        %2008 = vmatpush2.msra.mxu0 0.0
        %2009 = vmatprep.mubr.f32.mxu0 0.0
        %2010 = vmatmul.mubr.f32.gmra.mxu0 %v1937
        %v2011 = vpop.f32.mrf.mxu0
        %v2012 = vadd.f32 0.0, %v2011
        %v2013 = vpop.f32.mrf.mxu0
        %v2014 = vadd.f32 0.0, %v2013
        %2015 = vdwg.mxu0
        %2016 = vmatprep.subr.mxu0 0.0
        %2017 = vmatpush1.msra.mxu0 0.0
        %2018 = vmatprep.subr.mxu0 0.0
        %2019 = vmatpush1.msra.mxu0 0.0
        %2020 = vmatprep.subr.mxu0 0.0
        %2021 = vmatpush1.msra.mxu0 0.0
        %2022 = vmatprep.subr.mxu0 0.0
        %2023 = vmatpush1.msra.mxu0 0.0
        %2024 = vmatprep.subr.mxu0 0.0
        %2025 = vmatpush1.msra.mxu0 0.0
        %2026 = vmatprep.subr.mxu0 0.0
        %2027 = vmatpush1.msra.mxu0 0.0
        %2028 = vmatprep.subr.mxu0 0.0
        %2029 = vmatpush1.msra.mxu0 0.0
        %2030 = vmatprep.subr.mxu0 0.0
        %2031 = vmatpush1.msra.mxu0 0.0
        %2032 = vmatprep.subr.mxu0 0.0
        %2033 = vmatpush1.msra.mxu0 0.0
        %2034 = vmatprep.subr.mxu0 0.0
        %2035 = vmatpush1.msra.mxu0 0.0
        %2036 = vmatprep.subr.mxu0 0.0
        %2037 = vmatpush1.msra.mxu0 0.0
        %2038 = vmatprep.subr.mxu0 0.0
        %2039 = vmatpush1.msra.mxu0 0.0
        %2040 = vmatprep.subr.mxu0 0.0
        %2041 = vmatpush1.msra.mxu0 %v1943
        %2042 = vmatprep.subr.mxu0 0.0
        %2043 = vmatpush1.msra.mxu0 %v1924
        %2044 = vmatprep.subr.mxu0 0.0
        %2045 = vmatpush1.msra.mxu0 %v1921
        %2046 = vmatprep.subr.mxu0 0.0
        %2047 = vmatpush1.msra.mxu0 %v1918
        %2048 = vmatprep.subr.mxu0 0.0
        %2049 = vmatpush2.msra.mxu0 0.0
        %2050 = vmatprep.subr.mxu0 0.0
        %2051 = vmatpush2.msra.mxu0 0.0
        %2052 = vmatprep.subr.mxu0 0.0
        %2053 = vmatpush2.msra.mxu0 0.0
        %2054 = vmatprep.subr.mxu0 0.0
        %2055 = vmatpush2.msra.mxu0 0.0
        %2056 = vmatprep.subr.mxu0 0.0
        %2057 = vmatpush2.msra.mxu0 0.0
        %2058 = vmatprep.subr.mxu0 0.0
        %2059 = vmatpush2.msra.mxu0 0.0
        %2060 = vmatprep.subr.mxu0 0.0
        %2061 = vmatpush2.msra.mxu0 0.0
        %2062 = vmatprep.subr.mxu0 0.0
        %2063 = vmatpush2.msra.mxu0 0.0
        %2064 = vmatprep.subr.mxu0 0.0
        %2065 = vmatpush2.msra.mxu0 0.0
        %2066 = vmatprep.subr.mxu0 0.0
        %2067 = vmatpush2.msra.mxu0 0.0
        %2068 = vmatprep.subr.mxu0 0.0
        %2069 = vmatpush2.msra.mxu0 0.0
        %2070 = vmatprep.subr.mxu0 0.0
        %2071 = vmatpush2.msra.mxu0 0.0
        %2072 = vmatprep.subr.mxu0 0.0
        %2073 = vmatpush2.msra.mxu0 0.0
        %2074 = vmatprep.subr.mxu0 0.0
        %2075 = vmatpush2.msra.mxu0 0.0
        %2076 = vmatprep.subr.mxu0 0.0
        %2077 = vmatpush2.msra.mxu0 0.0
        %2078 = vmatprep.subr.mxu0 0.0
        %2079 = vmatpush2.msra.mxu0 0.0
        %2080 = vmatprep.mubr.f32.mxu0 0.0
        %2081 = vmatmul.mubr.f32.gmra.mxu0 %v1937
        %v2082 = vpop.f32.mrf.mxu0
        %v2083 = vadd.f32 0.0, %v2082
        %v2084 = vpop.f32.mrf.mxu0
        %2085 = vdwg.mxu0
        %v2086 = vadd.f32 %v1577, %v2012
        %v2087 = vadd.f32 %v1578, %v2014
        %v2088 = vadd.f32 %v1579, %v2083
        %2090 = vrot.lane.b32.xlu0 %v207, 16
        %v2091 = vpop.permute.xlu0 %2090
        %2092 = vrot.lane.b32.xlu0 %v208, 16
        %v2093 = vpop.permute.xlu0 %2092
        %v2094 = vsel %vm1881, %v2091, %v2093
        %v2095 = vsel %vm317, %v2094, 0
        %2097 = vmatprep.subr.mxu0 0.0
        %2098 = vmatpush1.msra.mxu0 0.0
        %2099 = vmatprep.subr.mxu0 0.0
        %2100 = vmatpush1.msra.mxu0 0.0
        %2101 = vmatprep.subr.mxu0 0.0
        %2102 = vmatpush1.msra.mxu0 0.0
        %2103 = vmatprep.subr.mxu0 0.0
        %2104 = vmatpush1.msra.mxu0 0.0
        %2105 = vmatprep.subr.mxu0 0.0
        %2106 = vmatpush1.msra.mxu0 0.0
        %2107 = vmatprep.subr.mxu0 0.0
        %2108 = vmatpush1.msra.mxu0 0.0
        %2109 = vmatprep.subr.mxu0 0.0
        %2110 = vmatpush1.msra.mxu0 0.0
        %2111 = vmatprep.subr.mxu0 0.0
        %2112 = vmatpush1.msra.mxu0 0.0
        %2113 = vmatprep.subr.mxu0 0.0
        %2114 = vmatpush1.msra.mxu0 0.0
        %2115 = vmatprep.subr.mxu0 0.0
        %2116 = vmatpush1.msra.mxu0 0.0
        %2117 = vmatprep.subr.mxu0 0.0
        %2118 = vmatpush1.msra.mxu0 0.0
        %2119 = vmatprep.subr.mxu0 0.0
        %2120 = vmatpush1.msra.mxu0 0.0
        %2121 = vmatprep.subr.mxu0 %v1941
        %2122 = vmatpush1.msra.mxu0 %v1939
        %2123 = vmatprep.subr.mxu0 %v1923
        %2124 = vmatpush1.msra.mxu0 %v1922
        %2125 = vmatprep.subr.mxu0 %v1920
        %2126 = vmatpush1.msra.mxu0 %v1919
        %2127 = vmatprep.subr.mxu0 %v1917
        %2128 = vmatpush1.msra.mxu0 %v1916
        %2129 = vmatprep.subr.mxu0 0.0
        %2130 = vmatpush2.msra.mxu0 0.0
        %2131 = vmatprep.subr.mxu0 0.0
        %2132 = vmatpush2.msra.mxu0 0.0
        %2133 = vmatprep.subr.mxu0 0.0
        %2134 = vmatpush2.msra.mxu0 0.0
        %2135 = vmatprep.subr.mxu0 0.0
        %2136 = vmatpush2.msra.mxu0 0.0
        %2137 = vmatprep.subr.mxu0 0.0
        %2138 = vmatpush2.msra.mxu0 0.0
        %2139 = vmatprep.subr.mxu0 0.0
        %2140 = vmatpush2.msra.mxu0 0.0
        %2141 = vmatprep.subr.mxu0 0.0
        %2142 = vmatpush2.msra.mxu0 0.0
        %2143 = vmatprep.subr.mxu0 0.0
        %2144 = vmatpush2.msra.mxu0 0.0
        %2145 = vmatprep.subr.mxu0 0.0
        %2146 = vmatpush2.msra.mxu0 0.0
        %2147 = vmatprep.subr.mxu0 0.0
        %2148 = vmatpush2.msra.mxu0 0.0
        %2149 = vmatprep.subr.mxu0 0.0
        %2150 = vmatpush2.msra.mxu0 0.0
        %2151 = vmatprep.subr.mxu0 0.0
        %2152 = vmatpush2.msra.mxu0 0.0
        %2153 = vmatprep.subr.mxu0 0.0
        %2154 = vmatpush2.msra.mxu0 0.0
        %2155 = vmatprep.subr.mxu0 0.0
        %2156 = vmatpush2.msra.mxu0 0.0
        %2157 = vmatprep.subr.mxu0 0.0
        %2158 = vmatpush2.msra.mxu0 0.0
        %2159 = vmatprep.subr.mxu0 0.0
        %2160 = vmatpush2.msra.mxu0 0.0
        %2161 = vmatprep.mubr.f32.mxu0 0.0
        %2162 = vmatmul.mubr.f32.gmra.mxu0 %v2095
        %v2163 = vpop.f32.mrf.mxu0
        %v2164 = vadd.f32 0.0, %v2163
        %v2165 = vpop.f32.mrf.mxu0
        %v2166 = vadd.f32 0.0, %v2165
        %2167 = vdwg.mxu0
        %2168 = vmatprep.subr.mxu0 0.0
        %2169 = vmatpush1.msra.mxu0 0.0
        %2170 = vmatprep.subr.mxu0 0.0
        %2171 = vmatpush1.msra.mxu0 0.0
        %2172 = vmatprep.subr.mxu0 0.0
        %2173 = vmatpush1.msra.mxu0 0.0
        %2174 = vmatprep.subr.mxu0 0.0
        %2175 = vmatpush1.msra.mxu0 0.0
        %2176 = vmatprep.subr.mxu0 0.0
        %2177 = vmatpush1.msra.mxu0 0.0
        %2178 = vmatprep.subr.mxu0 0.0
        %2179 = vmatpush1.msra.mxu0 0.0
        %2180 = vmatprep.subr.mxu0 0.0
        %2181 = vmatpush1.msra.mxu0 0.0
        %2182 = vmatprep.subr.mxu0 0.0
        %2183 = vmatpush1.msra.mxu0 0.0
        %2184 = vmatprep.subr.mxu0 0.0
        %2185 = vmatpush1.msra.mxu0 0.0
        %2186 = vmatprep.subr.mxu0 0.0
        %2187 = vmatpush1.msra.mxu0 0.0
        %2188 = vmatprep.subr.mxu0 0.0
        %2189 = vmatpush1.msra.mxu0 0.0
        %2190 = vmatprep.subr.mxu0 0.0
        %2191 = vmatpush1.msra.mxu0 0.0
        %2192 = vmatprep.subr.mxu0 0.0
        %2193 = vmatpush1.msra.mxu0 %v1943
        %2194 = vmatprep.subr.mxu0 0.0
        %2195 = vmatpush1.msra.mxu0 %v1924
        %2196 = vmatprep.subr.mxu0 0.0
        %2197 = vmatpush1.msra.mxu0 %v1921
        %2198 = vmatprep.subr.mxu0 0.0
        %2199 = vmatpush1.msra.mxu0 %v1918
        %2200 = vmatprep.subr.mxu0 0.0
        %2201 = vmatpush2.msra.mxu0 0.0
        %2202 = vmatprep.subr.mxu0 0.0
        %2203 = vmatpush2.msra.mxu0 0.0
        %2204 = vmatprep.subr.mxu0 0.0
        %2205 = vmatpush2.msra.mxu0 0.0
        %2206 = vmatprep.subr.mxu0 0.0
        %2207 = vmatpush2.msra.mxu0 0.0
        %2208 = vmatprep.subr.mxu0 0.0
        %2209 = vmatpush2.msra.mxu0 0.0
        %2210 = vmatprep.subr.mxu0 0.0
        %2211 = vmatpush2.msra.mxu0 0.0
        %2212 = vmatprep.subr.mxu0 0.0
        %2213 = vmatpush2.msra.mxu0 0.0
        %2214 = vmatprep.subr.mxu0 0.0
        %2215 = vmatpush2.msra.mxu0 0.0
        %2216 = vmatprep.subr.mxu0 0.0
        %2217 = vmatpush2.msra.mxu0 0.0
        %2218 = vmatprep.subr.mxu0 0.0
        %2219 = vmatpush2.msra.mxu0 0.0
        %2220 = vmatprep.subr.mxu0 0.0
        %2221 = vmatpush2.msra.mxu0 0.0
        %2222 = vmatprep.subr.mxu0 0.0
        %2223 = vmatpush2.msra.mxu0 0.0
        %2224 = vmatprep.subr.mxu0 0.0
        %2225 = vmatpush2.msra.mxu0 0.0
        %2226 = vmatprep.subr.mxu0 0.0
        %2227 = vmatpush2.msra.mxu0 0.0
        %2228 = vmatprep.subr.mxu0 0.0
        %2229 = vmatpush2.msra.mxu0 0.0
        %2230 = vmatprep.subr.mxu0 0.0
        %2231 = vmatpush2.msra.mxu0 0.0
        %2232 = vmatprep.mubr.f32.mxu0 0.0
        %2233 = vmatmul.mubr.f32.gmra.mxu0 %v2095
        %v2234 = vpop.f32.mrf.mxu0
        %v2235 = vadd.f32 0.0, %v2234
        %v2236 = vpop.f32.mrf.mxu0
        %2237 = vdwg.mxu0
        %v2238 = vadd.f32 %v1725, %v2164
        %v2239 = vadd.f32 %v1726, %v2166
        %v2240 = vadd.f32 %v1727, %v2235
        %2242 = vrot.lane.b32.xlu0 %v210, 16
        %v2243 = vpop.permute.xlu0 %2242
        %2244 = vrot.lane.b32.xlu0 %v211, 16
        %v2245 = vpop.permute.xlu0 %2244
        %v2246 = vsel %vm1881, %v2243, %v2245
        %v2247 = vsel %vm317, %v2246, 0
        %2249 = vmatprep.subr.mxu0 0.0
        %2250 = vmatpush1.msra.mxu0 0.0
        %2251 = vmatprep.subr.mxu0 0.0
        %2252 = vmatpush1.msra.mxu0 0.0
        %2253 = vmatprep.subr.mxu0 0.0
        %2254 = vmatpush1.msra.mxu0 0.0
        %2255 = vmatprep.subr.mxu0 0.0
        %2256 = vmatpush1.msra.mxu0 0.0
        %2257 = vmatprep.subr.mxu0 0.0
        %2258 = vmatpush1.msra.mxu0 0.0
        %2259 = vmatprep.subr.mxu0 0.0
        %2260 = vmatpush1.msra.mxu0 0.0
        %2261 = vmatprep.subr.mxu0 0.0
        %2262 = vmatpush1.msra.mxu0 0.0
        %2263 = vmatprep.subr.mxu0 0.0
        %2264 = vmatpush1.msra.mxu0 0.0
        %2265 = vmatprep.subr.mxu0 0.0
        %2266 = vmatpush1.msra.mxu0 0.0
        %2267 = vmatprep.subr.mxu0 0.0
        %2268 = vmatpush1.msra.mxu0 0.0
        %2269 = vmatprep.subr.mxu0 0.0
        %2270 = vmatpush1.msra.mxu0 0.0
        %2271 = vmatprep.subr.mxu0 0.0
        %2272 = vmatpush1.msra.mxu0 0.0
        %2273 = vmatprep.subr.mxu0 %v1941
        %2274 = vmatpush1.msra.mxu0 %v1939
        %2275 = vmatprep.subr.mxu0 %v1923
        %2276 = vmatpush1.msra.mxu0 %v1922
        %2277 = vmatprep.subr.mxu0 %v1920
        %2278 = vmatpush1.msra.mxu0 %v1919
        %2279 = vmatprep.subr.mxu0 %v1917
        %2280 = vmatpush1.msra.mxu0 %v1916
        %2281 = vmatprep.subr.mxu0 0.0
        %2282 = vmatpush2.msra.mxu0 0.0
        %2283 = vmatprep.subr.mxu0 0.0
        %2284 = vmatpush2.msra.mxu0 0.0
        %2285 = vmatprep.subr.mxu0 0.0
        %2286 = vmatpush2.msra.mxu0 0.0
        %2287 = vmatprep.subr.mxu0 0.0
        %2288 = vmatpush2.msra.mxu0 0.0
        %2289 = vmatprep.subr.mxu0 0.0
        %2290 = vmatpush2.msra.mxu0 0.0
        %2291 = vmatprep.subr.mxu0 0.0
        %2292 = vmatpush2.msra.mxu0 0.0
        %2293 = vmatprep.subr.mxu0 0.0
        %2294 = vmatpush2.msra.mxu0 0.0
        %2295 = vmatprep.subr.mxu0 0.0
        %2296 = vmatpush2.msra.mxu0 0.0
        %2297 = vmatprep.subr.mxu0 0.0
        %2298 = vmatpush2.msra.mxu0 0.0
        %2299 = vmatprep.subr.mxu0 0.0
        %2300 = vmatpush2.msra.mxu0 0.0
        %2301 = vmatprep.subr.mxu0 0.0
        %2302 = vmatpush2.msra.mxu0 0.0
        %2303 = vmatprep.subr.mxu0 0.0
        %2304 = vmatpush2.msra.mxu0 0.0
        %2305 = vmatprep.subr.mxu0 0.0
        %2306 = vmatpush2.msra.mxu0 0.0
        %2307 = vmatprep.subr.mxu0 0.0
        %2308 = vmatpush2.msra.mxu0 0.0
        %2309 = vmatprep.subr.mxu0 0.0
        %2310 = vmatpush2.msra.mxu0 0.0
        %2311 = vmatprep.subr.mxu0 0.0
        %2312 = vmatpush2.msra.mxu0 0.0
        %2313 = vmatprep.mubr.f32.mxu0 0.0
        %2314 = vmatmul.mubr.f32.gmra.mxu0 %v2247
        %v2315 = vpop.f32.mrf.mxu0
        %v2316 = vadd.f32 0.0, %v2315
        %v2317 = vpop.f32.mrf.mxu0
        %v2318 = vadd.f32 0.0, %v2317
        %2319 = vdwg.mxu0
        %2320 = vmatprep.subr.mxu0 0.0
        %2321 = vmatpush1.msra.mxu0 0.0
        %2322 = vmatprep.subr.mxu0 0.0
        %2323 = vmatpush1.msra.mxu0 0.0
        %2324 = vmatprep.subr.mxu0 0.0
        %2325 = vmatpush1.msra.mxu0 0.0
        %2326 = vmatprep.subr.mxu0 0.0
        %2327 = vmatpush1.msra.mxu0 0.0
        %2328 = vmatprep.subr.mxu0 0.0
        %2329 = vmatpush1.msra.mxu0 0.0
        %2330 = vmatprep.subr.mxu0 0.0
        %2331 = vmatpush1.msra.mxu0 0.0
        %2332 = vmatprep.subr.mxu0 0.0
        %2333 = vmatpush1.msra.mxu0 0.0
        %2334 = vmatprep.subr.mxu0 0.0
        %2335 = vmatpush1.msra.mxu0 0.0
        %2336 = vmatprep.subr.mxu0 0.0
        %2337 = vmatpush1.msra.mxu0 0.0
        %2338 = vmatprep.subr.mxu0 0.0
        %2339 = vmatpush1.msra.mxu0 0.0
        %2340 = vmatprep.subr.mxu0 0.0
        %2341 = vmatpush1.msra.mxu0 0.0
        %2342 = vmatprep.subr.mxu0 0.0
        %2343 = vmatpush1.msra.mxu0 0.0
        %2344 = vmatprep.subr.mxu0 0.0
        %2345 = vmatpush1.msra.mxu0 %v1943
        %2346 = vmatprep.subr.mxu0 0.0
        %2347 = vmatpush1.msra.mxu0 %v1924
        %2348 = vmatprep.subr.mxu0 0.0
        %2349 = vmatpush1.msra.mxu0 %v1921
        %2350 = vmatprep.subr.mxu0 0.0
        %2351 = vmatpush1.msra.mxu0 %v1918
        %2352 = vmatprep.subr.mxu0 0.0
        %2353 = vmatpush2.msra.mxu0 0.0
        %2354 = vmatprep.subr.mxu0 0.0
        %2355 = vmatpush2.msra.mxu0 0.0
        %2356 = vmatprep.subr.mxu0 0.0
        %2357 = vmatpush2.msra.mxu0 0.0
        %2358 = vmatprep.subr.mxu0 0.0
        %2359 = vmatpush2.msra.mxu0 0.0
        %2360 = vmatprep.subr.mxu0 0.0
        %2361 = vmatpush2.msra.mxu0 0.0
        %2362 = vmatprep.subr.mxu0 0.0
        %2363 = vmatpush2.msra.mxu0 0.0
        %2364 = vmatprep.subr.mxu0 0.0
        %2365 = vmatpush2.msra.mxu0 0.0
        %2366 = vmatprep.subr.mxu0 0.0
        %2367 = vmatpush2.msra.mxu0 0.0
        %2368 = vmatprep.subr.mxu0 0.0
        %2369 = vmatpush2.msra.mxu0 0.0
        %2370 = vmatprep.subr.mxu0 0.0
        %2371 = vmatpush2.msra.mxu0 0.0
        %2372 = vmatprep.subr.mxu0 0.0
        %2373 = vmatpush2.msra.mxu0 0.0
        %2374 = vmatprep.subr.mxu0 0.0
        %2375 = vmatpush2.msra.mxu0 0.0
        %2376 = vmatprep.subr.mxu0 0.0
        %2377 = vmatpush2.msra.mxu0 0.0
        %2378 = vmatprep.subr.mxu0 0.0
        %2379 = vmatpush2.msra.mxu0 0.0
        %2380 = vmatprep.subr.mxu0 0.0
        %2381 = vmatpush2.msra.mxu0 0.0
        %2382 = vmatprep.subr.mxu0 0.0
        %2383 = vmatpush2.msra.mxu0 0.0
        %2384 = vmatprep.mubr.f32.mxu0 0.0
        %2385 = vmatmul.mubr.f32.gmra.mxu0 %v2247
        %v2386 = vpop.f32.mrf.mxu0
        %v2387 = vadd.f32 0.0, %v2386
        %v2388 = vpop.f32.mrf.mxu0
        %2389 = vdwg.mxu0
        %v2390 = vadd.f32 %v1873, %v2316
        %v2391 = vadd.f32 %v1874, %v2318
        %v2392 = vadd.f32 %v1875, %v2387
        %2393 = vrot.lane.b32.xlu0 %v208, 116
        %v2394 = vpop.permute.xlu0 %2393
        %2395 = vrot.lane.b32.xlu0 %v308, 18
        %v2396 = vpop.permute.xlu0 %2395
        %2397 = vrot.lane.b32.xlu0 %v309, 18
        %v2398 = vpop.permute.xlu0 %2397
        %2399 = vrot.lane.b32.xlu0 %v855, 18
        %v2400 = vpop.permute.xlu0 %2399
        %2401 = vrot.lane.b32.xlu0 %v856, 18
        %v2402 = vpop.permute.xlu0 %2401
        %2403 = vrot.lane.b32.xlu0 %v311, 18
        %v2404 = vpop.permute.xlu0 %2403
        %2405 = vrot.lane.b32.xlu0 %v312, 18
        %v2406 = vpop.permute.xlu0 %2405
        %2407 = vrot.lane.b32.xlu0 %v857, 18
        %v2408 = vpop.permute.xlu0 %2407
        %2409 = vrot.lane.b32.xlu0 %v858, 18
        %v2410 = vpop.permute.xlu0 %2409
        %2411 = vrot.lane.b32.xlu0 %v314, 18
        %v2412 = vpop.permute.xlu0 %2411
        %2413 = vrot.lane.b32.xlu0 %v315, 18
        %v2414 = vpop.permute.xlu0 %2413
        %2415 = vrot.lane.b32.xlu0 %v859, 18
        %v2416 = vpop.permute.xlu0 %2415
        %2417 = vrot.lane.b32.xlu0 %v860, 18
        %v2418 = vpop.permute.xlu0 %2417
        %2419 = vrot.lane.b32.xlu0 %v305, 18
        %v2420 = vpop.permute.xlu0 %2419
        %2421 = vrot.lane.b32.xlu0 %v306, 18
        %v2422 = vpop.permute.xlu0 %2421
        %2423 = vrot.lane.b32.xlu0 %v854, 18
        %v2424 = vpop.permute.xlu0 %2423
        %2425 = vrot.lane.b32.xlu0 %v853, 18
        %v2426 = vpop.permute.xlu0 %2425
        %vm2427 = vcmask 146432
        %v2428 = vsel %vm2427, %v2396, %v2398
        %v2429 = vsel %vm2427, %v2398, %v2400
        %v2430 = vsel %vm2427, %v2400, %v2402
        %v2431 = vsel %vm2427, %v2404, %v2406
        %v2432 = vsel %vm2427, %v2406, %v2408
        %v2433 = vsel %vm2427, %v2408, %v2410
        %v2434 = vsel %vm2427, %v2412, %v2414
        %v2435 = vsel %vm2427, %v2414, %v2416
        %v2436 = vsel %vm2427, %v2416, %v2418
        %v2437 = vsel %vm2427, %v2420, %v2422
        %v2438 = vsel %vm2427, %v2422, %v2424
        %v2439 = vsel %vm2427, %v2424, %v2426
        %v2449 = vsel %vm317, %v2394, 0
        %v2451 = vsel %vm307, %v2437, 0
        %v2453 = vsel %vm307, %v2438, 0
        %v2455 = vsel %vm307, %v2439, 0
        %2457 = vmatprep.subr.mxu0 0.0
        %2458 = vmatpush1.msra.mxu0 0.0
        %2459 = vmatprep.subr.mxu0 0.0
        %2460 = vmatpush1.msra.mxu0 0.0
        %2461 = vmatprep.subr.mxu0 0.0
        %2462 = vmatpush1.msra.mxu0 0.0
        %2463 = vmatprep.subr.mxu0 0.0
        %2464 = vmatpush1.msra.mxu0 0.0
        %2465 = vmatprep.subr.mxu0 0.0
        %2466 = vmatpush1.msra.mxu0 0.0
        %2467 = vmatprep.subr.mxu0 0.0
        %2468 = vmatpush1.msra.mxu0 0.0
        %2469 = vmatprep.subr.mxu0 0.0
        %2470 = vmatpush1.msra.mxu0 0.0
        %2471 = vmatprep.subr.mxu0 0.0
        %2472 = vmatpush1.msra.mxu0 0.0
        %2473 = vmatprep.subr.mxu0 0.0
        %2474 = vmatpush1.msra.mxu0 0.0
        %2475 = vmatprep.subr.mxu0 0.0
        %2476 = vmatpush1.msra.mxu0 0.0
        %2477 = vmatprep.subr.mxu0 0.0
        %2478 = vmatpush1.msra.mxu0 0.0
        %2479 = vmatprep.subr.mxu0 0.0
        %2480 = vmatpush1.msra.mxu0 0.0
        %2481 = vmatprep.subr.mxu0 %v2453
        %2482 = vmatpush1.msra.mxu0 %v2451
        %2483 = vmatprep.subr.mxu0 %v2435
        %2484 = vmatpush1.msra.mxu0 %v2434
        %2485 = vmatprep.subr.mxu0 %v2432
        %2486 = vmatpush1.msra.mxu0 %v2431
        %2487 = vmatprep.subr.mxu0 %v2429
        %2488 = vmatpush1.msra.mxu0 %v2428
        %2489 = vmatprep.subr.mxu0 0.0
        %2490 = vmatpush2.msra.mxu0 0.0
        %2491 = vmatprep.subr.mxu0 0.0
        %2492 = vmatpush2.msra.mxu0 0.0
        %2493 = vmatprep.subr.mxu0 0.0
        %2494 = vmatpush2.msra.mxu0 0.0
        %2495 = vmatprep.subr.mxu0 0.0
        %2496 = vmatpush2.msra.mxu0 0.0
        %2497 = vmatprep.subr.mxu0 0.0
        %2498 = vmatpush2.msra.mxu0 0.0
        %2499 = vmatprep.subr.mxu0 0.0
        %2500 = vmatpush2.msra.mxu0 0.0
        %2501 = vmatprep.subr.mxu0 0.0
        %2502 = vmatpush2.msra.mxu0 0.0
        %2503 = vmatprep.subr.mxu0 0.0
        %2504 = vmatpush2.msra.mxu0 0.0
        %2505 = vmatprep.subr.mxu0 0.0
        %2506 = vmatpush2.msra.mxu0 0.0
        %2507 = vmatprep.subr.mxu0 0.0
        %2508 = vmatpush2.msra.mxu0 0.0
        %2509 = vmatprep.subr.mxu0 0.0
        %2510 = vmatpush2.msra.mxu0 0.0
        %2511 = vmatprep.subr.mxu0 0.0
        %2512 = vmatpush2.msra.mxu0 0.0
        %2513 = vmatprep.subr.mxu0 0.0
        %2514 = vmatpush2.msra.mxu0 0.0
        %2515 = vmatprep.subr.mxu0 0.0
        %2516 = vmatpush2.msra.mxu0 0.0
        %2517 = vmatprep.subr.mxu0 0.0
        %2518 = vmatpush2.msra.mxu0 0.0
        %2519 = vmatprep.subr.mxu0 0.0
        %2520 = vmatpush2.msra.mxu0 0.0
        %2521 = vmatprep.mubr.f32.mxu0 0.0
        %2522 = vmatmul.mubr.f32.gmra.mxu0 %v2449
        %v2523 = vpop.f32.mrf.mxu0
        %v2524 = vadd.f32 0.0, %v2523
        %v2525 = vpop.f32.mrf.mxu0
        %v2526 = vadd.f32 0.0, %v2525
        %2527 = vdwg.mxu0
        %2528 = vmatprep.subr.mxu0 0.0
        %2529 = vmatpush1.msra.mxu0 0.0
        %2530 = vmatprep.subr.mxu0 0.0
        %2531 = vmatpush1.msra.mxu0 0.0
        %2532 = vmatprep.subr.mxu0 0.0
        %2533 = vmatpush1.msra.mxu0 0.0
        %2534 = vmatprep.subr.mxu0 0.0
        %2535 = vmatpush1.msra.mxu0 0.0
        %2536 = vmatprep.subr.mxu0 0.0
        %2537 = vmatpush1.msra.mxu0 0.0
        %2538 = vmatprep.subr.mxu0 0.0
        %2539 = vmatpush1.msra.mxu0 0.0
        %2540 = vmatprep.subr.mxu0 0.0
        %2541 = vmatpush1.msra.mxu0 0.0
        %2542 = vmatprep.subr.mxu0 0.0
        %2543 = vmatpush1.msra.mxu0 0.0
        %2544 = vmatprep.subr.mxu0 0.0
        %2545 = vmatpush1.msra.mxu0 0.0
        %2546 = vmatprep.subr.mxu0 0.0
        %2547 = vmatpush1.msra.mxu0 0.0
        %2548 = vmatprep.subr.mxu0 0.0
        %2549 = vmatpush1.msra.mxu0 0.0
        %2550 = vmatprep.subr.mxu0 0.0
        %2551 = vmatpush1.msra.mxu0 0.0
        %2552 = vmatprep.subr.mxu0 0.0
        %2553 = vmatpush1.msra.mxu0 %v2455
        %2554 = vmatprep.subr.mxu0 0.0
        %2555 = vmatpush1.msra.mxu0 %v2436
        %2556 = vmatprep.subr.mxu0 0.0
        %2557 = vmatpush1.msra.mxu0 %v2433
        %2558 = vmatprep.subr.mxu0 0.0
        %2559 = vmatpush1.msra.mxu0 %v2430
        %2560 = vmatprep.subr.mxu0 0.0
        %2561 = vmatpush2.msra.mxu0 0.0
        %2562 = vmatprep.subr.mxu0 0.0
        %2563 = vmatpush2.msra.mxu0 0.0
        %2564 = vmatprep.subr.mxu0 0.0
        %2565 = vmatpush2.msra.mxu0 0.0
        %2566 = vmatprep.subr.mxu0 0.0
        %2567 = vmatpush2.msra.mxu0 0.0
        %2568 = vmatprep.subr.mxu0 0.0
        %2569 = vmatpush2.msra.mxu0 0.0
        %2570 = vmatprep.subr.mxu0 0.0
        %2571 = vmatpush2.msra.mxu0 0.0
        %2572 = vmatprep.subr.mxu0 0.0
        %2573 = vmatpush2.msra.mxu0 0.0
        %2574 = vmatprep.subr.mxu0 0.0
        %2575 = vmatpush2.msra.mxu0 0.0
        %2576 = vmatprep.subr.mxu0 0.0
        %2577 = vmatpush2.msra.mxu0 0.0
        %2578 = vmatprep.subr.mxu0 0.0
        %2579 = vmatpush2.msra.mxu0 0.0
        %2580 = vmatprep.subr.mxu0 0.0
        %2581 = vmatpush2.msra.mxu0 0.0
        %2582 = vmatprep.subr.mxu0 0.0
        %2583 = vmatpush2.msra.mxu0 0.0
        %2584 = vmatprep.subr.mxu0 0.0
        %2585 = vmatpush2.msra.mxu0 0.0
        %2586 = vmatprep.subr.mxu0 0.0
        %2587 = vmatpush2.msra.mxu0 0.0
        %2588 = vmatprep.subr.mxu0 0.0
        %2589 = vmatpush2.msra.mxu0 0.0
        %2590 = vmatprep.subr.mxu0 0.0
        %2591 = vmatpush2.msra.mxu0 0.0
        %2592 = vmatprep.mubr.f32.mxu0 0.0
        %2593 = vmatmul.mubr.f32.gmra.mxu0 %v2449
        %v2594 = vpop.f32.mrf.mxu0
        %v2595 = vadd.f32 0.0, %v2594
        %v2596 = vpop.f32.mrf.mxu0
        %2597 = vdwg.mxu0
        %v2598 = vadd.f32 %v2238, %v2524
        %v2599 = vadd.f32 %v2239, %v2526
        %v2600 = vadd.f32 %v2240, %v2595
        %2601 = vrot.lane.b32.xlu0 %v211, 116
        %v2602 = vpop.permute.xlu0 %2601
        %v2603 = vsel %vm317, %v2602, 0
        %2605 = vmatprep.subr.mxu0 0.0
        %2606 = vmatpush1.msra.mxu0 0.0
        %2607 = vmatprep.subr.mxu0 0.0
        %2608 = vmatpush1.msra.mxu0 0.0
        %2609 = vmatprep.subr.mxu0 0.0
        %2610 = vmatpush1.msra.mxu0 0.0
        %2611 = vmatprep.subr.mxu0 0.0
        %2612 = vmatpush1.msra.mxu0 0.0
        %2613 = vmatprep.subr.mxu0 0.0
        %2614 = vmatpush1.msra.mxu0 0.0
        %2615 = vmatprep.subr.mxu0 0.0
        %2616 = vmatpush1.msra.mxu0 0.0
        %2617 = vmatprep.subr.mxu0 0.0
        %2618 = vmatpush1.msra.mxu0 0.0
        %2619 = vmatprep.subr.mxu0 0.0
        %2620 = vmatpush1.msra.mxu0 0.0
        %2621 = vmatprep.subr.mxu0 0.0
        %2622 = vmatpush1.msra.mxu0 0.0
        %2623 = vmatprep.subr.mxu0 0.0
        %2624 = vmatpush1.msra.mxu0 0.0
        %2625 = vmatprep.subr.mxu0 0.0
        %2626 = vmatpush1.msra.mxu0 0.0
        %2627 = vmatprep.subr.mxu0 0.0
        %2628 = vmatpush1.msra.mxu0 0.0
        %2629 = vmatprep.subr.mxu0 %v2453
        %2630 = vmatpush1.msra.mxu0 %v2451
        %2631 = vmatprep.subr.mxu0 %v2435
        %2632 = vmatpush1.msra.mxu0 %v2434
        %2633 = vmatprep.subr.mxu0 %v2432
        %2634 = vmatpush1.msra.mxu0 %v2431
        %2635 = vmatprep.subr.mxu0 %v2429
        %2636 = vmatpush1.msra.mxu0 %v2428
        %2637 = vmatprep.subr.mxu0 0.0
        %2638 = vmatpush2.msra.mxu0 0.0
        %2639 = vmatprep.subr.mxu0 0.0
        %2640 = vmatpush2.msra.mxu0 0.0
        %2641 = vmatprep.subr.mxu0 0.0
        %2642 = vmatpush2.msra.mxu0 0.0
        %2643 = vmatprep.subr.mxu0 0.0
        %2644 = vmatpush2.msra.mxu0 0.0
        %2645 = vmatprep.subr.mxu0 0.0
        %2646 = vmatpush2.msra.mxu0 0.0
        %2647 = vmatprep.subr.mxu0 0.0
        %2648 = vmatpush2.msra.mxu0 0.0
        %2649 = vmatprep.subr.mxu0 0.0
        %2650 = vmatpush2.msra.mxu0 0.0
        %2651 = vmatprep.subr.mxu0 0.0
        %2652 = vmatpush2.msra.mxu0 0.0
        %2653 = vmatprep.subr.mxu0 0.0
        %2654 = vmatpush2.msra.mxu0 0.0
        %2655 = vmatprep.subr.mxu0 0.0
        %2656 = vmatpush2.msra.mxu0 0.0
        %2657 = vmatprep.subr.mxu0 0.0
        %2658 = vmatpush2.msra.mxu0 0.0
        %2659 = vmatprep.subr.mxu0 0.0
        %2660 = vmatpush2.msra.mxu0 0.0
        %2661 = vmatprep.subr.mxu0 0.0
        %2662 = vmatpush2.msra.mxu0 0.0
        %2663 = vmatprep.subr.mxu0 0.0
        %2664 = vmatpush2.msra.mxu0 0.0
        %2665 = vmatprep.subr.mxu0 0.0
        %2666 = vmatpush2.msra.mxu0 0.0
        %2667 = vmatprep.subr.mxu0 0.0
        %2668 = vmatpush2.msra.mxu0 0.0
        %2669 = vmatprep.mubr.f32.mxu0 0.0
        %2670 = vmatmul.mubr.f32.gmra.mxu0 %v2603
        %v2671 = vpop.f32.mrf.mxu0
        %v2672 = vadd.f32 0.0, %v2671
        %v2673 = vpop.f32.mrf.mxu0
        %v2674 = vadd.f32 0.0, %v2673
        %2675 = vdwg.mxu0
        %2676 = vmatprep.subr.mxu0 0.0
        %2677 = vmatpush1.msra.mxu0 0.0
        %2678 = vmatprep.subr.mxu0 0.0
        %2679 = vmatpush1.msra.mxu0 0.0
        %2680 = vmatprep.subr.mxu0 0.0
        %2681 = vmatpush1.msra.mxu0 0.0
        %2682 = vmatprep.subr.mxu0 0.0
        %2683 = vmatpush1.msra.mxu0 0.0
        %2684 = vmatprep.subr.mxu0 0.0
        %2685 = vmatpush1.msra.mxu0 0.0
        %2686 = vmatprep.subr.mxu0 0.0
        %2687 = vmatpush1.msra.mxu0 0.0
        %2688 = vmatprep.subr.mxu0 0.0
        %2689 = vmatpush1.msra.mxu0 0.0
        %2690 = vmatprep.subr.mxu0 0.0
        %2691 = vmatpush1.msra.mxu0 0.0
        %2692 = vmatprep.subr.mxu0 0.0
        %2693 = vmatpush1.msra.mxu0 0.0
        %2694 = vmatprep.subr.mxu0 0.0
        %2695 = vmatpush1.msra.mxu0 0.0
        %2696 = vmatprep.subr.mxu0 0.0
        %2697 = vmatpush1.msra.mxu0 0.0
        %2698 = vmatprep.subr.mxu0 0.0
        %2699 = vmatpush1.msra.mxu0 0.0
        %2700 = vmatprep.subr.mxu0 0.0
        %2701 = vmatpush1.msra.mxu0 %v2455
        %2702 = vmatprep.subr.mxu0 0.0
        %2703 = vmatpush1.msra.mxu0 %v2436
        %2704 = vmatprep.subr.mxu0 0.0
        %2705 = vmatpush1.msra.mxu0 %v2433
        %2706 = vmatprep.subr.mxu0 0.0
        %2707 = vmatpush1.msra.mxu0 %v2430
        %2708 = vmatprep.subr.mxu0 0.0
        %2709 = vmatpush2.msra.mxu0 0.0
        %2710 = vmatprep.subr.mxu0 0.0
        %2711 = vmatpush2.msra.mxu0 0.0
        %2712 = vmatprep.subr.mxu0 0.0
        %2713 = vmatpush2.msra.mxu0 0.0
        %2714 = vmatprep.subr.mxu0 0.0
        %2715 = vmatpush2.msra.mxu0 0.0
        %2716 = vmatprep.subr.mxu0 0.0
        %2717 = vmatpush2.msra.mxu0 0.0
        %2718 = vmatprep.subr.mxu0 0.0
        %2719 = vmatpush2.msra.mxu0 0.0
        %2720 = vmatprep.subr.mxu0 0.0
        %2721 = vmatpush2.msra.mxu0 0.0
        %2722 = vmatprep.subr.mxu0 0.0
        %2723 = vmatpush2.msra.mxu0 0.0
        %2724 = vmatprep.subr.mxu0 0.0
        %2725 = vmatpush2.msra.mxu0 0.0
        %2726 = vmatprep.subr.mxu0 0.0
        %2727 = vmatpush2.msra.mxu0 0.0
        %2728 = vmatprep.subr.mxu0 0.0
        %2729 = vmatpush2.msra.mxu0 0.0
        %2730 = vmatprep.subr.mxu0 0.0
        %2731 = vmatpush2.msra.mxu0 0.0
        %2732 = vmatprep.subr.mxu0 0.0
        %2733 = vmatpush2.msra.mxu0 0.0
        %2734 = vmatprep.subr.mxu0 0.0
        %2735 = vmatpush2.msra.mxu0 0.0
        %2736 = vmatprep.subr.mxu0 0.0
        %2737 = vmatpush2.msra.mxu0 0.0
        %2738 = vmatprep.subr.mxu0 0.0
        %2739 = vmatpush2.msra.mxu0 0.0
        %2740 = vmatprep.mubr.f32.mxu0 0.0
        %2741 = vmatmul.mubr.f32.gmra.mxu0 %v2603
        %v2742 = vpop.f32.mrf.mxu0
        %v2743 = vadd.f32 0.0, %v2742
        %v2744 = vpop.f32.mrf.mxu0
        %2745 = vdwg.mxu0
        %v2746 = vadd.f32 %v2390, %v2672
        %v2747 = vadd.f32 %v2391, %v2674
        %v2748 = vadd.f32 %v2392, %v2743
        %2752 = vrot.lane.b32.xlu0 %v202, 121
        %v2753 = vpop.permute.xlu0 %2752
        %2754 = vrot.lane.b32.xlu0 %v237, 121
        %v2755 = vpop.permute.xlu0 %2754
        %2756 = vrot.lane.b32.xlu0 %v203, 121
        %v2757 = vpop.permute.xlu0 %2756
        %vm2758 = vcmask 990208
        %v2759 = vsel %vm2758, %v2753, %v2755
        %v2760 = vsel %vm2758, %v2755, %v2757
        %2764 = vrot.lane.b32.xlu0 %v234, 120
        %v2765 = vpop.permute.xlu0 %2764
        %2766 = vrot.lane.b32.xlu0 %v203, 120
        %v2767 = vpop.permute.xlu0 %2766
        %2768 = vrot.lane.b32.xlu0 %v825, 120
        %v2769 = vpop.permute.xlu0 %2768
        %vm2770 = vcmask 982016
        %v2771 = vsel %vm2770, %v2765, %v2767
        %v2772 = vsel %vm2770, %v2767, %v2769
        %2776 = vrot.lane.b32.xlu0 %v202, 119
        %v2777 = vpop.permute.xlu0 %2776
        %2778 = vrot.lane.b32.xlu0 %v237, 119
        %v2779 = vpop.permute.xlu0 %2778
        %2780 = vrot.lane.b32.xlu0 %v203, 119
        %v2781 = vpop.permute.xlu0 %2780
        %vm2782 = vcmask 973824
        %v2783 = vsel %vm2782, %v2777, %v2779
        %v2784 = vsel %vm2782, %v2779, %v2781
        %2788 = vrot.lane.b32.xlu0 %v234, 118
        %v2789 = vpop.permute.xlu0 %2788
        %2790 = vrot.lane.b32.xlu0 %v203, 118
        %v2791 = vpop.permute.xlu0 %2790
        %2792 = vrot.lane.b32.xlu0 %v825, 118
        %v2793 = vpop.permute.xlu0 %2792
        %vm2794 = vcmask 965632
        %v2795 = vsel %vm2794, %v2789, %v2791
        %v2796 = vsel %vm2794, %v2791, %v2793
        %v2797 = vsel %vm307, %v306, %v2759
        %v2798 = vsel %vm307, %v854, %v2760
        %v2799 = vsel %vm307, %v853, %v2757
        %v2800 = vsel %vm307, %v2771, %v2783
        %v2801 = vsel %vm307, %v2772, %v2784
        %v2802 = vsel %vm307, %v2769, %v2781
        %2803 = vrot.lane.b32.xlu0 %v211, 88
        %v2804 = vpop.permute.xlu0 %2803
        %v2805 = vsel %vm317, %v2804, 0
        %v2807 = vsel %vm307, %v2795, 0
        %v2809 = vsel %vm307, %v2796, 0
        %v2811 = vsel %vm307, %v2793, 0
        %2813 = vmatprep.subr.mxu0 0.0
        %2814 = vmatpush1.msra.mxu0 0.0
        %2815 = vmatprep.subr.mxu0 0.0
        %2816 = vmatpush1.msra.mxu0 0.0
        %2817 = vmatprep.subr.mxu0 0.0
        %2818 = vmatpush1.msra.mxu0 0.0
        %2819 = vmatprep.subr.mxu0 0.0
        %2820 = vmatpush1.msra.mxu0 0.0
        %2821 = vmatprep.subr.mxu0 0.0
        %2822 = vmatpush1.msra.mxu0 0.0
        %2823 = vmatprep.subr.mxu0 0.0
        %2824 = vmatpush1.msra.mxu0 0.0
        %2825 = vmatprep.subr.mxu0 0.0
        %2826 = vmatpush1.msra.mxu0 0.0
        %2827 = vmatprep.subr.mxu0 0.0
        %2828 = vmatpush1.msra.mxu0 0.0
        %2829 = vmatprep.subr.mxu0 0.0
        %2830 = vmatpush1.msra.mxu0 0.0
        %2831 = vmatprep.subr.mxu0 0.0
        %2832 = vmatpush1.msra.mxu0 0.0
        %2833 = vmatprep.subr.mxu0 0.0
        %2834 = vmatpush1.msra.mxu0 0.0
        %2835 = vmatprep.subr.mxu0 0.0
        %2836 = vmatpush1.msra.mxu0 0.0
        %2837 = vmatprep.subr.mxu0 %v2809
        %2838 = vmatpush1.msra.mxu0 %v2807
        %2839 = vmatprep.subr.mxu0 %v2801
        %2840 = vmatpush1.msra.mxu0 %v2800
        %2841 = vmatprep.subr.mxu0 %v2798
        %2842 = vmatpush1.msra.mxu0 %v2797
        %2843 = vmatprep.subr.mxu0 %v859
        %2844 = vmatpush1.msra.mxu0 %v315
        %2845 = vmatprep.subr.mxu0 0.0
        %2846 = vmatpush2.msra.mxu0 0.0
        %2847 = vmatprep.subr.mxu0 0.0
        %2848 = vmatpush2.msra.mxu0 0.0
        %2849 = vmatprep.subr.mxu0 0.0
        %2850 = vmatpush2.msra.mxu0 0.0
        %2851 = vmatprep.subr.mxu0 0.0
        %2852 = vmatpush2.msra.mxu0 0.0
        %2853 = vmatprep.subr.mxu0 0.0
        %2854 = vmatpush2.msra.mxu0 0.0
        %2855 = vmatprep.subr.mxu0 0.0
        %2856 = vmatpush2.msra.mxu0 0.0
        %2857 = vmatprep.subr.mxu0 0.0
        %2858 = vmatpush2.msra.mxu0 0.0
        %2859 = vmatprep.subr.mxu0 0.0
        %2860 = vmatpush2.msra.mxu0 0.0
        %2861 = vmatprep.subr.mxu0 0.0
        %2862 = vmatpush2.msra.mxu0 0.0
        %2863 = vmatprep.subr.mxu0 0.0
        %2864 = vmatpush2.msra.mxu0 0.0
        %2865 = vmatprep.subr.mxu0 0.0
        %2866 = vmatpush2.msra.mxu0 0.0
        %2867 = vmatprep.subr.mxu0 0.0
        %2868 = vmatpush2.msra.mxu0 0.0
        %2869 = vmatprep.subr.mxu0 0.0
        %2870 = vmatpush2.msra.mxu0 0.0
        %2871 = vmatprep.subr.mxu0 0.0
        %2872 = vmatpush2.msra.mxu0 0.0
        %2873 = vmatprep.subr.mxu0 0.0
        %2874 = vmatpush2.msra.mxu0 0.0
        %2875 = vmatprep.subr.mxu0 0.0
        %2876 = vmatpush2.msra.mxu0 0.0
        %2877 = vmatprep.mubr.f32.mxu0 0.0
        %2878 = vmatmul.mubr.f32.gmra.mxu0 %v2805
        %v2879 = vpop.f32.mrf.mxu0
        %v2880 = vadd.f32 0.0, %v2879
        %v2881 = vpop.f32.mrf.mxu0
        %v2882 = vadd.f32 0.0, %v2881
        %2883 = vdwg.mxu0
        %2884 = vmatprep.subr.mxu0 0.0
        %2885 = vmatpush1.msra.mxu0 0.0
        %2886 = vmatprep.subr.mxu0 0.0
        %2887 = vmatpush1.msra.mxu0 0.0
        %2888 = vmatprep.subr.mxu0 0.0
        %2889 = vmatpush1.msra.mxu0 0.0
        %2890 = vmatprep.subr.mxu0 0.0
        %2891 = vmatpush1.msra.mxu0 0.0
        %2892 = vmatprep.subr.mxu0 0.0
        %2893 = vmatpush1.msra.mxu0 0.0
        %2894 = vmatprep.subr.mxu0 0.0
        %2895 = vmatpush1.msra.mxu0 0.0
        %2896 = vmatprep.subr.mxu0 0.0
        %2897 = vmatpush1.msra.mxu0 0.0
        %2898 = vmatprep.subr.mxu0 0.0
        %2899 = vmatpush1.msra.mxu0 0.0
        %2900 = vmatprep.subr.mxu0 0.0
        %2901 = vmatpush1.msra.mxu0 0.0
        %2902 = vmatprep.subr.mxu0 0.0
        %2903 = vmatpush1.msra.mxu0 0.0
        %2904 = vmatprep.subr.mxu0 0.0
        %2905 = vmatpush1.msra.mxu0 0.0
        %2906 = vmatprep.subr.mxu0 0.0
        %2907 = vmatpush1.msra.mxu0 0.0
        %2908 = vmatprep.subr.mxu0 0.0
        %2909 = vmatpush1.msra.mxu0 %v2811
        %2910 = vmatprep.subr.mxu0 0.0
        %2911 = vmatpush1.msra.mxu0 %v2802
        %2912 = vmatprep.subr.mxu0 0.0
        %2913 = vmatpush1.msra.mxu0 %v2799
        %2914 = vmatprep.subr.mxu0 0.0
        %2915 = vmatpush1.msra.mxu0 %v860
        %2916 = vmatprep.subr.mxu0 0.0
        %2917 = vmatpush2.msra.mxu0 0.0
        %2918 = vmatprep.subr.mxu0 0.0
        %2919 = vmatpush2.msra.mxu0 0.0
        %2920 = vmatprep.subr.mxu0 0.0
        %2921 = vmatpush2.msra.mxu0 0.0
        %2922 = vmatprep.subr.mxu0 0.0
        %2923 = vmatpush2.msra.mxu0 0.0
        %2924 = vmatprep.subr.mxu0 0.0
        %2925 = vmatpush2.msra.mxu0 0.0
        %2926 = vmatprep.subr.mxu0 0.0
        %2927 = vmatpush2.msra.mxu0 0.0
        %2928 = vmatprep.subr.mxu0 0.0
        %2929 = vmatpush2.msra.mxu0 0.0
        %2930 = vmatprep.subr.mxu0 0.0
        %2931 = vmatpush2.msra.mxu0 0.0
        %2932 = vmatprep.subr.mxu0 0.0
        %2933 = vmatpush2.msra.mxu0 0.0
        %2934 = vmatprep.subr.mxu0 0.0
        %2935 = vmatpush2.msra.mxu0 0.0
        %2936 = vmatprep.subr.mxu0 0.0
        %2937 = vmatpush2.msra.mxu0 0.0
        %2938 = vmatprep.subr.mxu0 0.0
        %2939 = vmatpush2.msra.mxu0 0.0
        %2940 = vmatprep.subr.mxu0 0.0
        %2941 = vmatpush2.msra.mxu0 0.0
        %2942 = vmatprep.subr.mxu0 0.0
        %2943 = vmatpush2.msra.mxu0 0.0
        %2944 = vmatprep.subr.mxu0 0.0
        %2945 = vmatpush2.msra.mxu0 0.0
        %2946 = vmatprep.subr.mxu0 0.0
        %2947 = vmatpush2.msra.mxu0 0.0
        %2948 = vmatprep.mubr.f32.mxu0 0.0
        %2949 = vmatmul.mubr.f32.gmra.mxu0 %v2805
        %v2950 = vpop.f32.mrf.mxu0
        %v2951 = vadd.f32 0.0, %v2950
        %v2952 = vpop.f32.mrf.mxu0
        %2953 = vdwg.mxu0
        %v2954 = vadd.f32 %v2746, %v2880
        %v2955 = vadd.f32 %v2747, %v2882
        %v2956 = vadd.f32 %v2748, %v2951
        %v2957 = vmax.f32 %v2086, 0.0
        %v2958 = vmax.f32 %v2087, 0.0
        %v2959 = vmax.f32 %v2088, 0.0
        %v2960 = vadd.f32 %v2957, 0.0
        %v2961 = vadd.f32 %v2958, 0.0
        %v2962 = vadd.f32 %v2959, 0.0
        %v2963 = vmax.f32 %v2598, 0.0
        %v2964 = vmax.f32 %v2599, 0.0
        %v2965 = vmax.f32 %v2600, 0.0
        %v2966 = vadd.f32 %v2960, %v2963
        %v2967 = vadd.f32 %v2961, %v2964
        %v2968 = vadd.f32 %v2962, %v2965
        %v2969 = vmax.f32 %v2954, 0.0
        %v2970 = vmax.f32 %v2955, 0.0
        %v2971 = vmax.f32 %v2956, 0.0
        %v2972 = vadd.f32 %v2966, %v2969
        %v2973 = vadd.f32 %v2967, %v2970
        %v2974 = vadd.f32 %v2968, %v2971
        %2975 = vst [vmem:[%s201] sm:$0xff] %v2972
        %2976 = vst [vmem:[%s201 + $0x8] sm:$0xff] %v2973
        %vm2977 = vcmask 785408
        %2978 = vst.msk [vmem:[%s201 + $0x10] sm:$0xff] %vm2977, %v2974
        %s2979 = sand.u32 %s97, 1
        %s2980 = scalar_lea.sflag [#allocation4], %s2979
        %s2981 = sand.u32 %s97, 1
        %s2982 = smul.addr %s2981, 24
        %s2983 = scalar_lea.vmem [#allocation7], %s2982
        // Predicated region
        $region41: #{tpu_custom_call.1} parent=31 // pred_check
          %p2984 = pneg %p107
        $region42: #{tpu_custom_call.1} parent=31 // pred_check_branch
          %2986 = sbr.rel (%p2984) target = $region44
        $region43: #{tpu_custom_call.1} parent=31 // pred_region
          %s2988 = ssub.s32 384, 384
          %2989 = vsyncadd %s2980, %s2988
          %s2990 = smul.addr %s21, 3
          %s2991 = smul.addr %s2990, 128
          %s2992 = scalar_lea.hbm %s3, %s2991
          %s2994 = sshll.u32 %s2983, 4
          %s2995 = int_to_ptr.vmem [resolvable:$true] %s2994
          %2997 = dma.vmem_to_hbm [thread:$0]  %s2995, 384, %s2992, %s2980
        $region44: #{tpu_custom_call.1} parent=31 // pred_fallthru
          _
      $region32: #{tpu_custom_call.1} parent=5 // pred_fallthru
        _
      %p2998 = scmp.le.s32.totalorder 2, %s16
      // Predicated region
      $region45: #{tpu_custom_call.1} parent=5 // pred_check
        %p2999 = pneg %p2998
      $region46: #{tpu_custom_call.1} parent=5 // pred_check_branch
        %3001 = sbr.rel (%p2999) target = $region48
      $region47: #{tpu_custom_call.1} parent=5 // pred_region
        %s3002 = ssub.s32 %s16, 2
        // Predicated region
        $region49: #{tpu_custom_call.1} parent=47 // pred_check
          %p3003 = pneg %p113
        $region50: #{tpu_custom_call.1} parent=47 // pred_check_branch
          %3005 = sbr.rel (%p3003) target = $region52
        $region51: #{tpu_custom_call.1} parent=47 // pred_region
          %s3006 = sand.u32 %s98, 1
          %s3007 = scalar_lea.sflag [#allocation4], %s3006
          %s3008 = sand.u32 %s98, 1
          %s3009 = smul.addr %s3008, 24
          %s3010 = scalar_lea.vmem [#allocation7], %s3009
          %3011 = dma.done %s3007, 384
        $region52: #{tpu_custom_call.1} parent=47 // pred_fallthru
          _
      $region48: #{tpu_custom_call.1} parent=5 // pred_fallthru
        _
    $region6: #{tpu_custom_call.1} parent=1 // loop_footer
      %s20 = sadd.s32 1, %s16
    $region7: #{tpu_custom_call.1} parent=1 // loop_footer_branch
      %15 = sbr.rel target = $region3
    $region8: #{tpu_custom_call.1} parent=1 // loop_exit
      _
    %3012 = vsyncpa [#allocation3], 1
    %s3013 = scalar_lea.sflag [#allocation3], 1
    %3014 = vsyncpa %s3013, 1
    %3015 = vsyncpa [#allocation6], 1
    %3016 = vsyncpa [#allocation4], 1
    %s3017 = scalar_lea.sflag [#allocation4], 1
    %3018 = vsyncpa %s3017, 1

</llo_original>
